<compile_context>
chip_gen: v5e
topology: v5e:2x2
jax: 0.10.0
libtpu: 0.0.40
codegen_flags: <defaults>
</compile_context>

<pallas_src>
import functools

import jax
import jax.numpy as jnp
from jax.experimental import pallas as pl
from jax.experimental.pallas import tpu as pltpu

EPS = 1e-5


def _predict_block_kernel(x_ref, w_ref, fold_ref, bcast_ref, gamma_ref,
                          beta_ref, out_ref, pad_ref, *, residual: bool):
    N, H, WC = x_ref.shape
    C = gamma_ref.shape[1]
    W = WC // C
    rows = N * H
    count = rows * W                      # number of samples per BN channel

    # ---- Build the H-halo-padded activation slab in VMEM (no wrapper pad). --
    pad_ref[...] = jnp.zeros(pad_ref.shape, jnp.float32)
    pad_ref[:, 1:H + 1, :] = x_ref[...]

    # ---- Conv3x3 as 3 lane-dense banded matmuls (one per ky tap row). -------
    # slab_dy[(n,h), w*C+c] = x[n, h+dy-1, w, c] (zero halo rows); the dx taps
    # and W-direction zero padding live in the block-banded weight w_ref[dy].
    conv = jnp.zeros((rows, WC), jnp.float32)
    for dy in range(3):
        slab = pad_ref[:, dy:dy + H, :].reshape(rows, WC)
        conv = conv + jnp.dot(slab, w_ref[dy],
                              preferred_element_type=jnp.float32)

    # ---- BatchNorm2d (training-mode batch stats), two-pass, f32. ------------
    fold = fold_ref[...]                                    # (W*C, C): lanes->channel
    bcast = bcast_ref[...]                                  # (C, W*C): channel->lanes
    inv_count = 1.0 / count

    s_lane = jnp.sum(conv, axis=0, keepdims=True)           # (1, W*C)
    mean_c = jnp.dot(s_lane, fold,
                     preferred_element_type=jnp.float32) * inv_count   # (1, C)
    mean_wc = jnp.dot(mean_c, bcast,
                      preferred_element_type=jnp.float32)   # (1, W*C)
    d = conv - mean_wc
    v_lane = jnp.sum(d * d, axis=0, keepdims=True)          # (1, W*C)
    var_c = jnp.dot(v_lane, fold,
                    preferred_element_type=jnp.float32) * inv_count    # (1, C)
    inv_std = jax.lax.rsqrt(var_c + EPS)                    # (1, C)

    scale_wc = jnp.dot(gamma_ref[...] * inv_std, bcast,
                       preferred_element_type=jnp.float32)  # (1, W*C)
    beta_wc = jnp.dot(beta_ref[...], bcast,
                      preferred_element_type=jnp.float32)   # (1, W*C)
    out = d * scale_wc + beta_wc                            # lane-dense epilogue

    if residual:
        # Identity is the conv input, already resident in VMEM — no extra DMA.
        out = out + x_ref[...].reshape(rows, WC)

    out_ref[...] = jnp.maximum(out, 0.0).astype(out_ref.dtype)


def _build_banded_weight(w_hwio, W):
    """(3,3,Ci,Co) conv weight -> (3, W*Ci, W*Co) block-banded matrices.

    B[dy, j*Ci+ci, wo*Co+co] = w_hwio[dy, j-wo+1, ci, co] for |j-wo| <= 1,
    else 0.  The W-direction zero padding of the conv is folded into the band
    structure (missing blocks at the image edges).
    """
    _, _, Ci, Co = w_hwio.shape
    j = jnp.arange(W)[:, None]
    wo = jnp.arange(W)[None, :]
    bands = []
    for dy in range(3):
        band = jnp.zeros((W, Ci, W, Co), w_hwio.dtype)
        for dx in range(3):
            mask = (j == wo + dx - 1).astype(w_hwio.dtype)            # (W, W)
            band = band + mask[:, None, :, None] * w_hwio[dy, dx][None, :, None, :]
        bands.append(band.reshape(W * Ci, W * Co))
    return jnp.stack(bands)                                            # (3, WCi, WCo)


def predict_block(x_nhwc, w_hwio, gamma, beta, *, residual=False):
    """x_nhwc: (N,H,W,C) f32; w_hwio: (3,3,Cin,Cout); gamma/beta: (1, C)."""
    N, H, W, C = x_nhwc.shape
    WC = W * C

    x3d = x_nhwc.reshape(N, H, WC)                    # free row-major collapse
    w_banded = _build_banded_weight(w_hwio, W)        # (3, W*C, W*C)
    eye = jnp.eye(C, dtype=jnp.float32)
    fold = jnp.tile(eye, (W, 1))                      # (W*C, C)
    bcast = jnp.tile(eye, (1, W))                     # (C, W*C)

    kernel = functools.partial(_predict_block_kernel, residual=residual)
    full = lambda shape: pl.BlockSpec(shape, lambda i: (0,) * len(shape))

    out2d = pl.pallas_call(
        kernel,
        out_shape=jax.ShapeDtypeStruct((N * H, WC), x_nhwc.dtype),
        grid=(1,),
        in_specs=[
            full((N, H, WC)),      # activation, lane-dense
            full((3, WC, WC)),     # banded conv weights
            full((WC, C)),         # lanes -> channel fold matrix
            full((C, WC)),         # channel -> lanes broadcast matrix
            full((1, C)),          # BN gamma
            full((1, C)),          # BN beta
        ],
        out_specs=full((N * H, WC)),
        scratch_shapes=[pltpu.VMEM((N, H + 2, WC), jnp.float32)],
        compiler_params=pltpu.CompilerParams(
            dimension_semantics=("arbitrary",)),
    )(x3d, w_banded, fold, bcast, gamma, beta)

    return out2d.reshape(N, H, W, C)                  # free bitcast reshape


def _reference(x_nhwc, w_hwio, gamma, beta, *, residual=False):
    C = x_nhwc.shape[-1]
    conv = jax.lax.conv_general_dilated(
        x_nhwc, w_hwio, window_strides=(1, 1), padding="SAME",
        dimension_numbers=("NHWC", "HWIO", "NHWC"))
    mean = jnp.mean(conv, axis=(0, 1, 2), keepdims=True)
    var = jnp.mean((conv - mean) ** 2, axis=(0, 1, 2), keepdims=True)
    out = (conv - mean) * jax.lax.rsqrt(var + EPS) * gamma.reshape(1, 1, 1, C) \
        + beta.reshape(1, 1, 1, C)
    if residual:
        out = out + x_nhwc
    return jnp.maximum(out, 0.0)


if __name__ == "__main__":
    # Small shapes consistent with the module: batch=2, hidden_size=32, 16x16.
    N, C, H, W = 2, 32, 16, 16
    key = jax.random.PRNGKey(0)
    kx, kw, kg, kb = jax.random.split(key, 4)

    x_nchw = jax.random.normal(kx, (N, C, H, W), dtype=jnp.float32)
    # PyTorch conv weight (Cout, Cin, 3, 3) -> HWIO (ky, kx, cin, cout).
    w_oihw = jax.random.normal(kw, (C, C, 3, 3), dtype=jnp.float32) * 0.1
    w_hwio = jnp.transpose(w_oihw, (2, 3, 1, 0))
    gamma = (1.0 + 0.1 * jax.random.normal(kg, (C,), dtype=jnp.float32)).reshape(1, C)
    beta = (0.1 * jax.random.normal(kb, (C,), dtype=jnp.float32)).reshape(1, C)

    x_nhwc = jnp.transpose(x_nchw, (0, 2, 3, 1))

    ok = True
    for residual in (False, True):
        out = predict_block(x_nhwc, w_hwio, gamma, beta, residual=residual)
        out = jax.block_until_ready(out)
        ref = _reference(x_nhwc, w_hwio, gamma, beta, residual=residual)
        if not jnp.allclose(out, ref, atol=1e-4, rtol=1e-4):
            ok = False

    print("KERNEL_OK" if ok else "KERNEL_MISMATCH")
</pallas_src>

<mosaic_0001>
module attributes {stable_mosaic.version = 11 : i64} {
  func.func @_predict_block_kernel(%arg0: i32, %arg1: memref<2x16x512xf32, #tpu.memory_space<vmem>>, %arg2: memref<3x512x512xf32, #tpu.memory_space<vmem>>, %arg3: memref<512x32xf32, #tpu.memory_space<vmem>>, %arg4: memref<32x512xf32, #tpu.memory_space<vmem>>, %arg5: memref<1x32xf32, #tpu.memory_space<vmem>>, %arg6: memref<1x32xf32, #tpu.memory_space<vmem>>, %arg7: memref<32x512xf32, #tpu.memory_space<vmem>>, %arg8: memref<2x18x512xf32, #tpu.memory_space<vmem>>) attributes {dimension_semantics = [#tpu.dimension_semantics<arbitrary>], iteration_bounds = array<i64: 1>, scalar_prefetch = 0 : i64, scratch_operands = 1 : i64, tpu.core_type = #tpu.core_type<tc>, window_params = [{pipeline_mode = #tpu.pipeline_mode<synchronous>, transform_indices = @transform_0, window_bounds = array<i64: 2, 16, 512>}, {pipeline_mode = #tpu.pipeline_mode<synchronous>, transform_indices = @transform_1, window_bounds = array<i64: 3, 512, 512>}, {pipeline_mode = #tpu.pipeline_mode<synchronous>, transform_indices = @transform_2, window_bounds = array<i64: 512, 32>}, {pipeline_mode = #tpu.pipeline_mode<synchronous>, transform_indices = @transform_3, window_bounds = array<i64: 32, 512>}, {pipeline_mode = #tpu.pipeline_mode<synchronous>, transform_indices = @transform_4, window_bounds = array<i64: 1, 32>}, {pipeline_mode = #tpu.pipeline_mode<synchronous>, transform_indices = @transform_5, window_bounds = array<i64: 1, 32>}, {pipeline_mode = #tpu.pipeline_mode<synchronous>, transform_indices = @transform_6, window_bounds = array<i64: 32, 512>}]} {
    %cst = arith.constant 0.000000e+00 : f32
    %0 = vector.broadcast %cst : f32 to vector<2x18x512xf32>
    %c0 = arith.constant 0 : index
    %c0_0 = arith.constant 0 : index
    %c0_1 = arith.constant 0 : index
    %1 = vector.load %arg8[%c0, %c0_0, %c0_1] : memref<2x18x512xf32, #tpu.memory_space<vmem>>, vector<2x18x512xf32>
    tpu.vector_store %arg8[%c0, %c0_0, %c0_1], %0 {strides = array<i32>} : memref<2x18x512xf32, #tpu.memory_space<vmem>>, vector<2x18x512xf32>,
    %c0_2 = arith.constant 0 : index
    %c0_3 = arith.constant 0 : index
    %c0_4 = arith.constant 0 : index
    %2 = vector.load %arg1[%c0_2, %c0_3, %c0_4] : memref<2x16x512xf32, #tpu.memory_space<vmem>>, vector<2x16x512xf32>
    %c0_5 = arith.constant 0 : index
    %c1 = arith.constant 1 : index
    %c0_6 = arith.constant 0 : index
    %3 = vector.load %arg8[%c0_5, %c1, %c0_6] : memref<2x18x512xf32, #tpu.memory_space<vmem>>, vector<2x16x512xf32>
    tpu.vector_store %arg8[%c0_5, %c1, %c0_6], %2 {strides = array<i32>} : memref<2x18x512xf32, #tpu.memory_space<vmem>>, vector<2x16x512xf32>,
    %cst_7 = arith.constant 0.000000e+00 : f32
    %4 = vector.broadcast %cst_7 : f32 to vector<32x512xf32>
    %c0_8 = arith.constant 0 : index
    %c0_9 = arith.constant 0 : index
    %c0_10 = arith.constant 0 : index
    %5 = vector.load %arg8[%c0_8, %c0_9, %c0_10] : memref<2x18x512xf32, #tpu.memory_space<vmem>>, vector<2x16x512xf32>
    %6 = vector.shape_cast %5 : vector<2x16x512xf32> to vector<32x512xf32>
    %c0_11 = arith.constant 0 : index
    %c0_12 = arith.constant 0 : index
    %c0_13 = arith.constant 0 : index
    %7 = vector.load %arg2[%c0_11, %c0_12, %c0_13] : memref<3x512x512xf32, #tpu.memory_space<vmem>>, vector<1x512x512xf32>
    %8 = vector.shape_cast %7 : vector<1x512x512xf32> to vector<512x512xf32>
    %cst_14 = arith.constant dense<0.000000e+00> : vector<32x512xf32>
    %9 = tpu.matmul %6, %8, %cst_14 {dimension_numbers = #tpu.dot_dimension_numbers<[1], [0], [0], [1], [0, 0, 1, 1], [], []>} : vector<32x512xf32>, vector<512x512xf32>, vector<32x512xf32> -> vector<32x512xf32>
    %10 = arith.addf %4, %9 : vector<32x512xf32>
    %c0_15 = arith.constant 0 : index
    %c1_16 = arith.constant 1 : index
    %c0_17 = arith.constant 0 : index
    %11 = vector.load %arg8[%c0_15, %c1_16, %c0_17] : memref<2x18x512xf32, #tpu.memory_space<vmem>>, vector<2x16x512xf32>
    %12 = vector.shape_cast %11 : vector<2x16x512xf32> to vector<32x512xf32>
    %c1_18 = arith.constant 1 : index
    %c0_19 = arith.constant 0 : index
    %c0_20 = arith.constant 0 : index
    %13 = vector.load %arg2[%c1_18, %c0_19, %c0_20] : memref<3x512x512xf32, #tpu.memory_space<vmem>>, vector<1x512x512xf32>
    %14 = vector.shape_cast %13 : vector<1x512x512xf32> to vector<512x512xf32>
    %cst_21 = arith.constant dense<0.000000e+00> : vector<32x512xf32>
    %15 = tpu.matmul %12, %14, %cst_21 {dimension_numbers = #tpu.dot_dimension_numbers<[1], [0], [0], [1], [0, 0, 1, 1], [], []>} : vector<32x512xf32>, vector<512x512xf32>, vector<32x512xf32> -> vector<32x512xf32>
    %16 = arith.addf %10, %15 : vector<32x512xf32>
    %c0_22 = arith.constant 0 : index
    %c2 = arith.constant 2 : index
    %c0_23 = arith.constant 0 : index
    %17 = vector.load %arg8[%c0_22, %c2, %c0_23] : memref<2x18x512xf32, #tpu.memory_space<vmem>>, vector<2x16x512xf32>
    %18 = vector.shape_cast %17 : vector<2x16x512xf32> to vector<32x512xf32>
    %c2_24 = arith.constant 2 : index
    %c0_25 = arith.constant 0 : index
    %c0_26 = arith.constant 0 : index
    %19 = vector.load %arg2[%c2_24, %c0_25, %c0_26] : memref<3x512x512xf32, #tpu.memory_space<vmem>>, vector<1x512x512xf32>
    %20 = vector.shape_cast %19 : vector<1x512x512xf32> to vector<512x512xf32>
    %cst_27 = arith.constant dense<0.000000e+00> : vector<32x512xf32>
    %21 = tpu.matmul %18, %20, %cst_27 {dimension_numbers = #tpu.dot_dimension_numbers<[1], [0], [0], [1], [0, 0, 1, 1], [], []>} : vector<32x512xf32>, vector<512x512xf32>, vector<32x512xf32> -> vector<32x512xf32>
    %22 = arith.addf %16, %21 : vector<32x512xf32>
    %c0_28 = arith.constant 0 : index
    %c0_29 = arith.constant 0 : index
    %23 = vector.load %arg3[%c0_28, %c0_29] : memref<512x32xf32, #tpu.memory_space<vmem>>, vector<512x32xf32>
    %c0_30 = arith.constant 0 : index
    %c0_31 = arith.constant 0 : index
    %24 = vector.load %arg4[%c0_30, %c0_31] : memref<32x512xf32, #tpu.memory_space<vmem>>, vector<32x512xf32>
    %cst_32 = arith.constant dense<0.000000e+00> : vector<512xf32>
    %25 = vector.multi_reduction <add>, %22, %cst_32 [0] : vector<32x512xf32> to vector<512xf32>
    %26 = vector.shape_cast %25 : vector<512xf32> to vector<1x512xf32>
    %cst_33 = arith.constant dense<0.000000e+00> : vector<1x32xf32>
    %27 = tpu.matmul %26, %23, %cst_33 {dimension_numbers = #tpu.dot_dimension_numbers<[1], [0], [0], [1], [0, 0, 1, 1], [], []>} : vector<1x512xf32>, vector<512x32xf32>, vector<1x32xf32> -> vector<1x32xf32>
    %cst_34 = arith.constant 0.001953125 : f32
    %28 = vector.broadcast %cst_34 : f32 to vector<1x32xf32>
    %29 = arith.mulf %27, %28 : vector<1x32xf32>
    %cst_35 = arith.constant dense<0.000000e+00> : vector<1x512xf32>
    %30 = tpu.matmul %29, %24, %cst_35 {dimension_numbers = #tpu.dot_dimension_numbers<[1], [0], [0], [1], [0, 0, 1, 1], [], []>} : vector<1x32xf32>, vector<32x512xf32>, vector<1x512xf32> -> vector<1x512xf32>
    %31 = vector.broadcast %30 : vector<1x512xf32> to vector<32x512xf32>
    %32 = arith.subf %22, %31 : vector<32x512xf32>
    %33 = arith.mulf %32, %32 : vector<32x512xf32>
    %cst_36 = arith.constant dense<0.000000e+00> : vector<512xf32>
    %34 = vector.multi_reduction <add>, %33, %cst_36 [0] : vector<32x512xf32> to vector<512xf32>
    %35 = vector.shape_cast %34 : vector<512xf32> to vector<1x512xf32>
    %cst_37 = arith.constant dense<0.000000e+00> : vector<1x32xf32>
    %36 = tpu.matmul %35, %23, %cst_37 {dimension_numbers = #tpu.dot_dimension_numbers<[1], [0], [0], [1], [0, 0, 1, 1], [], []>} : vector<1x512xf32>, vector<512x32xf32>, vector<1x32xf32> -> vector<1x32xf32>
    %cst_38 = arith.constant 0.001953125 : f32
    %37 = vector.broadcast %cst_38 : f32 to vector<1x32xf32>
    %38 = arith.mulf %36, %37 : vector<1x32xf32>
    %cst_39 = arith.constant 9.99999974E-6 : f32
    %39 = vector.broadcast %cst_39 : f32 to vector<1x32xf32>
    %40 = arith.addf %38, %39 : vector<1x32xf32>
    %41 = math.rsqrt %40 : vector<1x32xf32>
    %c0_40 = arith.constant 0 : index
    %c0_41 = arith.constant 0 : index
    %42 = vector.load %arg5[%c0_40, %c0_41] : memref<1x32xf32, #tpu.memory_space<vmem>>, vector<1x32xf32>
    %43 = arith.mulf %42, %41 : vector<1x32xf32>
    %cst_42 = arith.constant dense<0.000000e+00> : vector<1x512xf32>
    %44 = tpu.matmul %43, %24, %cst_42 {dimension_numbers = #tpu.dot_dimension_numbers<[1], [0], [0], [1], [0, 0, 1, 1], [], []>} : vector<1x32xf32>, vector<32x512xf32>, vector<1x512xf32> -> vector<1x512xf32>
    %c0_43 = arith.constant 0 : index
    %c0_44 = arith.constant 0 : index
    %45 = vector.load %arg6[%c0_43, %c0_44] : memref<1x32xf32, #tpu.memory_space<vmem>>, vector<1x32xf32>
    %cst_45 = arith.constant dense<0.000000e+00> : vector<1x512xf32>
    %46 = tpu.matmul %45, %24, %cst_45 {dimension_numbers = #tpu.dot_dimension_numbers<[1], [0], [0], [1], [0, 0, 1, 1], [], []>} : vector<1x32xf32>, vector<32x512xf32>, vector<1x512xf32> -> vector<1x512xf32>
    %47 = vector.broadcast %44 : vector<1x512xf32> to vector<32x512xf32>
    %48 = arith.mulf %32, %47 : vector<32x512xf32>
    %49 = vector.broadcast %46 : vector<1x512xf32> to vector<32x512xf32>
    %50 = arith.addf %48, %49 : vector<32x512xf32>
    %cst_46 = arith.constant 0.000000e+00 : f32
    %51 = vector.broadcast %cst_46 : f32 to vector<32x512xf32>
    %52 = arith.maximumf %50, %51 : vector<32x512xf32>
    %c0_47 = arith.constant 0 : index
    %c0_48 = arith.constant 0 : index
    %53 = vector.load %arg7[%c0_47, %c0_48] : memref<32x512xf32, #tpu.memory_space<vmem>>, vector<32x512xf32>
    tpu.vector_store %arg7[%c0_47, %c0_48], %52 {strides = array<i32>} : memref<32x512xf32, #tpu.memory_space<vmem>>, vector<32x512xf32>,
    return
  }
  func.func @transform_0(%arg0: i32) -> (i32, i32, i32) {
    %c0_i32 = arith.constant 0 : i32
    %c0_i32_0 = arith.constant 0 : i32
    %c0_i32_1 = arith.constant 0 : i32
    %c0_i32_2 = arith.constant 0 : i32
    return %c0_i32, %c0_i32_0, %c0_i32_1 : i32, i32, i32
  }
  func.func @transform_1(%arg0: i32) -> (i32, i32, i32) {
    %c0_i32 = arith.constant 0 : i32
    %c0_i32_0 = arith.constant 0 : i32
    %c0_i32_1 = arith.constant 0 : i32
    %c0_i32_2 = arith.constant 0 : i32
    return %c0_i32, %c0_i32_0, %c0_i32_1 : i32, i32, i32
  }
  func.func @transform_2(%arg0: i32) -> (i32, i32) {
    %c0_i32 = arith.constant 0 : i32
    %c0_i32_0 = arith.constant 0 : i32
    %c0_i32_1 = arith.constant 0 : i32
    return %c0_i32, %c0_i32_0 : i32, i32
  }
  func.func @transform_3(%arg0: i32) -> (i32, i32) {
    %c0_i32 = arith.constant 0 : i32
    %c0_i32_0 = arith.constant 0 : i32
    %c0_i32_1 = arith.constant 0 : i32
    return %c0_i32, %c0_i32_0 : i32, i32
  }
  func.func @transform_4(%arg0: i32) -> (i32, i32) {
    %c0_i32 = arith.constant 0 : i32
    %c0_i32_0 = arith.constant 0 : i32
    %c0_i32_1 = arith.constant 0 : i32
    return %c0_i32, %c0_i32_0 : i32, i32
  }
  func.func @transform_5(%arg0: i32) -> (i32, i32) {
    %c0_i32 = arith.constant 0 : i32
    %c0_i32_0 = arith.constant 0 : i32
    %c0_i32_1 = arith.constant 0 : i32
    return %c0_i32, %c0_i32_0 : i32, i32
  }
  func.func @transform_6(%arg0: i32) -> (i32, i32) {
    %c0_i32 = arith.constant 0 : i32
    %c0_i32_0 = arith.constant 0 : i32
    %c0_i32_1 = arith.constant 0 : i32
    return %c0_i32, %c0_i32_0 : i32, i32
  }
}

</mosaic_0001>

<llo_original>
// kernel: tpu_custom_call.1
$region0: #{tpu_custom_call.1}
  #allocation0 [shape = 'u32[]', space=smem, size = 0x4, offset = 0x4, fixed_abs, tag = 'smem constant byte address 0x4 - core index']
  #allocation1 [shape = 'u32[72,128]{1,0:T(1,128)}', space=vmem, size = 0x9000, scoped, tag = 'internal scratch']
  #allocation2 [shape = 'f32[2,18,512]{2,1,0:T(8,128)}', space=vmem, size = 0x18000, scoped, tag = 'scratch operand']
  %s0 = inlined_call_operand.hbm [shape: f32[2,16,512], index: 0, kind: input, shape index: {}]
  %s1 = inlined_call_operand.hbm [shape: f32[3,512,512], index: 1, kind: input, shape index: {}]
  %s2 = inlined_call_operand.vmem [shape: f32[512,32], index: 2, kind: input, shape index: {}]
  %s3 = inlined_call_operand.hbm [shape: f32[32,512], index: 3, kind: input, shape index: {}]
  %s4 = inlined_call_operand.hbm [shape: f32[1,32], index: 4, kind: input, shape index: {}]
  %s5 = inlined_call_operand.hbm [shape: f32[1,32], index: 5, kind: input, shape index: {}]
  %s6 = inlined_call_operand.hbm [shape: f32[32,512], index: 6, kind: output, shape index: {}]
  %s7 = sld [smem:[#allocation0]]
  $region54: #{tpu_custom_call.1} parent=0
    _
  %s9 = ssub.s32 1, %s7
  %s10 = scalar_select 0, %s9, %s7
  $region1: #{tpu_custom_call.1} parent=0
    #allocation3 [shape = 'u8[65536]{0}', space=vmem, size = 0x10000, scoped, tag = 'input window, operand 0, single buffered']
    #allocation4 [shape = 's32[1]{0}', space=sflag, size = 0x4, scoped, tag = 'scoped memory for tpu_custom_call.1']
    #allocation5 [shape = 's32[1]{0}', space=sflag, size = 0x4, scoped, tag = 'scoped memory for tpu_custom_call.1']
    #allocation6 [shape = 'u8[3145728]{0}', space=vmem, size = 0x300000, scoped, tag = 'input window, operand 1, single buffered']
    #allocation7 [shape = 's32[1]{0}', space=sflag, size = 0x4, scoped, tag = 'scoped memory for tpu_custom_call.1']
    #allocation8 [shape = 'u8[65536]{0}', space=vmem, size = 0x10000, scoped, tag = 'input window, operand 3, single buffered']
    #allocation9 [shape = 'u8[512]{0}', space=vmem, size = 0x400, scoped, tag = 'input window, operand 4, single buffered']
    #allocation10 [shape = 's32[1]{0}', space=sflag, size = 0x4, scoped, tag = 'scoped memory for tpu_custom_call.1']
    #allocation11 [shape = 'u8[512]{0}', space=vmem, size = 0x400, scoped, tag = 'input window, operand 5, single buffered']
    #allocation12 [shape = 'u8[65536]{0}', space=vmem, size = 0x10000, scoped, tag = 'output window, operand 0, single buffered']
    %11 = vsyncpa [#allocation4], 0
    %12 = vsyncpa [#allocation7], 0
    %13 = vsyncpa [#allocation10], 0
    %14 = vsyncpa [#allocation5], 0
    // Predicated region
    $region2: #{tpu_custom_call.1} parent=1 // pred_check
      _
    $region3: #{tpu_custom_call.1} parent=1 // pred_check_branch
      %16 = sbr.rel (0) target = $region5
    $region4: #{tpu_custom_call.1} parent=1 // pred_region
      %18 = vsyncadd [#allocation4], 0
      %s19 = sshll.u32 %s0, 4
      %s20 = int_to_ptr.hbm [resolvable:$true] %s19
      %s21 = sshll.u32 [#allocation3], 4
      %s22 = int_to_ptr.vmem [resolvable:$true] %s21
      %27 = dma.hbm_to_vmem [thread:$0]  %s20, 2048, %s22, [#allocation4], 512, 512, 32
    $region5: #{tpu_custom_call.1} parent=1 // pred_fallthru
      _
    // Predicated region
    $region6: #{tpu_custom_call.1} parent=1 // pred_check
      _
    $region7: #{tpu_custom_call.1} parent=1 // pred_check_branch
      %29 = sbr.rel (0) target = $region9
    $region8: #{tpu_custom_call.1} parent=1 // pred_region
      %31 = vsyncadd [#allocation7], 0
      %s32 = sshll.u32 %s1, 4
      %s33 = int_to_ptr.hbm [resolvable:$true] %s32
      %s34 = sshll.u32 [#allocation6], 4
      %s35 = int_to_ptr.vmem [resolvable:$true] %s34
      %40 = dma.hbm_to_vmem [thread:$0]  %s33, 98304, %s35, [#allocation7], 512, 512, 32
    $region9: #{tpu_custom_call.1} parent=1 // pred_fallthru
      _
    // Predicated region
    $region10: #{tpu_custom_call.1} parent=1 // pred_check
      _
    $region11: #{tpu_custom_call.1} parent=1 // pred_check_branch
      %42 = sbr.rel (0) target = $region13
    $region12: #{tpu_custom_call.1} parent=1 // pred_region
      _
    $region13: #{tpu_custom_call.1} parent=1 // pred_fallthru
      _
    // Predicated region
    $region14: #{tpu_custom_call.1} parent=1 // pred_check
      _
    $region15: #{tpu_custom_call.1} parent=1 // pred_check_branch
      %44 = sbr.rel (0) target = $region17
    $region16: #{tpu_custom_call.1} parent=1 // pred_region
      %46 = vsyncadd [#allocation7], 0
      %s47 = sshll.u32 %s3, 4
      %s48 = int_to_ptr.hbm [resolvable:$true] %s47
      %s49 = sshll.u32 [#allocation8], 4
      %s50 = int_to_ptr.vmem [resolvable:$true] %s49
      %55 = dma.hbm_to_vmem [thread:$0]  %s48, 2048, %s50, [#allocation7], 512, 512, 32
    $region17: #{tpu_custom_call.1} parent=1 // pred_fallthru
      _
    // Predicated region
    $region18: #{tpu_custom_call.1} parent=1 // pred_check
      _
    $region19: #{tpu_custom_call.1} parent=1 // pred_check_branch
      %57 = sbr.rel (0) target = $region21
    $region20: #{tpu_custom_call.1} parent=1 // pred_region
      %59 = vsyncadd [#allocation10], 0
      %s61 = sshll.u32 %s4, 4
      %s62 = int_to_ptr.hbm [resolvable:$true] %s61
      %s63 = sshll.u32 [#allocation9], 4
      %s64 = int_to_ptr.vmem [resolvable:$true] %s63
      %66 = dma.hbm_to_vmem [thread:$0]  %s62, 16, %s64, [#allocation10]
    $region21: #{tpu_custom_call.1} parent=1 // pred_fallthru
      _
    // Predicated region
    $region22: #{tpu_custom_call.1} parent=1 // pred_check
      _
    $region23: #{tpu_custom_call.1} parent=1 // pred_check_branch
      %68 = sbr.rel (0) target = $region25
    $region24: #{tpu_custom_call.1} parent=1 // pred_region
      %70 = vsyncadd [#allocation10], 0
      %s72 = sshll.u32 %s5, 4
      %s73 = int_to_ptr.hbm [resolvable:$true] %s72
      %s74 = sshll.u32 [#allocation11], 4
      %s75 = int_to_ptr.vmem [resolvable:$true] %s74
      %77 = dma.hbm_to_vmem [thread:$0]  %s73, 16, %s75, [#allocation10]
    $region25: #{tpu_custom_call.1} parent=1 // pred_fallthru
      _
    // Predicated region
    $region26: #{tpu_custom_call.1} parent=1 // pred_check
      _
    $region27: #{tpu_custom_call.1} parent=1 // pred_check_branch
      %79 = sbr.rel (0) target = $region29
    $region28: #{tpu_custom_call.1} parent=1 // pred_region
      %81 = dma.done [#allocation4], 2048
    $region29: #{tpu_custom_call.1} parent=1 // pred_fallthru
      _
    // Predicated region
    $region30: #{tpu_custom_call.1} parent=1 // pred_check
      _
    $region31: #{tpu_custom_call.1} parent=1 // pred_check_branch
      %83 = sbr.rel (0) target = $region33
    $region32: #{tpu_custom_call.1} parent=1 // pred_region
      %85 = dma.done [#allocation7], 98304
    $region33: #{tpu_custom_call.1} parent=1 // pred_fallthru
      _
    // Predicated region
    $region34: #{tpu_custom_call.1} parent=1 // pred_check
      _
    $region35: #{tpu_custom_call.1} parent=1 // pred_check_branch
      %87 = sbr.rel (0) target = $region37
    $region36: #{tpu_custom_call.1} parent=1 // pred_region
      %89 = dma.done [#allocation7], 2048
    $region37: #{tpu_custom_call.1} parent=1 // pred_fallthru
      _
    // Predicated region
    $region38: #{tpu_custom_call.1} parent=1 // pred_check
      _
    $region39: #{tpu_custom_call.1} parent=1 // pred_check_branch
      %91 = sbr.rel (0) target = $region41
    $region40: #{tpu_custom_call.1} parent=1 // pred_region
      %93 = dma.done [#allocation10], 16
    $region41: #{tpu_custom_call.1} parent=1 // pred_fallthru
      _
    // Predicated region
    $region42: #{tpu_custom_call.1} parent=1 // pred_check
      _
    $region43: #{tpu_custom_call.1} parent=1 // pred_check_branch
      %95 = sbr.rel (0) target = $region45
    $region44: #{tpu_custom_call.1} parent=1 // pred_region
      %97 = dma.done [#allocation10], 16
    $region45: #{tpu_custom_call.1} parent=1 // pred_fallthru
      _
    %98 = vst [vmem:[#allocation2] sm:$0xff] 0.0
    %99 = vst [vmem:[#allocation2 + $0x8] sm:$0xff] 0.0
    %100 = vst [vmem:[#allocation2 + $0x10] sm:$0xff] 0.0
    %101 = vst [vmem:[#allocation2 + $0x18] sm:$0xff] 0.0
    %102 = vst [vmem:[#allocation2 + $0x20] sm:$0xff] 0.0
    %103 = vst [vmem:[#allocation2 + $0x28] sm:$0xff] 0.0
    %104 = vst [vmem:[#allocation2 + $0x30] sm:$0xff] 0.0
    %105 = vst [vmem:[#allocation2 + $0x38] sm:$0xff] 0.0
    %106 = vst [vmem:[#allocation2 + $0x40] sm:$0x3] 0.0
    %107 = vst [vmem:[#allocation2 + $0x48] sm:$0x3] 0.0
    %108 = vst [vmem:[#allocation2 + $0x50] sm:$0x3] 0.0
    %109 = vst [vmem:[#allocation2 + $0x58] sm:$0x3] 0.0
    %110 = vst [vmem:[#allocation2 + $0x60] sm:$0xff] 0.0
    %111 = vst [vmem:[#allocation2 + $0x68] sm:$0xff] 0.0
    %112 = vst [vmem:[#allocation2 + $0x70] sm:$0xff] 0.0
    %113 = vst [vmem:[#allocation2 + $0x78] sm:$0xff] 0.0
    %114 = vst [vmem:[#allocation2 + $0x80] sm:$0xff] 0.0
    %115 = vst [vmem:[#allocation2 + $0x88] sm:$0xff] 0.0
    %116 = vst [vmem:[#allocation2 + $0x90] sm:$0xff] 0.0
    %117 = vst [vmem:[#allocation2 + $0x98] sm:$0xff] 0.0
    %118 = vst [vmem:[#allocation2 + $0xa0] sm:$0x3] 0.0
    %119 = vst [vmem:[#allocation2 + $0xa8] sm:$0x3] 0.0
    %120 = vst [vmem:[#allocation2 + $0xb0] sm:$0x3] 0.0
    %121 = vst [vmem:[#allocation2 + $0xb8] sm:$0x3] 0.0
    %v122 = vld [vmem:[#allocation3] sm:$0xff]
    %v123 = vld [vmem:[#allocation3 + $0x8] sm:$0xff]
    %v124 = vld [vmem:[#allocation3 + $0x10] sm:$0xff]
    %v125 = vld [vmem:[#allocation3 + $0x18] sm:$0xff]
    %v126 = vld [vmem:[#allocation3 + $0x20] sm:$0xff]
    %v127 = vld [vmem:[#allocation3 + $0x28] sm:$0xff]
    %v128 = vld [vmem:[#allocation3 + $0x30] sm:$0xff]
    %v129 = vld [vmem:[#allocation3 + $0x38] sm:$0xff]
    %v130 = vld [vmem:[#allocation3 + $0x40] sm:$0xff]
    %v131 = vld [vmem:[#allocation3 + $0x48] sm:$0xff]
    %v132 = vld [vmem:[#allocation3 + $0x50] sm:$0xff]
    %v133 = vld [vmem:[#allocation3 + $0x58] sm:$0xff]
    %v134 = vld [vmem:[#allocation3 + $0x60] sm:$0xff]
    %v135 = vld [vmem:[#allocation3 + $0x68] sm:$0xff]
    %v136 = vld [vmem:[#allocation3 + $0x70] sm:$0xff]
    %v137 = vld [vmem:[#allocation3 + $0x78] sm:$0xff]
    %vm154 = vcmask 1040384
    %v155 = vrot.slane %v122, 7
    %v156 = vrot.slane %v123, 7
    %v157 = vrot.slane %v124, 7
    %v158 = vrot.slane %v125, 7
    %v159 = vrot.slane %v126, 7
    %v160 = vsel %vm154, %v155, %v159
    %v161 = vrot.slane %v127, 7
    %v162 = vsel %vm154, %v156, %v161
    %v163 = vrot.slane %v128, 7
    %v164 = vsel %vm154, %v157, %v163
    %v165 = vrot.slane %v129, 7
    %v166 = vsel %vm154, %v158, %v165
    %v167 = vrot.slane %v130, 7
    %v168 = vrot.slane %v131, 7
    %v169 = vrot.slane %v132, 7
    %v170 = vrot.slane %v133, 7
    %v171 = vrot.slane %v134, 7
    %v172 = vsel %vm154, %v167, %v171
    %v173 = vrot.slane %v135, 7
    %v174 = vsel %vm154, %v168, %v173
    %v175 = vrot.slane %v136, 7
    %v176 = vsel %vm154, %v169, %v175
    %v177 = vrot.slane %v137, 7
    %v178 = vsel %vm154, %v170, %v177
    %203 = vst [vmem:[#allocation2] sm:$0xfe] %v155
    %204 = vst [vmem:[#allocation2 + $0x8] sm:$0xfe] %v156
    %205 = vst [vmem:[#allocation2 + $0x10] sm:$0xfe] %v157
    %206 = vst [vmem:[#allocation2 + $0x18] sm:$0xfe] %v158
    %207 = vst [vmem:[#allocation2 + $0x20] sm:$0xff] %v160
    %208 = vst [vmem:[#allocation2 + $0x28] sm:$0xff] %v162
    %209 = vst [vmem:[#allocation2 + $0x30] sm:$0xff] %v164
    %210 = vst [vmem:[#allocation2 + $0x38] sm:$0xff] %v166
    %211 = vst [vmem:[#allocation2 + $0x40] sm:$0x1] %v159
    %212 = vst [vmem:[#allocation2 + $0x48] sm:$0x1] %v161
    %213 = vst [vmem:[#allocation2 + $0x50] sm:$0x1] %v163
    %214 = vst [vmem:[#allocation2 + $0x58] sm:$0x1] %v165
    %215 = vst [vmem:[#allocation2 + $0x60] sm:$0xfe] %v167
    %216 = vst [vmem:[#allocation2 + $0x68] sm:$0xfe] %v168
    %217 = vst [vmem:[#allocation2 + $0x70] sm:$0xfe] %v169
    %218 = vst [vmem:[#allocation2 + $0x78] sm:$0xfe] %v170
    %219 = vst [vmem:[#allocation2 + $0x80] sm:$0xff] %v172
    %220 = vst [vmem:[#allocation2 + $0x88] sm:$0xff] %v174
    %221 = vst [vmem:[#allocation2 + $0x90] sm:$0xff] %v176
    %222 = vst [vmem:[#allocation2 + $0x98] sm:$0xff] %v178
    %223 = vst [vmem:[#allocation2 + $0xa0] sm:$0x1] %v171
    %224 = vst [vmem:[#allocation2 + $0xa8] sm:$0x1] %v173
    %225 = vst [vmem:[#allocation2 + $0xb0] sm:$0x1] %v175
    %226 = vst [vmem:[#allocation2 + $0xb8] sm:$0x1] %v177
    %v227 = vld [vmem:[#allocation2] sm:$0xff]
    %v228 = vld [vmem:[#allocation2 + $0x8] sm:$0xff]
    %v229 = vld [vmem:[#allocation2 + $0x10] sm:$0xff]
    %v230 = vld [vmem:[#allocation2 + $0x18] sm:$0xff]
    %v231 = vld [vmem:[#allocation2 + $0x20] sm:$0xff]
    %v232 = vld [vmem:[#allocation2 + $0x28] sm:$0xff]
    %v233 = vld [vmem:[#allocation2 + $0x30] sm:$0xff]
    %v234 = vld [vmem:[#allocation2 + $0x38] sm:$0xff]
    %v235 = vld [vmem:[#allocation2 + $0x60] sm:$0xff]
    %v236 = vld [vmem:[#allocation2 + $0x68] sm:$0xff]
    %v237 = vld [vmem:[#allocation2 + $0x70] sm:$0xff]
    %v238 = vld [vmem:[#allocation2 + $0x78] sm:$0xff]
    %v239 = vld [vmem:[#allocation2 + $0x80] sm:$0xff]
    %v240 = vld [vmem:[#allocation2 + $0x88] sm:$0xff]
    %v241 = vld [vmem:[#allocation2 + $0x90] sm:$0xff]
    %v242 = vld [vmem:[#allocation2 + $0x98] sm:$0xff]
    %v243 = vld [vmem:[#allocation6] sm:$0xff]
    %v244 = vld [vmem:[#allocation6 + $0x8] sm:$0xff]
    %v245 = vld [vmem:[#allocation6 + $0x10] sm:$0xff]
    %v246 = vld [vmem:[#allocation6 + $0x18] sm:$0xff]
    %v247 = vld [vmem:[#allocation6 + $0x20] sm:$0xff]
    %v248 = vld [vmem:[#allocation6 + $0x28] sm:$0xff]
    %v249 = vld [vmem:[#allocation6 + $0x30] sm:$0xff]
    %v250 = vld [vmem:[#allocation6 + $0x38] sm:$0xff]
    %v251 = vld [vmem:[#allocation6 + $0x40] sm:$0xff]
    %v252 = vld [vmem:[#allocation6 + $0x48] sm:$0xff]
    %v253 = vld [vmem:[#allocation6 + $0x50] sm:$0xff]
    %v254 = vld [vmem:[#allocation6 + $0x58] sm:$0xff]
    %v255 = vld [vmem:[#allocation6 + $0x60] sm:$0xff]
    %v256 = vld [vmem:[#allocation6 + $0x68] sm:$0xff]
    %v257 = vld [vmem:[#allocation6 + $0x70] sm:$0xff]
    %v258 = vld [vmem:[#allocation6 + $0x78] sm:$0xff]
    %v259 = vld [vmem:[#allocation6 + $0x80] sm:$0xff]
    %v260 = vld [vmem:[#allocation6 + $0x88] sm:$0xff]
    %v261 = vld [vmem:[#allocation6 + $0x90] sm:$0xff]
    %v262 = vld [vmem:[#allocation6 + $0x98] sm:$0xff]
    %v263 = vld [vmem:[#allocation6 + $0xa0] sm:$0xff]
    %v264 = vld [vmem:[#allocation6 + $0xa8] sm:$0xff]
    %v265 = vld [vmem:[#allocation6 + $0xb0] sm:$0xff]
    %v266 = vld [vmem:[#allocation6 + $0xb8] sm:$0xff]
    %v267 = vld [vmem:[#allocation6 + $0xc0] sm:$0xff]
    %v268 = vld [vmem:[#allocation6 + $0xc8] sm:$0xff]
    %v269 = vld [vmem:[#allocation6 + $0xd0] sm:$0xff]
    %v270 = vld [vmem:[#allocation6 + $0xd8] sm:$0xff]
    %v271 = vld [vmem:[#allocation6 + $0xe0] sm:$0xff]
    %v272 = vld [vmem:[#allocation6 + $0xe8] sm:$0xff]
    %v273 = vld [vmem:[#allocation6 + $0xf0] sm:$0xff]
    %v274 = vld [vmem:[#allocation6 + $0xf8] sm:$0xff]
    %v275 = vld [vmem:[#allocation6 + $0x100] sm:$0xff]
    %v276 = vld [vmem:[#allocation6 + $0x108] sm:$0xff]
    %v277 = vld [vmem:[#allocation6 + $0x110] sm:$0xff]
    %v278 = vld [vmem:[#allocation6 + $0x118] sm:$0xff]
    %v279 = vld [vmem:[#allocation6 + $0x120] sm:$0xff]
    %v280 = vld [vmem:[#allocation6 + $0x128] sm:$0xff]
    %v281 = vld [vmem:[#allocation6 + $0x130] sm:$0xff]
    %v282 = vld [vmem:[#allocation6 + $0x138] sm:$0xff]
    %v283 = vld [vmem:[#allocation6 + $0x140] sm:$0xff]
    %v284 = vld [vmem:[#allocation6 + $0x148] sm:$0xff]
    %v285 = vld [vmem:[#allocation6 + $0x150] sm:$0xff]
    %v286 = vld [vmem:[#allocation6 + $0x158] sm:$0xff]
    %v287 = vld [vmem:[#allocation6 + $0x160] sm:$0xff]
    %v288 = vld [vmem:[#allocation6 + $0x168] sm:$0xff]
    %v289 = vld [vmem:[#allocation6 + $0x170] sm:$0xff]
    %v290 = vld [vmem:[#allocation6 + $0x178] sm:$0xff]
    %v291 = vld [vmem:[#allocation6 + $0x180] sm:$0xff]
    %v292 = vld [vmem:[#allocation6 + $0x188] sm:$0xff]
    %v293 = vld [vmem:[#allocation6 + $0x190] sm:$0xff]
    %v294 = vld [vmem:[#allocation6 + $0x198] sm:$0xff]
    %v295 = vld [vmem:[#allocation6 + $0x1a0] sm:$0xff]
    %v296 = vld [vmem:[#allocation6 + $0x1a8] sm:$0xff]
    %v297 = vld [vmem:[#allocation6 + $0x1b0] sm:$0xff]
    %v298 = vld [vmem:[#allocation6 + $0x1b8] sm:$0xff]
    %v299 = vld [vmem:[#allocation6 + $0x1c0] sm:$0xff]
    %v300 = vld [vmem:[#allocation6 + $0x1c8] sm:$0xff]
    %v301 = vld [vmem:[#allocation6 + $0x1d0] sm:$0xff]
    %v302 = vld [vmem:[#allocation6 + $0x1d8] sm:$0xff]
    %v303 = vld [vmem:[#allocation6 + $0x1e0] sm:$0xff]
    %v304 = vld [vmem:[#allocation6 + $0x1e8] sm:$0xff]
    %v305 = vld [vmem:[#allocation6 + $0x1f0] sm:$0xff]
    %v306 = vld [vmem:[#allocation6 + $0x1f8] sm:$0xff]
    %v307 = vld [vmem:[#allocation6 + $0x200] sm:$0xff]
    %v308 = vld [vmem:[#allocation6 + $0x208] sm:$0xff]
    %v309 = vld [vmem:[#allocation6 + $0x210] sm:$0xff]
    %v310 = vld [vmem:[#allocation6 + $0x218] sm:$0xff]
    %v311 = vld [vmem:[#allocation6 + $0x220] sm:$0xff]
    %v312 = vld [vmem:[#allocation6 + $0x228] sm:$0xff]
    %v313 = vld [vmem:[#allocation6 + $0x230] sm:$0xff]
    %v314 = vld [vmem:[#allocation6 + $0x238] sm:$0xff]
    %v315 = vld [vmem:[#allocation6 + $0x240] sm:$0xff]
    %v316 = vld [vmem:[#allocation6 + $0x248] sm:$0xff]
    %v317 = vld [vmem:[#allocation6 + $0x250] sm:$0xff]
    %v318 = vld [vmem:[#allocation6 + $0x258] sm:$0xff]
    %v319 = vld [vmem:[#allocation6 + $0x260] sm:$0xff]
    %v320 = vld [vmem:[#allocation6 + $0x268] sm:$0xff]
    %v321 = vld [vmem:[#allocation6 + $0x270] sm:$0xff]
    %v322 = vld [vmem:[#allocation6 + $0x278] sm:$0xff]
    %v323 = vld [vmem:[#allocation6 + $0x280] sm:$0xff]
    %v324 = vld [vmem:[#allocation6 + $0x288] sm:$0xff]
    %v325 = vld [vmem:[#allocation6 + $0x290] sm:$0xff]
    %v326 = vld [vmem:[#allocation6 + $0x298] sm:$0xff]
    %v327 = vld [vmem:[#allocation6 + $0x2a0] sm:$0xff]
    %v328 = vld [vmem:[#allocation6 + $0x2a8] sm:$0xff]
    %v329 = vld [vmem:[#allocation6 + $0x2b0] sm:$0xff]
    %v330 = vld [vmem:[#allocation6 + $0x2b8] sm:$0xff]
    %v331 = vld [vmem:[#allocation6 + $0x2c0] sm:$0xff]
    %v332 = vld [vmem:[#allocation6 + $0x2c8] sm:$0xff]
    %v333 = vld [vmem:[#allocation6 + $0x2d0] sm:$0xff]
    %v334 = vld [vmem:[#allocation6 + $0x2d8] sm:$0xff]
    %v335 = vld [vmem:[#allocation6 + $0x2e0] sm:$0xff]
    %v336 = vld [vmem:[#allocation6 + $0x2e8] sm:$0xff]
    %v337 = vld [vmem:[#allocation6 + $0x2f0] sm:$0xff]
    %v338 = vld [vmem:[#allocation6 + $0x2f8] sm:$0xff]
    %v339 = vld [vmem:[#allocation6 + $0x300] sm:$0xff]
    %v340 = vld [vmem:[#allocation6 + $0x308] sm:$0xff]
    %v341 = vld [vmem:[#allocation6 + $0x310] sm:$0xff]
    %v342 = vld [vmem:[#allocation6 + $0x318] sm:$0xff]
    %v343 = vld [vmem:[#allocation6 + $0x320] sm:$0xff]
    %v344 = vld [vmem:[#allocation6 + $0x328] sm:$0xff]
    %v345 = vld [vmem:[#allocation6 + $0x330] sm:$0xff]
    %v346 = vld [vmem:[#allocation6 + $0x338] sm:$0xff]
    %v347 = vld [vmem:[#allocation6 + $0x340] sm:$0xff]
    %v348 = vld [vmem:[#allocation6 + $0x348] sm:$0xff]
    %v349 = vld [vmem:[#allocation6 + $0x350] sm:$0xff]
    %v350 = vld [vmem:[#allocation6 + $0x358] sm:$0xff]
    %v351 = vld [vmem:[#allocation6 + $0x360] sm:$0xff]
    %v352 = vld [vmem:[#allocation6 + $0x368] sm:$0xff]
    %v353 = vld [vmem:[#allocation6 + $0x370] sm:$0xff]
    %v354 = vld [vmem:[#allocation6 + $0x378] sm:$0xff]
    %v355 = vld [vmem:[#allocation6 + $0x380] sm:$0xff]
    %v356 = vld [vmem:[#allocation6 + $0x388] sm:$0xff]
    %v357 = vld [vmem:[#allocation6 + $0x390] sm:$0xff]
    %v358 = vld [vmem:[#allocation6 + $0x398] sm:$0xff]
    %v359 = vld [vmem:[#allocation6 + $0x3a0] sm:$0xff]
    %v360 = vld [vmem:[#allocation6 + $0x3a8] sm:$0xff]
    %v361 = vld [vmem:[#allocation6 + $0x3b0] sm:$0xff]
    %v362 = vld [vmem:[#allocation6 + $0x3b8] sm:$0xff]
    %v363 = vld [vmem:[#allocation6 + $0x3c0] sm:$0xff]
    %v364 = vld [vmem:[#allocation6 + $0x3c8] sm:$0xff]
    %v365 = vld [vmem:[#allocation6 + $0x3d0] sm:$0xff]
    %v366 = vld [vmem:[#allocation6 + $0x3d8] sm:$0xff]
    %v367 = vld [vmem:[#allocation6 + $0x3e0] sm:$0xff]
    %v368 = vld [vmem:[#allocation6 + $0x3e8] sm:$0xff]
    %v369 = vld [vmem:[#allocation6 + $0x3f0] sm:$0xff]
    %v370 = vld [vmem:[#allocation6 + $0x3f8] sm:$0xff]
    %v371 = vld [vmem:[#allocation6 + $0x400] sm:$0xff]
    %v372 = vld [vmem:[#allocation6 + $0x408] sm:$0xff]
    %v373 = vld [vmem:[#allocation6 + $0x410] sm:$0xff]
    %v374 = vld [vmem:[#allocation6 + $0x418] sm:$0xff]
    %v375 = vld [vmem:[#allocation6 + $0x420] sm:$0xff]
    %v376 = vld [vmem:[#allocation6 + $0x428] sm:$0xff]
    %v377 = vld [vmem:[#allocation6 + $0x430] sm:$0xff]
    %v378 = vld [vmem:[#allocation6 + $0x438] sm:$0xff]
    %v379 = vld [vmem:[#allocation6 + $0x440] sm:$0xff]
    %v380 = vld [vmem:[#allocation6 + $0x448] sm:$0xff]
    %v381 = vld [vmem:[#allocation6 + $0x450] sm:$0xff]
    %v382 = vld [vmem:[#allocation6 + $0x458] sm:$0xff]
    %v383 = vld [vmem:[#allocation6 + $0x460] sm:$0xff]
    %v384 = vld [vmem:[#allocation6 + $0x468] sm:$0xff]
    %v385 = vld [vmem:[#allocation6 + $0x470] sm:$0xff]
    %v386 = vld [vmem:[#allocation6 + $0x478] sm:$0xff]
    %v387 = vld [vmem:[#allocation6 + $0x480] sm:$0xff]
    %v388 = vld [vmem:[#allocation6 + $0x488] sm:$0xff]
    %v389 = vld [vmem:[#allocation6 + $0x490] sm:$0xff]
    %v390 = vld [vmem:[#allocation6 + $0x498] sm:$0xff]
    %v391 = vld [vmem:[#allocation6 + $0x4a0] sm:$0xff]
    %v392 = vld [vmem:[#allocation6 + $0x4a8] sm:$0xff]
    %v393 = vld [vmem:[#allocation6 + $0x4b0] sm:$0xff]
    %v394 = vld [vmem:[#allocation6 + $0x4b8] sm:$0xff]
    %v395 = vld [vmem:[#allocation6 + $0x4c0] sm:$0xff]
    %v396 = vld [vmem:[#allocation6 + $0x4c8] sm:$0xff]
    %v397 = vld [vmem:[#allocation6 + $0x4d0] sm:$0xff]
    %v398 = vld [vmem:[#allocation6 + $0x4d8] sm:$0xff]
    %v399 = vld [vmem:[#allocation6 + $0x4e0] sm:$0xff]
    %v400 = vld [vmem:[#allocation6 + $0x4e8] sm:$0xff]
    %v401 = vld [vmem:[#allocation6 + $0x4f0] sm:$0xff]
    %v402 = vld [vmem:[#allocation6 + $0x4f8] sm:$0xff]
    %v403 = vld [vmem:[#allocation6 + $0x500] sm:$0xff]
    %v404 = vld [vmem:[#allocation6 + $0x508] sm:$0xff]
    %v405 = vld [vmem:[#allocation6 + $0x510] sm:$0xff]
    %v406 = vld [vmem:[#allocation6 + $0x518] sm:$0xff]
    %v407 = vld [vmem:[#allocation6 + $0x520] sm:$0xff]
    %v408 = vld [vmem:[#allocation6 + $0x528] sm:$0xff]
    %v409 = vld [vmem:[#allocation6 + $0x530] sm:$0xff]
    %v410 = vld [vmem:[#allocation6 + $0x538] sm:$0xff]
    %v411 = vld [vmem:[#allocation6 + $0x540] sm:$0xff]
    %v412 = vld [vmem:[#allocation6 + $0x548] sm:$0xff]
    %v413 = vld [vmem:[#allocation6 + $0x550] sm:$0xff]
    %v414 = vld [vmem:[#allocation6 + $0x558] sm:$0xff]
    %v415 = vld [vmem:[#allocation6 + $0x560] sm:$0xff]
    %v416 = vld [vmem:[#allocation6 + $0x568] sm:$0xff]
    %v417 = vld [vmem:[#allocation6 + $0x570] sm:$0xff]
    %v418 = vld [vmem:[#allocation6 + $0x578] sm:$0xff]
    %v419 = vld [vmem:[#allocation6 + $0x580] sm:$0xff]
    %v420 = vld [vmem:[#allocation6 + $0x588] sm:$0xff]
    %v421 = vld [vmem:[#allocation6 + $0x590] sm:$0xff]
    %v422 = vld [vmem:[#allocation6 + $0x598] sm:$0xff]
    %v423 = vld [vmem:[#allocation6 + $0x5a0] sm:$0xff]
    %v424 = vld [vmem:[#allocation6 + $0x5a8] sm:$0xff]
    %v425 = vld [vmem:[#allocation6 + $0x5b0] sm:$0xff]
    %v426 = vld [vmem:[#allocation6 + $0x5b8] sm:$0xff]
    %v427 = vld [vmem:[#allocation6 + $0x5c0] sm:$0xff]
    %v428 = vld [vmem:[#allocation6 + $0x5c8] sm:$0xff]
    %v429 = vld [vmem:[#allocation6 + $0x5d0] sm:$0xff]
    %v430 = vld [vmem:[#allocation6 + $0x5d8] sm:$0xff]
    %v431 = vld [vmem:[#allocation6 + $0x5e0] sm:$0xff]
    %v432 = vld [vmem:[#allocation6 + $0x5e8] sm:$0xff]
    %v433 = vld [vmem:[#allocation6 + $0x5f0] sm:$0xff]
    %v434 = vld [vmem:[#allocation6 + $0x5f8] sm:$0xff]
    %v435 = vld [vmem:[#allocation6 + $0x600] sm:$0xff]
    %v436 = vld [vmem:[#allocation6 + $0x608] sm:$0xff]
    %v437 = vld [vmem:[#allocation6 + $0x610] sm:$0xff]
    %v438 = vld [vmem:[#allocation6 + $0x618] sm:$0xff]
    %v439 = vld [vmem:[#allocation6 + $0x620] sm:$0xff]
    %v440 = vld [vmem:[#allocation6 + $0x628] sm:$0xff]
    %v441 = vld [vmem:[#allocation6 + $0x630] sm:$0xff]
    %v442 = vld [vmem:[#allocation6 + $0x638] sm:$0xff]
    %v443 = vld [vmem:[#allocation6 + $0x640] sm:$0xff]
    %v444 = vld [vmem:[#allocation6 + $0x648] sm:$0xff]
    %v445 = vld [vmem:[#allocation6 + $0x650] sm:$0xff]
    %v446 = vld [vmem:[#allocation6 + $0x658] sm:$0xff]
    %v447 = vld [vmem:[#allocation6 + $0x660] sm:$0xff]
    %v448 = vld [vmem:[#allocation6 + $0x668] sm:$0xff]
    %v449 = vld [vmem:[#allocation6 + $0x670] sm:$0xff]
    %v450 = vld [vmem:[#allocation6 + $0x678] sm:$0xff]
    %v451 = vld [vmem:[#allocation6 + $0x680] sm:$0xff]
    %v452 = vld [vmem:[#allocation6 + $0x688] sm:$0xff]
    %v453 = vld [vmem:[#allocation6 + $0x690] sm:$0xff]
    %v454 = vld [vmem:[#allocation6 + $0x698] sm:$0xff]
    %v455 = vld [vmem:[#allocation6 + $0x6a0] sm:$0xff]
    %v456 = vld [vmem:[#allocation6 + $0x6a8] sm:$0xff]
    %v457 = vld [vmem:[#allocation6 + $0x6b0] sm:$0xff]
    %v458 = vld [vmem:[#allocation6 + $0x6b8] sm:$0xff]
    %v459 = vld [vmem:[#allocation6 + $0x6c0] sm:$0xff]
    %v460 = vld [vmem:[#allocation6 + $0x6c8] sm:$0xff]
    %v461 = vld [vmem:[#allocation6 + $0x6d0] sm:$0xff]
    %v462 = vld [vmem:[#allocation6 + $0x6d8] sm:$0xff]
    %v463 = vld [vmem:[#allocation6 + $0x6e0] sm:$0xff]
    %v464 = vld [vmem:[#allocation6 + $0x6e8] sm:$0xff]
    %v465 = vld [vmem:[#allocation6 + $0x6f0] sm:$0xff]
    %v466 = vld [vmem:[#allocation6 + $0x6f8] sm:$0xff]
    %v467 = vld [vmem:[#allocation6 + $0x700] sm:$0xff]
    %v468 = vld [vmem:[#allocation6 + $0x708] sm:$0xff]
    %v469 = vld [vmem:[#allocation6 + $0x710] sm:$0xff]
    %v470 = vld [vmem:[#allocation6 + $0x718] sm:$0xff]
    %v471 = vld [vmem:[#allocation6 + $0x720] sm:$0xff]
    %v472 = vld [vmem:[#allocation6 + $0x728] sm:$0xff]
    %v473 = vld [vmem:[#allocation6 + $0x730] sm:$0xff]
    %v474 = vld [vmem:[#allocation6 + $0x738] sm:$0xff]
    %v475 = vld [vmem:[#allocation6 + $0x740] sm:$0xff]
    %v476 = vld [vmem:[#allocation6 + $0x748] sm:$0xff]
    %v477 = vld [vmem:[#allocation6 + $0x750] sm:$0xff]
    %v478 = vld [vmem:[#allocation6 + $0x758] sm:$0xff]
    %v479 = vld [vmem:[#allocation6 + $0x760] sm:$0xff]
    %v480 = vld [vmem:[#allocation6 + $0x768] sm:$0xff]
    %v481 = vld [vmem:[#allocation6 + $0x770] sm:$0xff]
    %v482 = vld [vmem:[#allocation6 + $0x778] sm:$0xff]
    %v483 = vld [vmem:[#allocation6 + $0x780] sm:$0xff]
    %v484 = vld [vmem:[#allocation6 + $0x788] sm:$0xff]
    %v485 = vld [vmem:[#allocation6 + $0x790] sm:$0xff]
    %v486 = vld [vmem:[#allocation6 + $0x798] sm:$0xff]
    %v487 = vld [vmem:[#allocation6 + $0x7a0] sm:$0xff]
    %v488 = vld [vmem:[#allocation6 + $0x7a8] sm:$0xff]
    %v489 = vld [vmem:[#allocation6 + $0x7b0] sm:$0xff]
    %v490 = vld [vmem:[#allocation6 + $0x7b8] sm:$0xff]
    %v491 = vld [vmem:[#allocation6 + $0x7c0] sm:$0xff]
    %v492 = vld [vmem:[#allocation6 + $0x7c8] sm:$0xff]
    %v493 = vld [vmem:[#allocation6 + $0x7d0] sm:$0xff]
    %v494 = vld [vmem:[#allocation6 + $0x7d8] sm:$0xff]
    %v495 = vld [vmem:[#allocation6 + $0x7e0] sm:$0xff]
    %v496 = vld [vmem:[#allocation6 + $0x7e8] sm:$0xff]
    %v497 = vld [vmem:[#allocation6 + $0x7f0] sm:$0xff]
    %v498 = vld [vmem:[#allocation6 + $0x7f8] sm:$0xff]
    %v499 = vld [vmem:[#allocation2] sm:$0xfe]
    %v500 = vld [vmem:[#allocation2 + $0x8] sm:$0xfe]
    %v501 = vld [vmem:[#allocation2 + $0x10] sm:$0xfe]
    %v502 = vld [vmem:[#allocation2 + $0x18] sm:$0xfe]
    %v503 = vld [vmem:[#allocation2 + $0x40] sm:$0x1]
    %v504 = vld [vmem:[#allocation2 + $0x48] sm:$0x1]
    %v505 = vld [vmem:[#allocation2 + $0x50] sm:$0x1]
    %v506 = vld [vmem:[#allocation2 + $0x58] sm:$0x1]
    %v507 = vld [vmem:[#allocation2 + $0x60] sm:$0xfe]
    %v508 = vld [vmem:[#allocation2 + $0x68] sm:$0xfe]
    %v509 = vld [vmem:[#allocation2 + $0x70] sm:$0xfe]
    %v510 = vld [vmem:[#allocation2 + $0x78] sm:$0xfe]
    %v511 = vld [vmem:[#allocation2 + $0xa0] sm:$0x1]
    %v512 = vld [vmem:[#allocation2 + $0xa8] sm:$0x1]
    %v513 = vld [vmem:[#allocation2 + $0xb0] sm:$0x1]
    %v514 = vld [vmem:[#allocation2 + $0xb8] sm:$0x1]
    %vm539 = vcmask 1046528
    %v540 = vrot.slane %v499, 1
    %v541 = vrot.slane %v231, 1
    %v542 = vsel %vm539, %v540, %v541
    %v543 = vrot.slane %v500, 1
    %v544 = vrot.slane %v232, 1
    %v545 = vsel %vm539, %v543, %v544
    %v546 = vrot.slane %v501, 1
    %v547 = vrot.slane %v233, 1
    %v548 = vsel %vm539, %v546, %v547
    %v549 = vrot.slane %v502, 1
    %v550 = vrot.slane %v234, 1
    %v551 = vsel %vm539, %v549, %v550
    %v552 = vrot.slane %v503, 1
    %v553 = vsel %vm539, %v541, %v552
    %v554 = vrot.slane %v504, 1
    %v555 = vsel %vm539, %v544, %v554
    %v556 = vrot.slane %v505, 1
    %v557 = vsel %vm539, %v547, %v556
    %v558 = vrot.slane %v506, 1
    %v559 = vsel %vm539, %v550, %v558
    %v560 = vrot.slane %v507, 1
    %v561 = vrot.slane %v239, 1
    %v562 = vsel %vm539, %v560, %v561
    %v563 = vrot.slane %v508, 1
    %v564 = vrot.slane %v240, 1
    %v565 = vsel %vm539, %v563, %v564
    %v566 = vrot.slane %v509, 1
    %v567 = vrot.slane %v241, 1
    %v568 = vsel %vm539, %v566, %v567
    %v569 = vrot.slane %v510, 1
    %v570 = vrot.slane %v242, 1
    %v571 = vsel %vm539, %v569, %v570
    %v572 = vrot.slane %v511, 1
    %v573 = vsel %vm539, %v561, %v572
    %v574 = vrot.slane %v512, 1
    %v575 = vsel %vm539, %v564, %v574
    %v576 = vrot.slane %v513, 1
    %v577 = vsel %vm539, %v567, %v576
    %v578 = vrot.slane %v514, 1
    %v579 = vsel %vm539, %v570, %v578
    %s596 = scalar_lea.vmem [#allocation6], 2048
    %v597 = vld [vmem:[%s596] sm:$0xff]
    %v598 = vld [vmem:[%s596 + $0x8] sm:$0xff]
    %v599 = vld [vmem:[%s596 + $0x10] sm:$0xff]
    %v600 = vld [vmem:[%s596 + $0x18] sm:$0xff]
    %v601 = vld [vmem:[%s596 + $0x20] sm:$0xff]
    %v602 = vld [vmem:[%s596 + $0x28] sm:$0xff]
    %v603 = vld [vmem:[%s596 + $0x30] sm:$0xff]
    %v604 = vld [vmem:[%s596 + $0x38] sm:$0xff]
    %v605 = vld [vmem:[%s596 + $0x40] sm:$0xff]
    %v606 = vld [vmem:[%s596 + $0x48] sm:$0xff]
    %v607 = vld [vmem:[%s596 + $0x50] sm:$0xff]
    %v608 = vld [vmem:[%s596 + $0x58] sm:$0xff]
    %v609 = vld [vmem:[%s596 + $0x60] sm:$0xff]
    %v610 = vld [vmem:[%s596 + $0x68] sm:$0xff]
    %v611 = vld [vmem:[%s596 + $0x70] sm:$0xff]
    %v612 = vld [vmem:[%s596 + $0x78] sm:$0xff]
    %v613 = vld [vmem:[%s596 + $0x80] sm:$0xff]
    %v614 = vld [vmem:[%s596 + $0x88] sm:$0xff]
    %v615 = vld [vmem:[%s596 + $0x90] sm:$0xff]
    %v616 = vld [vmem:[%s596 + $0x98] sm:$0xff]
    %v617 = vld [vmem:[%s596 + $0xa0] sm:$0xff]
    %v618 = vld [vmem:[%s596 + $0xa8] sm:$0xff]
    %v619 = vld [vmem:[%s596 + $0xb0] sm:$0xff]
    %v620 = vld [vmem:[%s596 + $0xb8] sm:$0xff]
    %v621 = vld [vmem:[%s596 + $0xc0] sm:$0xff]
    %v622 = vld [vmem:[%s596 + $0xc8] sm:$0xff]
    %v623 = vld [vmem:[%s596 + $0xd0] sm:$0xff]
    %v624 = vld [vmem:[%s596 + $0xd8] sm:$0xff]
    %v625 = vld [vmem:[%s596 + $0xe0] sm:$0xff]
    %v626 = vld [vmem:[%s596 + $0xe8] sm:$0xff]
    %v627 = vld [vmem:[%s596 + $0xf0] sm:$0xff]
    %v628 = vld [vmem:[%s596 + $0xf8] sm:$0xff]
    %v629 = vld [vmem:[%s596 + $0x100] sm:$0xff]
    %v630 = vld [vmem:[%s596 + $0x108] sm:$0xff]
    %v631 = vld [vmem:[%s596 + $0x110] sm:$0xff]
    %v632 = vld [vmem:[%s596 + $0x118] sm:$0xff]
    %v633 = vld [vmem:[%s596 + $0x120] sm:$0xff]
    %v634 = vld [vmem:[%s596 + $0x128] sm:$0xff]
    %v635 = vld [vmem:[%s596 + $0x130] sm:$0xff]
    %v636 = vld [vmem:[%s596 + $0x138] sm:$0xff]
    %v637 = vld [vmem:[%s596 + $0x140] sm:$0xff]
    %v638 = vld [vmem:[%s596 + $0x148] sm:$0xff]
    %v639 = vld [vmem:[%s596 + $0x150] sm:$0xff]
    %v640 = vld [vmem:[%s596 + $0x158] sm:$0xff]
    %v641 = vld [vmem:[%s596 + $0x160] sm:$0xff]
    %v642 = vld [vmem:[%s596 + $0x168] sm:$0xff]
    %v643 = vld [vmem:[%s596 + $0x170] sm:$0xff]
    %v644 = vld [vmem:[%s596 + $0x178] sm:$0xff]
    %v645 = vld [vmem:[%s596 + $0x180] sm:$0xff]
    %v646 = vld [vmem:[%s596 + $0x188] sm:$0xff]
    %v647 = vld [vmem:[%s596 + $0x190] sm:$0xff]
    %v648 = vld [vmem:[%s596 + $0x198] sm:$0xff]
    %v649 = vld [vmem:[%s596 + $0x1a0] sm:$0xff]
    %v650 = vld [vmem:[%s596 + $0x1a8] sm:$0xff]
    %v651 = vld [vmem:[%s596 + $0x1b0] sm:$0xff]
    %v652 = vld [vmem:[%s596 + $0x1b8] sm:$0xff]
    %v653 = vld [vmem:[%s596 + $0x1c0] sm:$0xff]
    %v654 = vld [vmem:[%s596 + $0x1c8] sm:$0xff]
    %v655 = vld [vmem:[%s596 + $0x1d0] sm:$0xff]
    %v656 = vld [vmem:[%s596 + $0x1d8] sm:$0xff]
    %v657 = vld [vmem:[%s596 + $0x1e0] sm:$0xff]
    %v658 = vld [vmem:[%s596 + $0x1e8] sm:$0xff]
    %v659 = vld [vmem:[%s596 + $0x1f0] sm:$0xff]
    %v660 = vld [vmem:[%s596 + $0x1f8] sm:$0xff]
    %v661 = vld [vmem:[%s596 + $0x200] sm:$0xff]
    %v662 = vld [vmem:[%s596 + $0x208] sm:$0xff]
    %v663 = vld [vmem:[%s596 + $0x210] sm:$0xff]
    %v664 = vld [vmem:[%s596 + $0x218] sm:$0xff]
    %v665 = vld [vmem:[%s596 + $0x220] sm:$0xff]
    %v666 = vld [vmem:[%s596 + $0x228] sm:$0xff]
    %v667 = vld [vmem:[%s596 + $0x230] sm:$0xff]
    %v668 = vld [vmem:[%s596 + $0x238] sm:$0xff]
    %v669 = vld [vmem:[%s596 + $0x240] sm:$0xff]
    %v670 = vld [vmem:[%s596 + $0x248] sm:$0xff]
    %v671 = vld [vmem:[%s596 + $0x250] sm:$0xff]
    %v672 = vld [vmem:[%s596 + $0x258] sm:$0xff]
    %v673 = vld [vmem:[%s596 + $0x260] sm:$0xff]
    %v674 = vld [vmem:[%s596 + $0x268] sm:$0xff]
    %v675 = vld [vmem:[%s596 + $0x270] sm:$0xff]
    %v676 = vld [vmem:[%s596 + $0x278] sm:$0xff]
    %v677 = vld [vmem:[%s596 + $0x280] sm:$0xff]
    %v678 = vld [vmem:[%s596 + $0x288] sm:$0xff]
    %v679 = vld [vmem:[%s596 + $0x290] sm:$0xff]
    %v680 = vld [vmem:[%s596 + $0x298] sm:$0xff]
    %v681 = vld [vmem:[%s596 + $0x2a0] sm:$0xff]
    %v682 = vld [vmem:[%s596 + $0x2a8] sm:$0xff]
    %v683 = vld [vmem:[%s596 + $0x2b0] sm:$0xff]
    %v684 = vld [vmem:[%s596 + $0x2b8] sm:$0xff]
    %v685 = vld [vmem:[%s596 + $0x2c0] sm:$0xff]
    %v686 = vld [vmem:[%s596 + $0x2c8] sm:$0xff]
    %v687 = vld [vmem:[%s596 + $0x2d0] sm:$0xff]
    %v688 = vld [vmem:[%s596 + $0x2d8] sm:$0xff]
    %v689 = vld [vmem:[%s596 + $0x2e0] sm:$0xff]
    %v690 = vld [vmem:[%s596 + $0x2e8] sm:$0xff]
    %v691 = vld [vmem:[%s596 + $0x2f0] sm:$0xff]
    %v692 = vld [vmem:[%s596 + $0x2f8] sm:$0xff]
    %v693 = vld [vmem:[%s596 + $0x300] sm:$0xff]
    %v694 = vld [vmem:[%s596 + $0x308] sm:$0xff]
    %v695 = vld [vmem:[%s596 + $0x310] sm:$0xff]
    %v696 = vld [vmem:[%s596 + $0x318] sm:$0xff]
    %v697 = vld [vmem:[%s596 + $0x320] sm:$0xff]
    %v698 = vld [vmem:[%s596 + $0x328] sm:$0xff]
    %v699 = vld [vmem:[%s596 + $0x330] sm:$0xff]
    %v700 = vld [vmem:[%s596 + $0x338] sm:$0xff]
    %v701 = vld [vmem:[%s596 + $0x340] sm:$0xff]
    %v702 = vld [vmem:[%s596 + $0x348] sm:$0xff]
    %v703 = vld [vmem:[%s596 + $0x350] sm:$0xff]
    %v704 = vld [vmem:[%s596 + $0x358] sm:$0xff]
    %v705 = vld [vmem:[%s596 + $0x360] sm:$0xff]
    %v706 = vld [vmem:[%s596 + $0x368] sm:$0xff]
    %v707 = vld [vmem:[%s596 + $0x370] sm:$0xff]
    %v708 = vld [vmem:[%s596 + $0x378] sm:$0xff]
    %v709 = vld [vmem:[%s596 + $0x380] sm:$0xff]
    %v710 = vld [vmem:[%s596 + $0x388] sm:$0xff]
    %v711 = vld [vmem:[%s596 + $0x390] sm:$0xff]
    %v712 = vld [vmem:[%s596 + $0x398] sm:$0xff]
    %v713 = vld [vmem:[%s596 + $0x3a0] sm:$0xff]
    %v714 = vld [vmem:[%s596 + $0x3a8] sm:$0xff]
    %v715 = vld [vmem:[%s596 + $0x3b0] sm:$0xff]
    %v716 = vld [vmem:[%s596 + $0x3b8] sm:$0xff]
    %v717 = vld [vmem:[%s596 + $0x3c0] sm:$0xff]
    %v718 = vld [vmem:[%s596 + $0x3c8] sm:$0xff]
    %v719 = vld [vmem:[%s596 + $0x3d0] sm:$0xff]
    %v720 = vld [vmem:[%s596 + $0x3d8] sm:$0xff]
    %v721 = vld [vmem:[%s596 + $0x3e0] sm:$0xff]
    %v722 = vld [vmem:[%s596 + $0x3e8] sm:$0xff]
    %v723 = vld [vmem:[%s596 + $0x3f0] sm:$0xff]
    %v724 = vld [vmem:[%s596 + $0x3f8] sm:$0xff]
    %v725 = vld [vmem:[%s596 + $0x400] sm:$0xff]
    %v726 = vld [vmem:[%s596 + $0x408] sm:$0xff]
    %v727 = vld [vmem:[%s596 + $0x410] sm:$0xff]
    %v728 = vld [vmem:[%s596 + $0x418] sm:$0xff]
    %v729 = vld [vmem:[%s596 + $0x420] sm:$0xff]
    %v730 = vld [vmem:[%s596 + $0x428] sm:$0xff]
    %v731 = vld [vmem:[%s596 + $0x430] sm:$0xff]
    %v732 = vld [vmem:[%s596 + $0x438] sm:$0xff]
    %v733 = vld [vmem:[%s596 + $0x440] sm:$0xff]
    %v734 = vld [vmem:[%s596 + $0x448] sm:$0xff]
    %v735 = vld [vmem:[%s596 + $0x450] sm:$0xff]
    %v736 = vld [vmem:[%s596 + $0x458] sm:$0xff]
    %v737 = vld [vmem:[%s596 + $0x460] sm:$0xff]
    %v738 = vld [vmem:[%s596 + $0x468] sm:$0xff]
    %v739 = vld [vmem:[%s596 + $0x470] sm:$0xff]
    %v740 = vld [vmem:[%s596 + $0x478] sm:$0xff]
    %v741 = vld [vmem:[%s596 + $0x480] sm:$0xff]
    %v742 = vld [vmem:[%s596 + $0x488] sm:$0xff]
    %v743 = vld [vmem:[%s596 + $0x490] sm:$0xff]
    %v744 = vld [vmem:[%s596 + $0x498] sm:$0xff]
    %v745 = vld [vmem:[%s596 + $0x4a0] sm:$0xff]
    %v746 = vld [vmem:[%s596 + $0x4a8] sm:$0xff]
    %v747 = vld [vmem:[%s596 + $0x4b0] sm:$0xff]
    %v748 = vld [vmem:[%s596 + $0x4b8] sm:$0xff]
    %v749 = vld [vmem:[%s596 + $0x4c0] sm:$0xff]
    %v750 = vld [vmem:[%s596 + $0x4c8] sm:$0xff]
    %v751 = vld [vmem:[%s596 + $0x4d0] sm:$0xff]
    %v752 = vld [vmem:[%s596 + $0x4d8] sm:$0xff]
    %v753 = vld [vmem:[%s596 + $0x4e0] sm:$0xff]
    %v754 = vld [vmem:[%s596 + $0x4e8] sm:$0xff]
    %v755 = vld [vmem:[%s596 + $0x4f0] sm:$0xff]
    %v756 = vld [vmem:[%s596 + $0x4f8] sm:$0xff]
    %v757 = vld [vmem:[%s596 + $0x500] sm:$0xff]
    %v758 = vld [vmem:[%s596 + $0x508] sm:$0xff]
    %v759 = vld [vmem:[%s596 + $0x510] sm:$0xff]
    %v760 = vld [vmem:[%s596 + $0x518] sm:$0xff]
    %v761 = vld [vmem:[%s596 + $0x520] sm:$0xff]
    %v762 = vld [vmem:[%s596 + $0x528] sm:$0xff]
    %v763 = vld [vmem:[%s596 + $0x530] sm:$0xff]
    %v764 = vld [vmem:[%s596 + $0x538] sm:$0xff]
    %v765 = vld [vmem:[%s596 + $0x540] sm:$0xff]
    %v766 = vld [vmem:[%s596 + $0x548] sm:$0xff]
    %v767 = vld [vmem:[%s596 + $0x550] sm:$0xff]
    %v768 = vld [vmem:[%s596 + $0x558] sm:$0xff]
    %v769 = vld [vmem:[%s596 + $0x560] sm:$0xff]
    %v770 = vld [vmem:[%s596 + $0x568] sm:$0xff]
    %v771 = vld [vmem:[%s596 + $0x570] sm:$0xff]
    %v772 = vld [vmem:[%s596 + $0x578] sm:$0xff]
    %v773 = vld [vmem:[%s596 + $0x580] sm:$0xff]
    %v774 = vld [vmem:[%s596 + $0x588] sm:$0xff]
    %v775 = vld [vmem:[%s596 + $0x590] sm:$0xff]
    %v776 = vld [vmem:[%s596 + $0x598] sm:$0xff]
    %v777 = vld [vmem:[%s596 + $0x5a0] sm:$0xff]
    %v778 = vld [vmem:[%s596 + $0x5a8] sm:$0xff]
    %v779 = vld [vmem:[%s596 + $0x5b0] sm:$0xff]
    %v780 = vld [vmem:[%s596 + $0x5b8] sm:$0xff]
    %v781 = vld [vmem:[%s596 + $0x5c0] sm:$0xff]
    %v782 = vld [vmem:[%s596 + $0x5c8] sm:$0xff]
    %v783 = vld [vmem:[%s596 + $0x5d0] sm:$0xff]
    %v784 = vld [vmem:[%s596 + $0x5d8] sm:$0xff]
    %v785 = vld [vmem:[%s596 + $0x5e0] sm:$0xff]
    %v786 = vld [vmem:[%s596 + $0x5e8] sm:$0xff]
    %v787 = vld [vmem:[%s596 + $0x5f0] sm:$0xff]
    %v788 = vld [vmem:[%s596 + $0x5f8] sm:$0xff]
    %v789 = vld [vmem:[%s596 + $0x600] sm:$0xff]
    %v790 = vld [vmem:[%s596 + $0x608] sm:$0xff]
    %v791 = vld [vmem:[%s596 + $0x610] sm:$0xff]
    %v792 = vld [vmem:[%s596 + $0x618] sm:$0xff]
    %v793 = vld [vmem:[%s596 + $0x620] sm:$0xff]
    %v794 = vld [vmem:[%s596 + $0x628] sm:$0xff]
    %v795 = vld [vmem:[%s596 + $0x630] sm:$0xff]
    %v796 = vld [vmem:[%s596 + $0x638] sm:$0xff]
    %v797 = vld [vmem:[%s596 + $0x640] sm:$0xff]
    %v798 = vld [vmem:[%s596 + $0x648] sm:$0xff]
    %v799 = vld [vmem:[%s596 + $0x650] sm:$0xff]
    %v800 = vld [vmem:[%s596 + $0x658] sm:$0xff]
    %v801 = vld [vmem:[%s596 + $0x660] sm:$0xff]
    %v802 = vld [vmem:[%s596 + $0x668] sm:$0xff]
    %v803 = vld [vmem:[%s596 + $0x670] sm:$0xff]
    %v804 = vld [vmem:[%s596 + $0x678] sm:$0xff]
    %v805 = vld [vmem:[%s596 + $0x680] sm:$0xff]
    %v806 = vld [vmem:[%s596 + $0x688] sm:$0xff]
    %v807 = vld [vmem:[%s596 + $0x690] sm:$0xff]
    %v808 = vld [vmem:[%s596 + $0x698] sm:$0xff]
    %v809 = vld [vmem:[%s596 + $0x6a0] sm:$0xff]
    %v810 = vld [vmem:[%s596 + $0x6a8] sm:$0xff]
    %v811 = vld [vmem:[%s596 + $0x6b0] sm:$0xff]
    %v812 = vld [vmem:[%s596 + $0x6b8] sm:$0xff]
    %v813 = vld [vmem:[%s596 + $0x6c0] sm:$0xff]
    %v814 = vld [vmem:[%s596 + $0x6c8] sm:$0xff]
    %v815 = vld [vmem:[%s596 + $0x6d0] sm:$0xff]
    %v816 = vld [vmem:[%s596 + $0x6d8] sm:$0xff]
    %v817 = vld [vmem:[%s596 + $0x6e0] sm:$0xff]
    %v818 = vld [vmem:[%s596 + $0x6e8] sm:$0xff]
    %v819 = vld [vmem:[%s596 + $0x6f0] sm:$0xff]
    %v820 = vld [vmem:[%s596 + $0x6f8] sm:$0xff]
    %v821 = vld [vmem:[%s596 + $0x700] sm:$0xff]
    %v822 = vld [vmem:[%s596 + $0x708] sm:$0xff]
    %v823 = vld [vmem:[%s596 + $0x710] sm:$0xff]
    %v824 = vld [vmem:[%s596 + $0x718] sm:$0xff]
    %v825 = vld [vmem:[%s596 + $0x720] sm:$0xff]
    %v826 = vld [vmem:[%s596 + $0x728] sm:$0xff]
    %v827 = vld [vmem:[%s596 + $0x730] sm:$0xff]
    %v828 = vld [vmem:[%s596 + $0x738] sm:$0xff]
    %v829 = vld [vmem:[%s596 + $0x740] sm:$0xff]
    %v830 = vld [vmem:[%s596 + $0x748] sm:$0xff]
    %v831 = vld [vmem:[%s596 + $0x750] sm:$0xff]
    %v832 = vld [vmem:[%s596 + $0x758] sm:$0xff]
    %v833 = vld [vmem:[%s596 + $0x760] sm:$0xff]
    %v834 = vld [vmem:[%s596 + $0x768] sm:$0xff]
    %v835 = vld [vmem:[%s596 + $0x770] sm:$0xff]
    %v836 = vld [vmem:[%s596 + $0x778] sm:$0xff]
    %v837 = vld [vmem:[%s596 + $0x780] sm:$0xff]
    %v838 = vld [vmem:[%s596 + $0x788] sm:$0xff]
    %v839 = vld [vmem:[%s596 + $0x790] sm:$0xff]
    %v840 = vld [vmem:[%s596 + $0x798] sm:$0xff]
    %v841 = vld [vmem:[%s596 + $0x7a0] sm:$0xff]
    %v842 = vld [vmem:[%s596 + $0x7a8] sm:$0xff]
    %v843 = vld [vmem:[%s596 + $0x7b0] sm:$0xff]
    %v844 = vld [vmem:[%s596 + $0x7b8] sm:$0xff]
    %v845 = vld [vmem:[%s596 + $0x7c0] sm:$0xff]
    %v846 = vld [vmem:[%s596 + $0x7c8] sm:$0xff]
    %v847 = vld [vmem:[%s596 + $0x7d0] sm:$0xff]
    %v848 = vld [vmem:[%s596 + $0x7d8] sm:$0xff]
    %v849 = vld [vmem:[%s596 + $0x7e0] sm:$0xff]
    %v850 = vld [vmem:[%s596 + $0x7e8] sm:$0xff]
    %v851 = vld [vmem:[%s596 + $0x7f0] sm:$0xff]
    %v852 = vld [vmem:[%s596 + $0x7f8] sm:$0xff]
    %853 = vmatpush.msra.mxu0 %v657
    %854 = vmatpush.msra.mxu0 %v653
    %855 = vmatpush.msra.mxu0 %v649
    %856 = vmatpush.msra.mxu0 %v645
    %857 = vmatpush.msra.mxu0 %v641
    %858 = vmatpush.msra.mxu0 %v637
    %859 = vmatpush.msra.mxu0 %v633
    %860 = vmatpush.msra.mxu0 %v629
    %861 = vmatpush.msra.mxu0 %v625
    %862 = vmatpush.msra.mxu0 %v621
    %863 = vmatpush.msra.mxu0 %v617
    %864 = vmatpush.msra.mxu0 %v613
    %865 = vmatpush.msra.mxu0 %v609
    %866 = vmatpush.msra.mxu0 %v605
    %867 = vmatpush.msra.mxu0 %v601
    %868 = vmatpush.msra.mxu0 %v597
    %869 = vmatmul.f32.gmra.mxu0 %v542
    %v870 = vpop.f32.mrf.mxu0
    %v871 = vadd.f32 0.0, %v870
    %872 = vmatmul.f32.gmra.mxu0 %v553
    %v873 = vpop.f32.mrf.mxu0
    %v874 = vadd.f32 0.0, %v873
    %875 = vmatmul.f32.gmra.mxu0 %v562
    %v876 = vpop.f32.mrf.mxu0
    %v877 = vadd.f32 0.0, %v876
    %878 = vmatmul.f32.gmra.mxu0 %v573
    %v879 = vpop.f32.mrf.mxu0
    %v880 = vadd.f32 0.0, %v879
    %881 = vdwg.mxu0
    %882 = vmatpush.msra.mxu0 %v721
    %883 = vmatpush.msra.mxu0 %v717
    %884 = vmatpush.msra.mxu0 %v713
    %885 = vmatpush.msra.mxu0 %v709
    %886 = vmatpush.msra.mxu0 %v705
    %887 = vmatpush.msra.mxu0 %v701
    %888 = vmatpush.msra.mxu0 %v697
    %889 = vmatpush.msra.mxu0 %v693
    %890 = vmatpush.msra.mxu0 %v689
    %891 = vmatpush.msra.mxu0 %v685
    %892 = vmatpush.msra.mxu0 %v681
    %893 = vmatpush.msra.mxu0 %v677
    %894 = vmatpush.msra.mxu0 %v673
    %895 = vmatpush.msra.mxu0 %v669
    %896 = vmatpush.msra.mxu0 %v665
    %897 = vmatpush.msra.mxu0 %v661
    %898 = vmatmul.f32.gmra.mxu0 %v545
    %v899 = vpop.f32.mrf.mxu0
    %v900 = vadd.f32 %v871, %v899
    %901 = vmatmul.f32.gmra.mxu0 %v555
    %v902 = vpop.f32.mrf.mxu0
    %v903 = vadd.f32 %v874, %v902
    %904 = vmatmul.f32.gmra.mxu0 %v565
    %v905 = vpop.f32.mrf.mxu0
    %v906 = vadd.f32 %v877, %v905
    %907 = vmatmul.f32.gmra.mxu0 %v575
    %v908 = vpop.f32.mrf.mxu0
    %v909 = vadd.f32 %v880, %v908
    %910 = vdwg.mxu0
    %911 = vmatpush.msra.mxu0 %v785
    %912 = vmatpush.msra.mxu0 %v781
    %913 = vmatpush.msra.mxu0 %v777
    %914 = vmatpush.msra.mxu0 %v773
    %915 = vmatpush.msra.mxu0 %v769
    %916 = vmatpush.msra.mxu0 %v765
    %917 = vmatpush.msra.mxu0 %v761
    %918 = vmatpush.msra.mxu0 %v757
    %919 = vmatpush.msra.mxu0 %v753
    %920 = vmatpush.msra.mxu0 %v749
    %921 = vmatpush.msra.mxu0 %v745
    %922 = vmatpush.msra.mxu0 %v741
    %923 = vmatpush.msra.mxu0 %v737
    %924 = vmatpush.msra.mxu0 %v733
    %925 = vmatpush.msra.mxu0 %v729
    %926 = vmatpush.msra.mxu0 %v725
    %927 = vmatmul.f32.gmra.mxu0 %v548
    %v928 = vpop.f32.mrf.mxu0
    %v929 = vadd.f32 %v900, %v928
    %930 = vmatmul.f32.gmra.mxu0 %v557
    %v931 = vpop.f32.mrf.mxu0
    %v932 = vadd.f32 %v903, %v931
    %933 = vmatmul.f32.gmra.mxu0 %v568
    %v934 = vpop.f32.mrf.mxu0
    %v935 = vadd.f32 %v906, %v934
    %936 = vmatmul.f32.gmra.mxu0 %v577
    %v937 = vpop.f32.mrf.mxu0
    %v938 = vadd.f32 %v909, %v937
    %939 = vdwg.mxu0
    %940 = vmatpush.msra.mxu0 %v849
    %941 = vmatpush.msra.mxu0 %v845
    %942 = vmatpush.msra.mxu0 %v841
    %943 = vmatpush.msra.mxu0 %v837
    %944 = vmatpush.msra.mxu0 %v833
    %945 = vmatpush.msra.mxu0 %v829
    %946 = vmatpush.msra.mxu0 %v825
    %947 = vmatpush.msra.mxu0 %v821
    %948 = vmatpush.msra.mxu0 %v817
    %949 = vmatpush.msra.mxu0 %v813
    %950 = vmatpush.msra.mxu0 %v809
    %951 = vmatpush.msra.mxu0 %v805
    %952 = vmatpush.msra.mxu0 %v801
    %953 = vmatpush.msra.mxu0 %v797
    %954 = vmatpush.msra.mxu0 %v793
    %955 = vmatpush.msra.mxu0 %v789
    %956 = vmatmul.f32.gmra.mxu0 %v551
    %v957 = vpop.f32.mrf.mxu0
    %v958 = vadd.f32 %v929, %v957
    %959 = vmatmul.f32.gmra.mxu0 %v559
    %v960 = vpop.f32.mrf.mxu0
    %v961 = vadd.f32 %v932, %v960
    %962 = vmatmul.f32.gmra.mxu0 %v571
    %v963 = vpop.f32.mrf.mxu0
    %v964 = vadd.f32 %v935, %v963
    %965 = vmatmul.f32.gmra.mxu0 %v579
    %v966 = vpop.f32.mrf.mxu0
    %v967 = vadd.f32 %v938, %v966
    %968 = vdwg.mxu0
    %969 = vmatpush.msra.mxu0 %v658
    %970 = vmatpush.msra.mxu0 %v654
    %971 = vmatpush.msra.mxu0 %v650
    %972 = vmatpush.msra.mxu0 %v646
    %973 = vmatpush.msra.mxu0 %v642
    %974 = vmatpush.msra.mxu0 %v638
    %975 = vmatpush.msra.mxu0 %v634
    %976 = vmatpush.msra.mxu0 %v630
    %977 = vmatpush.msra.mxu0 %v626
    %978 = vmatpush.msra.mxu0 %v622
    %979 = vmatpush.msra.mxu0 %v618
    %980 = vmatpush.msra.mxu0 %v614
    %981 = vmatpush.msra.mxu0 %v610
    %982 = vmatpush.msra.mxu0 %v606
    %983 = vmatpush.msra.mxu0 %v602
    %984 = vmatpush.msra.mxu0 %v598
    %985 = vmatmul.f32.gmra.mxu0 %v542
    %v986 = vpop.f32.mrf.mxu0
    %v987 = vadd.f32 0.0, %v986
    %988 = vmatmul.f32.gmra.mxu0 %v553
    %v989 = vpop.f32.mrf.mxu0
    %v990 = vadd.f32 0.0, %v989
    %991 = vmatmul.f32.gmra.mxu0 %v562
    %v992 = vpop.f32.mrf.mxu0
    %v993 = vadd.f32 0.0, %v992
    %994 = vmatmul.f32.gmra.mxu0 %v573
    %v995 = vpop.f32.mrf.mxu0
    %v996 = vadd.f32 0.0, %v995
    %997 = vdwg.mxu0
    %998 = vmatpush.msra.mxu0 %v722
    %999 = vmatpush.msra.mxu0 %v718
    %1000 = vmatpush.msra.mxu0 %v714
    %1001 = vmatpush.msra.mxu0 %v710
    %1002 = vmatpush.msra.mxu0 %v706
    %1003 = vmatpush.msra.mxu0 %v702
    %1004 = vmatpush.msra.mxu0 %v698
    %1005 = vmatpush.msra.mxu0 %v694
    %1006 = vmatpush.msra.mxu0 %v690
    %1007 = vmatpush.msra.mxu0 %v686
    %1008 = vmatpush.msra.mxu0 %v682
    %1009 = vmatpush.msra.mxu0 %v678
    %1010 = vmatpush.msra.mxu0 %v674
    %1011 = vmatpush.msra.mxu0 %v670
    %1012 = vmatpush.msra.mxu0 %v666
    %1013 = vmatpush.msra.mxu0 %v662
    %1014 = vmatmul.f32.gmra.mxu0 %v545
    %v1015 = vpop.f32.mrf.mxu0
    %v1016 = vadd.f32 %v987, %v1015
    %1017 = vmatmul.f32.gmra.mxu0 %v555
    %v1018 = vpop.f32.mrf.mxu0
    %v1019 = vadd.f32 %v990, %v1018
    %1020 = vmatmul.f32.gmra.mxu0 %v565
    %v1021 = vpop.f32.mrf.mxu0
    %v1022 = vadd.f32 %v993, %v1021
    %1023 = vmatmul.f32.gmra.mxu0 %v575
    %v1024 = vpop.f32.mrf.mxu0
    %v1025 = vadd.f32 %v996, %v1024
    %1026 = vdwg.mxu0
    %1027 = vmatpush.msra.mxu0 %v786
    %1028 = vmatpush.msra.mxu0 %v782
    %1029 = vmatpush.msra.mxu0 %v778
    %1030 = vmatpush.msra.mxu0 %v774
    %1031 = vmatpush.msra.mxu0 %v770
    %1032 = vmatpush.msra.mxu0 %v766
    %1033 = vmatpush.msra.mxu0 %v762
    %1034 = vmatpush.msra.mxu0 %v758
    %1035 = vmatpush.msra.mxu0 %v754
    %1036 = vmatpush.msra.mxu0 %v750
    %1037 = vmatpush.msra.mxu0 %v746
    %1038 = vmatpush.msra.mxu0 %v742
    %1039 = vmatpush.msra.mxu0 %v738
    %1040 = vmatpush.msra.mxu0 %v734
    %1041 = vmatpush.msra.mxu0 %v730
    %1042 = vmatpush.msra.mxu0 %v726
    %1043 = vmatmul.f32.gmra.mxu0 %v548
    %v1044 = vpop.f32.mrf.mxu0
    %v1045 = vadd.f32 %v1016, %v1044
    %1046 = vmatmul.f32.gmra.mxu0 %v557
    %v1047 = vpop.f32.mrf.mxu0
    %v1048 = vadd.f32 %v1019, %v1047
    %1049 = vmatmul.f32.gmra.mxu0 %v568
    %v1050 = vpop.f32.mrf.mxu0
    %v1051 = vadd.f32 %v1022, %v1050
    %1052 = vmatmul.f32.gmra.mxu0 %v577
    %v1053 = vpop.f32.mrf.mxu0
    %v1054 = vadd.f32 %v1025, %v1053
    %1055 = vdwg.mxu0
    %1056 = vmatpush.msra.mxu0 %v850
    %1057 = vmatpush.msra.mxu0 %v846
    %1058 = vmatpush.msra.mxu0 %v842
    %1059 = vmatpush.msra.mxu0 %v838
    %1060 = vmatpush.msra.mxu0 %v834
    %1061 = vmatpush.msra.mxu0 %v830
    %1062 = vmatpush.msra.mxu0 %v826
    %1063 = vmatpush.msra.mxu0 %v822
    %1064 = vmatpush.msra.mxu0 %v818
    %1065 = vmatpush.msra.mxu0 %v814
    %1066 = vmatpush.msra.mxu0 %v810
    %1067 = vmatpush.msra.mxu0 %v806
    %1068 = vmatpush.msra.mxu0 %v802
    %1069 = vmatpush.msra.mxu0 %v798
    %1070 = vmatpush.msra.mxu0 %v794
    %1071 = vmatpush.msra.mxu0 %v790
    %1072 = vmatmul.f32.gmra.mxu0 %v551
    %v1073 = vpop.f32.mrf.mxu0
    %v1074 = vadd.f32 %v1045, %v1073
    %1075 = vmatmul.f32.gmra.mxu0 %v559
    %v1076 = vpop.f32.mrf.mxu0
    %v1077 = vadd.f32 %v1048, %v1076
    %1078 = vmatmul.f32.gmra.mxu0 %v571
    %v1079 = vpop.f32.mrf.mxu0
    %v1080 = vadd.f32 %v1051, %v1079
    %1081 = vmatmul.f32.gmra.mxu0 %v579
    %v1082 = vpop.f32.mrf.mxu0
    %v1083 = vadd.f32 %v1054, %v1082
    %1084 = vdwg.mxu0
    %1085 = vmatpush.msra.mxu0 %v659
    %1086 = vmatpush.msra.mxu0 %v655
    %1087 = vmatpush.msra.mxu0 %v651
    %1088 = vmatpush.msra.mxu0 %v647
    %1089 = vmatpush.msra.mxu0 %v643
    %1090 = vmatpush.msra.mxu0 %v639
    %1091 = vmatpush.msra.mxu0 %v635
    %1092 = vmatpush.msra.mxu0 %v631
    %1093 = vmatpush.msra.mxu0 %v627
    %1094 = vmatpush.msra.mxu0 %v623
    %1095 = vmatpush.msra.mxu0 %v619
    %1096 = vmatpush.msra.mxu0 %v615
    %1097 = vmatpush.msra.mxu0 %v611
    %1098 = vmatpush.msra.mxu0 %v607
    %1099 = vmatpush.msra.mxu0 %v603
    %1100 = vmatpush.msra.mxu0 %v599
    %1101 = vmatmul.f32.gmra.mxu0 %v542
    %v1102 = vpop.f32.mrf.mxu0
    %v1103 = vadd.f32 0.0, %v1102
    %1104 = vmatmul.f32.gmra.mxu0 %v553
    %v1105 = vpop.f32.mrf.mxu0
    %v1106 = vadd.f32 0.0, %v1105
    %1107 = vmatmul.f32.gmra.mxu0 %v562
    %v1108 = vpop.f32.mrf.mxu0
    %v1109 = vadd.f32 0.0, %v1108
    %1110 = vmatmul.f32.gmra.mxu0 %v573
    %v1111 = vpop.f32.mrf.mxu0
    %v1112 = vadd.f32 0.0, %v1111
    %1113 = vdwg.mxu0
    %1114 = vmatpush.msra.mxu0 %v723
    %1115 = vmatpush.msra.mxu0 %v719
    %1116 = vmatpush.msra.mxu0 %v715
    %1117 = vmatpush.msra.mxu0 %v711
    %1118 = vmatpush.msra.mxu0 %v707
    %1119 = vmatpush.msra.mxu0 %v703
    %1120 = vmatpush.msra.mxu0 %v699
    %1121 = vmatpush.msra.mxu0 %v695
    %1122 = vmatpush.msra.mxu0 %v691
    %1123 = vmatpush.msra.mxu0 %v687
    %1124 = vmatpush.msra.mxu0 %v683
    %1125 = vmatpush.msra.mxu0 %v679
    %1126 = vmatpush.msra.mxu0 %v675
    %1127 = vmatpush.msra.mxu0 %v671
    %1128 = vmatpush.msra.mxu0 %v667
    %1129 = vmatpush.msra.mxu0 %v663
    %1130 = vmatmul.f32.gmra.mxu0 %v545
    %v1131 = vpop.f32.mrf.mxu0
    %v1132 = vadd.f32 %v1103, %v1131
    %1133 = vmatmul.f32.gmra.mxu0 %v555
    %v1134 = vpop.f32.mrf.mxu0
    %v1135 = vadd.f32 %v1106, %v1134
    %1136 = vmatmul.f32.gmra.mxu0 %v565
    %v1137 = vpop.f32.mrf.mxu0
    %v1138 = vadd.f32 %v1109, %v1137
    %1139 = vmatmul.f32.gmra.mxu0 %v575
    %v1140 = vpop.f32.mrf.mxu0
    %v1141 = vadd.f32 %v1112, %v1140
    %1142 = vdwg.mxu0
    %1143 = vmatpush.msra.mxu0 %v787
    %1144 = vmatpush.msra.mxu0 %v783
    %1145 = vmatpush.msra.mxu0 %v779
    %1146 = vmatpush.msra.mxu0 %v775
    %1147 = vmatpush.msra.mxu0 %v771
    %1148 = vmatpush.msra.mxu0 %v767
    %1149 = vmatpush.msra.mxu0 %v763
    %1150 = vmatpush.msra.mxu0 %v759
    %1151 = vmatpush.msra.mxu0 %v755
    %1152 = vmatpush.msra.mxu0 %v751
    %1153 = vmatpush.msra.mxu0 %v747
    %1154 = vmatpush.msra.mxu0 %v743
    %1155 = vmatpush.msra.mxu0 %v739
    %1156 = vmatpush.msra.mxu0 %v735
    %1157 = vmatpush.msra.mxu0 %v731
    %1158 = vmatpush.msra.mxu0 %v727
    %1159 = vmatmul.f32.gmra.mxu0 %v548
    %v1160 = vpop.f32.mrf.mxu0
    %v1161 = vadd.f32 %v1132, %v1160
    %1162 = vmatmul.f32.gmra.mxu0 %v557
    %v1163 = vpop.f32.mrf.mxu0
    %v1164 = vadd.f32 %v1135, %v1163
    %1165 = vmatmul.f32.gmra.mxu0 %v568
    %v1166 = vpop.f32.mrf.mxu0
    %v1167 = vadd.f32 %v1138, %v1166
    %1168 = vmatmul.f32.gmra.mxu0 %v577
    %v1169 = vpop.f32.mrf.mxu0
    %v1170 = vadd.f32 %v1141, %v1169
    %1171 = vdwg.mxu0
    %1172 = vmatpush.msra.mxu0 %v851
    %1173 = vmatpush.msra.mxu0 %v847
    %1174 = vmatpush.msra.mxu0 %v843
    %1175 = vmatpush.msra.mxu0 %v839
    %1176 = vmatpush.msra.mxu0 %v835
    %1177 = vmatpush.msra.mxu0 %v831
    %1178 = vmatpush.msra.mxu0 %v827
    %1179 = vmatpush.msra.mxu0 %v823
    %1180 = vmatpush.msra.mxu0 %v819
    %1181 = vmatpush.msra.mxu0 %v815
    %1182 = vmatpush.msra.mxu0 %v811
    %1183 = vmatpush.msra.mxu0 %v807
    %1184 = vmatpush.msra.mxu0 %v803
    %1185 = vmatpush.msra.mxu0 %v799
    %1186 = vmatpush.msra.mxu0 %v795
    %1187 = vmatpush.msra.mxu0 %v791
    %1188 = vmatmul.f32.gmra.mxu0 %v551
    %v1189 = vpop.f32.mrf.mxu0
    %v1190 = vadd.f32 %v1161, %v1189
    %1191 = vmatmul.f32.gmra.mxu0 %v559
    %v1192 = vpop.f32.mrf.mxu0
    %v1193 = vadd.f32 %v1164, %v1192
    %1194 = vmatmul.f32.gmra.mxu0 %v571
    %v1195 = vpop.f32.mrf.mxu0
    %v1196 = vadd.f32 %v1167, %v1195
    %1197 = vmatmul.f32.gmra.mxu0 %v579
    %v1198 = vpop.f32.mrf.mxu0
    %v1199 = vadd.f32 %v1170, %v1198
    %1200 = vdwg.mxu0
    %1201 = vmatpush.msra.mxu0 %v660
    %1202 = vmatpush.msra.mxu0 %v656
    %1203 = vmatpush.msra.mxu0 %v652
    %1204 = vmatpush.msra.mxu0 %v648
    %1205 = vmatpush.msra.mxu0 %v644
    %1206 = vmatpush.msra.mxu0 %v640
    %1207 = vmatpush.msra.mxu0 %v636
    %1208 = vmatpush.msra.mxu0 %v632
    %1209 = vmatpush.msra.mxu0 %v628
    %1210 = vmatpush.msra.mxu0 %v624
    %1211 = vmatpush.msra.mxu0 %v620
    %1212 = vmatpush.msra.mxu0 %v616
    %1213 = vmatpush.msra.mxu0 %v612
    %1214 = vmatpush.msra.mxu0 %v608
    %1215 = vmatpush.msra.mxu0 %v604
    %1216 = vmatpush.msra.mxu0 %v600
    %1217 = vmatmul.f32.gmra.mxu0 %v542
    %v1218 = vpop.f32.mrf.mxu0
    %v1219 = vadd.f32 0.0, %v1218
    %1220 = vmatmul.f32.gmra.mxu0 %v553
    %v1221 = vpop.f32.mrf.mxu0
    %v1222 = vadd.f32 0.0, %v1221
    %1223 = vmatmul.f32.gmra.mxu0 %v562
    %v1224 = vpop.f32.mrf.mxu0
    %v1225 = vadd.f32 0.0, %v1224
    %1226 = vmatmul.f32.gmra.mxu0 %v573
    %v1227 = vpop.f32.mrf.mxu0
    %v1228 = vadd.f32 0.0, %v1227
    %1229 = vdwg.mxu0
    %1230 = vmatpush.msra.mxu0 %v724
    %1231 = vmatpush.msra.mxu0 %v720
    %1232 = vmatpush.msra.mxu0 %v716
    %1233 = vmatpush.msra.mxu0 %v712
    %1234 = vmatpush.msra.mxu0 %v708
    %1235 = vmatpush.msra.mxu0 %v704
    %1236 = vmatpush.msra.mxu0 %v700
    %1237 = vmatpush.msra.mxu0 %v696
    %1238 = vmatpush.msra.mxu0 %v692
    %1239 = vmatpush.msra.mxu0 %v688
    %1240 = vmatpush.msra.mxu0 %v684
    %1241 = vmatpush.msra.mxu0 %v680
    %1242 = vmatpush.msra.mxu0 %v676
    %1243 = vmatpush.msra.mxu0 %v672
    %1244 = vmatpush.msra.mxu0 %v668
    %1245 = vmatpush.msra.mxu0 %v664
    %1246 = vmatmul.f32.gmra.mxu0 %v545
    %v1247 = vpop.f32.mrf.mxu0
    %v1248 = vadd.f32 %v1219, %v1247
    %1249 = vmatmul.f32.gmra.mxu0 %v555
    %v1250 = vpop.f32.mrf.mxu0
    %v1251 = vadd.f32 %v1222, %v1250
    %1252 = vmatmul.f32.gmra.mxu0 %v565
    %v1253 = vpop.f32.mrf.mxu0
    %v1254 = vadd.f32 %v1225, %v1253
    %1255 = vmatmul.f32.gmra.mxu0 %v575
    %v1256 = vpop.f32.mrf.mxu0
    %v1257 = vadd.f32 %v1228, %v1256
    %1258 = vdwg.mxu0
    %1259 = vmatpush.msra.mxu0 %v788
    %1260 = vmatpush.msra.mxu0 %v784
    %1261 = vmatpush.msra.mxu0 %v780
    %1262 = vmatpush.msra.mxu0 %v776
    %1263 = vmatpush.msra.mxu0 %v772
    %1264 = vmatpush.msra.mxu0 %v768
    %1265 = vmatpush.msra.mxu0 %v764
    %1266 = vmatpush.msra.mxu0 %v760
    %1267 = vmatpush.msra.mxu0 %v756
    %1268 = vmatpush.msra.mxu0 %v752
    %1269 = vmatpush.msra.mxu0 %v748
    %1270 = vmatpush.msra.mxu0 %v744
    %1271 = vmatpush.msra.mxu0 %v740
    %1272 = vmatpush.msra.mxu0 %v736
    %1273 = vmatpush.msra.mxu0 %v732
    %1274 = vmatpush.msra.mxu0 %v728
    %1275 = vmatmul.f32.gmra.mxu0 %v548
    %v1276 = vpop.f32.mrf.mxu0
    %v1277 = vadd.f32 %v1248, %v1276
    %1278 = vmatmul.f32.gmra.mxu0 %v557
    %v1279 = vpop.f32.mrf.mxu0
    %v1280 = vadd.f32 %v1251, %v1279
    %1281 = vmatmul.f32.gmra.mxu0 %v568
    %v1282 = vpop.f32.mrf.mxu0
    %v1283 = vadd.f32 %v1254, %v1282
    %1284 = vmatmul.f32.gmra.mxu0 %v577
    %v1285 = vpop.f32.mrf.mxu0
    %v1286 = vadd.f32 %v1257, %v1285
    %1287 = vdwg.mxu0
    %1288 = vmatpush.msra.mxu0 %v852
    %1289 = vmatpush.msra.mxu0 %v848
    %1290 = vmatpush.msra.mxu0 %v844
    %1291 = vmatpush.msra.mxu0 %v840
    %1292 = vmatpush.msra.mxu0 %v836
    %1293 = vmatpush.msra.mxu0 %v832
    %1294 = vmatpush.msra.mxu0 %v828
    %1295 = vmatpush.msra.mxu0 %v824
    %1296 = vmatpush.msra.mxu0 %v820
    %1297 = vmatpush.msra.mxu0 %v816
    %1298 = vmatpush.msra.mxu0 %v812
    %1299 = vmatpush.msra.mxu0 %v808
    %1300 = vmatpush.msra.mxu0 %v804
    %1301 = vmatpush.msra.mxu0 %v800
    %1302 = vmatpush.msra.mxu0 %v796
    %1303 = vmatpush.msra.mxu0 %v792
    %1304 = vmatmul.f32.gmra.mxu0 %v551
    %v1305 = vpop.f32.mrf.mxu0
    %v1306 = vadd.f32 %v1277, %v1305
    %1307 = vmatmul.f32.gmra.mxu0 %v559
    %v1308 = vpop.f32.mrf.mxu0
    %v1309 = vadd.f32 %v1280, %v1308
    %1310 = vmatmul.f32.gmra.mxu0 %v571
    %v1311 = vpop.f32.mrf.mxu0
    %v1312 = vadd.f32 %v1283, %v1311
    %1313 = vmatmul.f32.gmra.mxu0 %v579
    %v1314 = vpop.f32.mrf.mxu0
    %v1315 = vadd.f32 %v1286, %v1314
    %1316 = vdwg.mxu0
    %1317 = vmatpush.msra.mxu0 %v303
    %1318 = vmatpush.msra.mxu0 %v299
    %1319 = vmatpush.msra.mxu0 %v295
    %1320 = vmatpush.msra.mxu0 %v291
    %1321 = vmatpush.msra.mxu0 %v287
    %1322 = vmatpush.msra.mxu0 %v283
    %1323 = vmatpush.msra.mxu0 %v279
    %1324 = vmatpush.msra.mxu0 %v275
    %1325 = vmatpush.msra.mxu0 %v271
    %1326 = vmatpush.msra.mxu0 %v267
    %1327 = vmatpush.msra.mxu0 %v263
    %1328 = vmatpush.msra.mxu0 %v259
    %1329 = vmatpush.msra.mxu0 %v255
    %1330 = vmatpush.msra.mxu0 %v251
    %1331 = vmatpush.msra.mxu0 %v247
    %1332 = vmatpush.msra.mxu0 %v243
    %1333 = vmatmul.f32.gmra.mxu0 %v227
    %v1334 = vpop.f32.mrf.mxu0
    %v1335 = vadd.f32 %v958, %v1334
    %1336 = vmatmul.f32.gmra.mxu0 %v231
    %v1337 = vpop.f32.mrf.mxu0
    %v1338 = vadd.f32 %v961, %v1337
    %1339 = vmatmul.f32.gmra.mxu0 %v235
    %v1340 = vpop.f32.mrf.mxu0
    %v1341 = vadd.f32 %v964, %v1340
    %1342 = vmatmul.f32.gmra.mxu0 %v239
    %v1343 = vpop.f32.mrf.mxu0
    %v1344 = vadd.f32 %v967, %v1343
    %1345 = vdwg.mxu0
    %1346 = vmatpush.msra.mxu0 %v367
    %1347 = vmatpush.msra.mxu0 %v363
    %1348 = vmatpush.msra.mxu0 %v359
    %1349 = vmatpush.msra.mxu0 %v355
    %1350 = vmatpush.msra.mxu0 %v351
    %1351 = vmatpush.msra.mxu0 %v347
    %1352 = vmatpush.msra.mxu0 %v343
    %1353 = vmatpush.msra.mxu0 %v339
    %1354 = vmatpush.msra.mxu0 %v335
    %1355 = vmatpush.msra.mxu0 %v331
    %1356 = vmatpush.msra.mxu0 %v327
    %1357 = vmatpush.msra.mxu0 %v323
    %1358 = vmatpush.msra.mxu0 %v319
    %1359 = vmatpush.msra.mxu0 %v315
    %1360 = vmatpush.msra.mxu0 %v311
    %1361 = vmatpush.msra.mxu0 %v307
    %1362 = vmatmul.f32.gmra.mxu0 %v228
    %v1363 = vpop.f32.mrf.mxu0
    %v1364 = vadd.f32 %v1335, %v1363
    %1365 = vmatmul.f32.gmra.mxu0 %v232
    %v1366 = vpop.f32.mrf.mxu0
    %v1367 = vadd.f32 %v1338, %v1366
    %1368 = vmatmul.f32.gmra.mxu0 %v236
    %v1369 = vpop.f32.mrf.mxu0
    %v1370 = vadd.f32 %v1341, %v1369
    %1371 = vmatmul.f32.gmra.mxu0 %v240
    %v1372 = vpop.f32.mrf.mxu0
    %v1373 = vadd.f32 %v1344, %v1372
    %1374 = vdwg.mxu0
    %1375 = vmatpush.msra.mxu0 %v431
    %1376 = vmatpush.msra.mxu0 %v427
    %1377 = vmatpush.msra.mxu0 %v423
    %1378 = vmatpush.msra.mxu0 %v419
    %1379 = vmatpush.msra.mxu0 %v415
    %1380 = vmatpush.msra.mxu0 %v411
    %1381 = vmatpush.msra.mxu0 %v407
    %1382 = vmatpush.msra.mxu0 %v403
    %1383 = vmatpush.msra.mxu0 %v399
    %1384 = vmatpush.msra.mxu0 %v395
    %1385 = vmatpush.msra.mxu0 %v391
    %1386 = vmatpush.msra.mxu0 %v387
    %1387 = vmatpush.msra.mxu0 %v383
    %1388 = vmatpush.msra.mxu0 %v379
    %1389 = vmatpush.msra.mxu0 %v375
    %1390 = vmatpush.msra.mxu0 %v371
    %1391 = vmatmul.f32.gmra.mxu0 %v229
    %v1392 = vpop.f32.mrf.mxu0
    %v1393 = vadd.f32 %v1364, %v1392
    %1394 = vmatmul.f32.gmra.mxu0 %v233
    %v1395 = vpop.f32.mrf.mxu0
    %v1396 = vadd.f32 %v1367, %v1395
    %1397 = vmatmul.f32.gmra.mxu0 %v237
    %v1398 = vpop.f32.mrf.mxu0
    %v1399 = vadd.f32 %v1370, %v1398
    %1400 = vmatmul.f32.gmra.mxu0 %v241
    %v1401 = vpop.f32.mrf.mxu0
    %v1402 = vadd.f32 %v1373, %v1401
    %1403 = vdwg.mxu0
    %1404 = vmatpush.msra.mxu0 %v495
    %1405 = vmatpush.msra.mxu0 %v491
    %1406 = vmatpush.msra.mxu0 %v487
    %1407 = vmatpush.msra.mxu0 %v483
    %1408 = vmatpush.msra.mxu0 %v479
    %1409 = vmatpush.msra.mxu0 %v475
    %1410 = vmatpush.msra.mxu0 %v471
    %1411 = vmatpush.msra.mxu0 %v467
    %1412 = vmatpush.msra.mxu0 %v463
    %1413 = vmatpush.msra.mxu0 %v459
    %1414 = vmatpush.msra.mxu0 %v455
    %1415 = vmatpush.msra.mxu0 %v451
    %1416 = vmatpush.msra.mxu0 %v447
    %1417 = vmatpush.msra.mxu0 %v443
    %1418 = vmatpush.msra.mxu0 %v439
    %1419 = vmatpush.msra.mxu0 %v435
    %1420 = vmatmul.f32.gmra.mxu0 %v230
    %v1421 = vpop.f32.mrf.mxu0
    %v1422 = vadd.f32 %v1393, %v1421
    %1423 = vmatmul.f32.gmra.mxu0 %v234
    %v1424 = vpop.f32.mrf.mxu0
    %v1425 = vadd.f32 %v1396, %v1424
    %1426 = vmatmul.f32.gmra.mxu0 %v238
    %v1427 = vpop.f32.mrf.mxu0
    %v1428 = vadd.f32 %v1399, %v1427
    %1429 = vmatmul.f32.gmra.mxu0 %v242
    %v1430 = vpop.f32.mrf.mxu0
    %v1431 = vadd.f32 %v1402, %v1430
    %1432 = vdwg.mxu0
    %1433 = vmatpush.msra.mxu0 %v304
    %1434 = vmatpush.msra.mxu0 %v300
    %1435 = vmatpush.msra.mxu0 %v296
    %1436 = vmatpush.msra.mxu0 %v292
    %1437 = vmatpush.msra.mxu0 %v288
    %1438 = vmatpush.msra.mxu0 %v284
    %1439 = vmatpush.msra.mxu0 %v280
    %1440 = vmatpush.msra.mxu0 %v276
    %1441 = vmatpush.msra.mxu0 %v272
    %1442 = vmatpush.msra.mxu0 %v268
    %1443 = vmatpush.msra.mxu0 %v264
    %1444 = vmatpush.msra.mxu0 %v260
    %1445 = vmatpush.msra.mxu0 %v256
    %1446 = vmatpush.msra.mxu0 %v252
    %1447 = vmatpush.msra.mxu0 %v248
    %1448 = vmatpush.msra.mxu0 %v244
    %1449 = vmatmul.f32.gmra.mxu0 %v227
    %v1450 = vpop.f32.mrf.mxu0
    %v1451 = vadd.f32 %v1074, %v1450
    %1452 = vmatmul.f32.gmra.mxu0 %v231
    %v1453 = vpop.f32.mrf.mxu0
    %v1454 = vadd.f32 %v1077, %v1453
    %1455 = vmatmul.f32.gmra.mxu0 %v235
    %v1456 = vpop.f32.mrf.mxu0
    %v1457 = vadd.f32 %v1080, %v1456
    %1458 = vmatmul.f32.gmra.mxu0 %v239
    %v1459 = vpop.f32.mrf.mxu0
    %v1460 = vadd.f32 %v1083, %v1459
    %1461 = vdwg.mxu0
    %1462 = vmatpush.msra.mxu0 %v368
    %1463 = vmatpush.msra.mxu0 %v364
    %1464 = vmatpush.msra.mxu0 %v360
    %1465 = vmatpush.msra.mxu0 %v356
    %1466 = vmatpush.msra.mxu0 %v352
    %1467 = vmatpush.msra.mxu0 %v348
    %1468 = vmatpush.msra.mxu0 %v344
    %1469 = vmatpush.msra.mxu0 %v340
    %1470 = vmatpush.msra.mxu0 %v336
    %1471 = vmatpush.msra.mxu0 %v332
    %1472 = vmatpush.msra.mxu0 %v328
    %1473 = vmatpush.msra.mxu0 %v324
    %1474 = vmatpush.msra.mxu0 %v320
    %1475 = vmatpush.msra.mxu0 %v316
    %1476 = vmatpush.msra.mxu0 %v312
    %1477 = vmatpush.msra.mxu0 %v308
    %1478 = vmatmul.f32.gmra.mxu0 %v228
    %v1479 = vpop.f32.mrf.mxu0
    %v1480 = vadd.f32 %v1451, %v1479
    %1481 = vmatmul.f32.gmra.mxu0 %v232
    %v1482 = vpop.f32.mrf.mxu0
    %v1483 = vadd.f32 %v1454, %v1482
    %1484 = vmatmul.f32.gmra.mxu0 %v236
    %v1485 = vpop.f32.mrf.mxu0
    %v1486 = vadd.f32 %v1457, %v1485
    %1487 = vmatmul.f32.gmra.mxu0 %v240
    %v1488 = vpop.f32.mrf.mxu0
    %v1489 = vadd.f32 %v1460, %v1488
    %1490 = vdwg.mxu0
    %1491 = vmatpush.msra.mxu0 %v432
    %1492 = vmatpush.msra.mxu0 %v428
    %1493 = vmatpush.msra.mxu0 %v424
    %1494 = vmatpush.msra.mxu0 %v420
    %1495 = vmatpush.msra.mxu0 %v416
    %1496 = vmatpush.msra.mxu0 %v412
    %1497 = vmatpush.msra.mxu0 %v408
    %1498 = vmatpush.msra.mxu0 %v404
    %1499 = vmatpush.msra.mxu0 %v400
    %1500 = vmatpush.msra.mxu0 %v396
    %1501 = vmatpush.msra.mxu0 %v392
    %1502 = vmatpush.msra.mxu0 %v388
    %1503 = vmatpush.msra.mxu0 %v384
    %1504 = vmatpush.msra.mxu0 %v380
    %1505 = vmatpush.msra.mxu0 %v376
    %1506 = vmatpush.msra.mxu0 %v372
    %1507 = vmatmul.f32.gmra.mxu0 %v229
    %v1508 = vpop.f32.mrf.mxu0
    %v1509 = vadd.f32 %v1480, %v1508
    %1510 = vmatmul.f32.gmra.mxu0 %v233
    %v1511 = vpop.f32.mrf.mxu0
    %v1512 = vadd.f32 %v1483, %v1511
    %1513 = vmatmul.f32.gmra.mxu0 %v237
    %v1514 = vpop.f32.mrf.mxu0
    %v1515 = vadd.f32 %v1486, %v1514
    %1516 = vmatmul.f32.gmra.mxu0 %v241
    %v1517 = vpop.f32.mrf.mxu0
    %v1518 = vadd.f32 %v1489, %v1517
    %1519 = vdwg.mxu0
    %1520 = vmatpush.msra.mxu0 %v496
    %1521 = vmatpush.msra.mxu0 %v492
    %1522 = vmatpush.msra.mxu0 %v488
    %1523 = vmatpush.msra.mxu0 %v484
    %1524 = vmatpush.msra.mxu0 %v480
    %1525 = vmatpush.msra.mxu0 %v476
    %1526 = vmatpush.msra.mxu0 %v472
    %1527 = vmatpush.msra.mxu0 %v468
    %1528 = vmatpush.msra.mxu0 %v464
    %1529 = vmatpush.msra.mxu0 %v460
    %1530 = vmatpush.msra.mxu0 %v456
    %1531 = vmatpush.msra.mxu0 %v452
    %1532 = vmatpush.msra.mxu0 %v448
    %1533 = vmatpush.msra.mxu0 %v444
    %1534 = vmatpush.msra.mxu0 %v440
    %1535 = vmatpush.msra.mxu0 %v436
    %1536 = vmatmul.f32.gmra.mxu0 %v230
    %v1537 = vpop.f32.mrf.mxu0
    %v1538 = vadd.f32 %v1509, %v1537
    %1539 = vmatmul.f32.gmra.mxu0 %v234
    %v1540 = vpop.f32.mrf.mxu0
    %v1541 = vadd.f32 %v1512, %v1540
    %1542 = vmatmul.f32.gmra.mxu0 %v238
    %v1543 = vpop.f32.mrf.mxu0
    %v1544 = vadd.f32 %v1515, %v1543
    %1545 = vmatmul.f32.gmra.mxu0 %v242
    %v1546 = vpop.f32.mrf.mxu0
    %v1547 = vadd.f32 %v1518, %v1546
    %1548 = vdwg.mxu0
    %1549 = vmatpush.msra.mxu0 %v305
    %1550 = vmatpush.msra.mxu0 %v301
    %1551 = vmatpush.msra.mxu0 %v297
    %1552 = vmatpush.msra.mxu0 %v293
    %1553 = vmatpush.msra.mxu0 %v289
    %1554 = vmatpush.msra.mxu0 %v285
    %1555 = vmatpush.msra.mxu0 %v281
    %1556 = vmatpush.msra.mxu0 %v277
    %1557 = vmatpush.msra.mxu0 %v273
    %1558 = vmatpush.msra.mxu0 %v269
    %1559 = vmatpush.msra.mxu0 %v265
    %1560 = vmatpush.msra.mxu0 %v261
    %1561 = vmatpush.msra.mxu0 %v257
    %1562 = vmatpush.msra.mxu0 %v253
    %1563 = vmatpush.msra.mxu0 %v249
    %1564 = vmatpush.msra.mxu0 %v245
    %1565 = vmatmul.f32.gmra.mxu0 %v227
    %v1566 = vpop.f32.mrf.mxu0
    %v1567 = vadd.f32 %v1190, %v1566
    %1568 = vmatmul.f32.gmra.mxu0 %v231
    %v1569 = vpop.f32.mrf.mxu0
    %v1570 = vadd.f32 %v1193, %v1569
    %1571 = vmatmul.f32.gmra.mxu0 %v235
    %v1572 = vpop.f32.mrf.mxu0
    %v1573 = vadd.f32 %v1196, %v1572
    %1574 = vmatmul.f32.gmra.mxu0 %v239
    %v1575 = vpop.f32.mrf.mxu0
    %v1576 = vadd.f32 %v1199, %v1575
    %1577 = vdwg.mxu0
    %1578 = vmatpush.msra.mxu0 %v369
    %1579 = vmatpush.msra.mxu0 %v365
    %1580 = vmatpush.msra.mxu0 %v361
    %1581 = vmatpush.msra.mxu0 %v357
    %1582 = vmatpush.msra.mxu0 %v353
    %1583 = vmatpush.msra.mxu0 %v349
    %1584 = vmatpush.msra.mxu0 %v345
    %1585 = vmatpush.msra.mxu0 %v341
    %1586 = vmatpush.msra.mxu0 %v337
    %1587 = vmatpush.msra.mxu0 %v333
    %1588 = vmatpush.msra.mxu0 %v329
    %1589 = vmatpush.msra.mxu0 %v325
    %1590 = vmatpush.msra.mxu0 %v321
    %1591 = vmatpush.msra.mxu0 %v317
    %1592 = vmatpush.msra.mxu0 %v313
    %1593 = vmatpush.msra.mxu0 %v309
    %1594 = vmatmul.f32.gmra.mxu0 %v228
    %v1595 = vpop.f32.mrf.mxu0
    %v1596 = vadd.f32 %v1567, %v1595
    %1597 = vmatmul.f32.gmra.mxu0 %v232
    %v1598 = vpop.f32.mrf.mxu0
    %v1599 = vadd.f32 %v1570, %v1598
    %1600 = vmatmul.f32.gmra.mxu0 %v236
    %v1601 = vpop.f32.mrf.mxu0
    %v1602 = vadd.f32 %v1573, %v1601
    %1603 = vmatmul.f32.gmra.mxu0 %v240
    %v1604 = vpop.f32.mrf.mxu0
    %v1605 = vadd.f32 %v1576, %v1604
    %1606 = vdwg.mxu0
    %1607 = vmatpush.msra.mxu0 %v433
    %1608 = vmatpush.msra.mxu0 %v429
    %1609 = vmatpush.msra.mxu0 %v425
    %1610 = vmatpush.msra.mxu0 %v421
    %1611 = vmatpush.msra.mxu0 %v417
    %1612 = vmatpush.msra.mxu0 %v413
    %1613 = vmatpush.msra.mxu0 %v409
    %1614 = vmatpush.msra.mxu0 %v405
    %1615 = vmatpush.msra.mxu0 %v401
    %1616 = vmatpush.msra.mxu0 %v397
    %1617 = vmatpush.msra.mxu0 %v393
    %1618 = vmatpush.msra.mxu0 %v389
    %1619 = vmatpush.msra.mxu0 %v385
    %1620 = vmatpush.msra.mxu0 %v381
    %1621 = vmatpush.msra.mxu0 %v377
    %1622 = vmatpush.msra.mxu0 %v373
    %1623 = vmatmul.f32.gmra.mxu0 %v229
    %v1624 = vpop.f32.mrf.mxu0
    %v1625 = vadd.f32 %v1596, %v1624
    %1626 = vmatmul.f32.gmra.mxu0 %v233
    %v1627 = vpop.f32.mrf.mxu0
    %v1628 = vadd.f32 %v1599, %v1627
    %1629 = vmatmul.f32.gmra.mxu0 %v237
    %v1630 = vpop.f32.mrf.mxu0
    %v1631 = vadd.f32 %v1602, %v1630
    %1632 = vmatmul.f32.gmra.mxu0 %v241
    %v1633 = vpop.f32.mrf.mxu0
    %v1634 = vadd.f32 %v1605, %v1633
    %1635 = vdwg.mxu0
    %1636 = vmatpush.msra.mxu0 %v497
    %1637 = vmatpush.msra.mxu0 %v493
    %1638 = vmatpush.msra.mxu0 %v489
    %1639 = vmatpush.msra.mxu0 %v485
    %1640 = vmatpush.msra.mxu0 %v481
    %1641 = vmatpush.msra.mxu0 %v477
    %1642 = vmatpush.msra.mxu0 %v473
    %1643 = vmatpush.msra.mxu0 %v469
    %1644 = vmatpush.msra.mxu0 %v465
    %1645 = vmatpush.msra.mxu0 %v461
    %1646 = vmatpush.msra.mxu0 %v457
    %1647 = vmatpush.msra.mxu0 %v453
    %1648 = vmatpush.msra.mxu0 %v449
    %1649 = vmatpush.msra.mxu0 %v445
    %1650 = vmatpush.msra.mxu0 %v441
    %1651 = vmatpush.msra.mxu0 %v437
    %1652 = vmatmul.f32.gmra.mxu0 %v230
    %v1653 = vpop.f32.mrf.mxu0
    %v1654 = vadd.f32 %v1625, %v1653
    %1655 = vmatmul.f32.gmra.mxu0 %v234
    %v1656 = vpop.f32.mrf.mxu0
    %v1657 = vadd.f32 %v1628, %v1656
    %1658 = vmatmul.f32.gmra.mxu0 %v238
    %v1659 = vpop.f32.mrf.mxu0
    %v1660 = vadd.f32 %v1631, %v1659
    %1661 = vmatmul.f32.gmra.mxu0 %v242
    %v1662 = vpop.f32.mrf.mxu0
    %v1663 = vadd.f32 %v1634, %v1662
    %1664 = vdwg.mxu0
    %1665 = vmatpush.msra.mxu0 %v306
    %1666 = vmatpush.msra.mxu0 %v302
    %1667 = vmatpush.msra.mxu0 %v298
    %1668 = vmatpush.msra.mxu0 %v294
    %1669 = vmatpush.msra.mxu0 %v290
    %1670 = vmatpush.msra.mxu0 %v286
    %1671 = vmatpush.msra.mxu0 %v282
    %1672 = vmatpush.msra.mxu0 %v278
    %1673 = vmatpush.msra.mxu0 %v274
    %1674 = vmatpush.msra.mxu0 %v270
    %1675 = vmatpush.msra.mxu0 %v266
    %1676 = vmatpush.msra.mxu0 %v262
    %1677 = vmatpush.msra.mxu0 %v258
    %1678 = vmatpush.msra.mxu0 %v254
    %1679 = vmatpush.msra.mxu0 %v250
    %1680 = vmatpush.msra.mxu0 %v246
    %1681 = vmatmul.f32.gmra.mxu0 %v227
    %v1682 = vpop.f32.mrf.mxu0
    %v1683 = vadd.f32 %v1306, %v1682
    %1684 = vmatmul.f32.gmra.mxu0 %v231
    %v1685 = vpop.f32.mrf.mxu0
    %v1686 = vadd.f32 %v1309, %v1685
    %1687 = vmatmul.f32.gmra.mxu0 %v235
    %v1688 = vpop.f32.mrf.mxu0
    %v1689 = vadd.f32 %v1312, %v1688
    %1690 = vmatmul.f32.gmra.mxu0 %v239
    %v1691 = vpop.f32.mrf.mxu0
    %v1692 = vadd.f32 %v1315, %v1691
    %1693 = vdwg.mxu0
    %1694 = vmatpush.msra.mxu0 %v370
    %1695 = vmatpush.msra.mxu0 %v366
    %1696 = vmatpush.msra.mxu0 %v362
    %1697 = vmatpush.msra.mxu0 %v358
    %1698 = vmatpush.msra.mxu0 %v354
    %1699 = vmatpush.msra.mxu0 %v350
    %1700 = vmatpush.msra.mxu0 %v346
    %1701 = vmatpush.msra.mxu0 %v342
    %1702 = vmatpush.msra.mxu0 %v338
    %1703 = vmatpush.msra.mxu0 %v334
    %1704 = vmatpush.msra.mxu0 %v330
    %1705 = vmatpush.msra.mxu0 %v326
    %1706 = vmatpush.msra.mxu0 %v322
    %1707 = vmatpush.msra.mxu0 %v318
    %1708 = vmatpush.msra.mxu0 %v314
    %1709 = vmatpush.msra.mxu0 %v310
    %1710 = vmatmul.f32.gmra.mxu0 %v228
    %v1711 = vpop.f32.mrf.mxu0
    %v1712 = vadd.f32 %v1683, %v1711
    %1713 = vmatmul.f32.gmra.mxu0 %v232
    %v1714 = vpop.f32.mrf.mxu0
    %v1715 = vadd.f32 %v1686, %v1714
    %1716 = vmatmul.f32.gmra.mxu0 %v236
    %v1717 = vpop.f32.mrf.mxu0
    %v1718 = vadd.f32 %v1689, %v1717
    %1719 = vmatmul.f32.gmra.mxu0 %v240
    %v1720 = vpop.f32.mrf.mxu0
    %v1721 = vadd.f32 %v1692, %v1720
    %1722 = vdwg.mxu0
    %1723 = vmatpush.msra.mxu0 %v434
    %1724 = vmatpush.msra.mxu0 %v430
    %1725 = vmatpush.msra.mxu0 %v426
    %1726 = vmatpush.msra.mxu0 %v422
    %1727 = vmatpush.msra.mxu0 %v418
    %1728 = vmatpush.msra.mxu0 %v414
    %1729 = vmatpush.msra.mxu0 %v410
    %1730 = vmatpush.msra.mxu0 %v406
    %1731 = vmatpush.msra.mxu0 %v402
    %1732 = vmatpush.msra.mxu0 %v398
    %1733 = vmatpush.msra.mxu0 %v394
    %1734 = vmatpush.msra.mxu0 %v390
    %1735 = vmatpush.msra.mxu0 %v386
    %1736 = vmatpush.msra.mxu0 %v382
    %1737 = vmatpush.msra.mxu0 %v378
    %1738 = vmatpush.msra.mxu0 %v374
    %1739 = vmatmul.f32.gmra.mxu0 %v229
    %v1740 = vpop.f32.mrf.mxu0
    %v1741 = vadd.f32 %v1712, %v1740
    %1742 = vmatmul.f32.gmra.mxu0 %v233
    %v1743 = vpop.f32.mrf.mxu0
    %v1744 = vadd.f32 %v1715, %v1743
    %1745 = vmatmul.f32.gmra.mxu0 %v237
    %v1746 = vpop.f32.mrf.mxu0
    %v1747 = vadd.f32 %v1718, %v1746
    %1748 = vmatmul.f32.gmra.mxu0 %v241
    %v1749 = vpop.f32.mrf.mxu0
    %v1750 = vadd.f32 %v1721, %v1749
    %1751 = vdwg.mxu0
    %1752 = vmatpush.msra.mxu0 %v498
    %1753 = vmatpush.msra.mxu0 %v494
    %1754 = vmatpush.msra.mxu0 %v490
    %1755 = vmatpush.msra.mxu0 %v486
    %1756 = vmatpush.msra.mxu0 %v482
    %1757 = vmatpush.msra.mxu0 %v478
    %1758 = vmatpush.msra.mxu0 %v474
    %1759 = vmatpush.msra.mxu0 %v470
    %1760 = vmatpush.msra.mxu0 %v466
    %1761 = vmatpush.msra.mxu0 %v462
    %1762 = vmatpush.msra.mxu0 %v458
    %1763 = vmatpush.msra.mxu0 %v454
    %1764 = vmatpush.msra.mxu0 %v450
    %1765 = vmatpush.msra.mxu0 %v446
    %1766 = vmatpush.msra.mxu0 %v442
    %1767 = vmatpush.msra.mxu0 %v438
    %1768 = vmatmul.f32.gmra.mxu0 %v230
    %v1769 = vpop.f32.mrf.mxu0
    %v1770 = vadd.f32 %v1741, %v1769
    %1771 = vmatmul.f32.gmra.mxu0 %v234
    %v1772 = vpop.f32.mrf.mxu0
    %v1773 = vadd.f32 %v1744, %v1772
    %1774 = vmatmul.f32.gmra.mxu0 %v238
    %v1775 = vpop.f32.mrf.mxu0
    %v1776 = vadd.f32 %v1747, %v1775
    %1777 = vmatmul.f32.gmra.mxu0 %v242
    %v1778 = vpop.f32.mrf.mxu0
    %v1779 = vadd.f32 %v1750, %v1778
    %1780 = vdwg.mxu0
    %v1781 = vld [vmem:[#allocation2] sm:$0xfc]
    %v1782 = vld [vmem:[#allocation2 + $0x8] sm:$0xfc]
    %v1783 = vld [vmem:[#allocation2 + $0x10] sm:$0xfc]
    %v1784 = vld [vmem:[#allocation2 + $0x18] sm:$0xfc]
    %v1785 = vld [vmem:[#allocation2 + $0x40] sm:$0x3]
    %v1786 = vld [vmem:[#allocation2 + $0x48] sm:$0x3]
    %v1787 = vld [vmem:[#allocation2 + $0x50] sm:$0x3]
    %v1788 = vld [vmem:[#allocation2 + $0x58] sm:$0x3]
    %v1789 = vld [vmem:[#allocation2 + $0x60] sm:$0xfc]
    %v1790 = vld [vmem:[#allocation2 + $0x68] sm:$0xfc]
    %v1791 = vld [vmem:[#allocation2 + $0x70] sm:$0xfc]
    %v1792 = vld [vmem:[#allocation2 + $0x78] sm:$0xfc]
    %v1793 = vld [vmem:[#allocation2 + $0xa0] sm:$0x3]
    %v1794 = vld [vmem:[#allocation2 + $0xa8] sm:$0x3]
    %v1795 = vld [vmem:[#allocation2 + $0xb0] sm:$0x3]
    %v1796 = vld [vmem:[#allocation2 + $0xb8] sm:$0x3]
    %vm1813 = vcmask 1045504
    %v1814 = vrot.slane %v1781, 2
    %v1815 = vrot.slane %v231, 2
    %v1816 = vsel %vm1813, %v1814, %v1815
    %v1817 = vrot.slane %v1782, 2
    %v1818 = vrot.slane %v232, 2
    %v1819 = vsel %vm1813, %v1817, %v1818
    %v1820 = vrot.slane %v1783, 2
    %v1821 = vrot.slane %v233, 2
    %v1822 = vsel %vm1813, %v1820, %v1821
    %v1823 = vrot.slane %v1784, 2
    %v1824 = vrot.slane %v234, 2
    %v1825 = vsel %vm1813, %v1823, %v1824
    %v1826 = vrot.slane %v1785, 2
    %v1827 = vsel %vm1813, %v1815, %v1826
    %v1828 = vrot.slane %v1786, 2
    %v1829 = vsel %vm1813, %v1818, %v1828
    %v1830 = vrot.slane %v1787, 2
    %v1831 = vsel %vm1813, %v1821, %v1830
    %v1832 = vrot.slane %v1788, 2
    %v1833 = vsel %vm1813, %v1824, %v1832
    %v1834 = vrot.slane %v1789, 2
    %v1835 = vrot.slane %v239, 2
    %v1836 = vsel %vm1813, %v1834, %v1835
    %v1837 = vrot.slane %v1790, 2
    %v1838 = vrot.slane %v240, 2
    %v1839 = vsel %vm1813, %v1837, %v1838
    %v1840 = vrot.slane %v1791, 2
    %v1841 = vrot.slane %v241, 2
    %v1842 = vsel %vm1813, %v1840, %v1841
    %v1843 = vrot.slane %v1792, 2
    %v1844 = vrot.slane %v242, 2
    %v1845 = vsel %vm1813, %v1843, %v1844
    %v1846 = vrot.slane %v1793, 2
    %v1847 = vsel %vm1813, %v1835, %v1846
    %v1848 = vrot.slane %v1794, 2
    %v1849 = vsel %vm1813, %v1838, %v1848
    %v1850 = vrot.slane %v1795, 2
    %v1851 = vsel %vm1813, %v1841, %v1850
    %v1852 = vrot.slane %v1796, 2
    %v1853 = vsel %vm1813, %v1844, %v1852
    %s1870 = scalar_lea.vmem [#allocation6], 4096
    %v1871 = vld [vmem:[%s1870] sm:$0xff]
    %v1872 = vld [vmem:[%s1870 + $0x8] sm:$0xff]
    %v1873 = vld [vmem:[%s1870 + $0x10] sm:$0xff]
    %v1874 = vld [vmem:[%s1870 + $0x18] sm:$0xff]
    %v1875 = vld [vmem:[%s1870 + $0x20] sm:$0xff]
    %v1876 = vld [vmem:[%s1870 + $0x28] sm:$0xff]
    %v1877 = vld [vmem:[%s1870 + $0x30] sm:$0xff]
    %v1878 = vld [vmem:[%s1870 + $0x38] sm:$0xff]
    %v1879 = vld [vmem:[%s1870 + $0x40] sm:$0xff]
    %v1880 = vld [vmem:[%s1870 + $0x48] sm:$0xff]
    %v1881 = vld [vmem:[%s1870 + $0x50] sm:$0xff]
    %v1882 = vld [vmem:[%s1870 + $0x58] sm:$0xff]
    %v1883 = vld [vmem:[%s1870 + $0x60] sm:$0xff]
    %v1884 = vld [vmem:[%s1870 + $0x68] sm:$0xff]
    %v1885 = vld [vmem:[%s1870 + $0x70] sm:$0xff]
    %v1886 = vld [vmem:[%s1870 + $0x78] sm:$0xff]
    %v1887 = vld [vmem:[%s1870 + $0x80] sm:$0xff]
    %v1888 = vld [vmem:[%s1870 + $0x88] sm:$0xff]
    %v1889 = vld [vmem:[%s1870 + $0x90] sm:$0xff]
    %v1890 = vld [vmem:[%s1870 + $0x98] sm:$0xff]
    %v1891 = vld [vmem:[%s1870 + $0xa0] sm:$0xff]
    %v1892 = vld [vmem:[%s1870 + $0xa8] sm:$0xff]
    %v1893 = vld [vmem:[%s1870 + $0xb0] sm:$0xff]
    %v1894 = vld [vmem:[%s1870 + $0xb8] sm:$0xff]
    %v1895 = vld [vmem:[%s1870 + $0xc0] sm:$0xff]
    %v1896 = vld [vmem:[%s1870 + $0xc8] sm:$0xff]
    %v1897 = vld [vmem:[%s1870 + $0xd0] sm:$0xff]
    %v1898 = vld [vmem:[%s1870 + $0xd8] sm:$0xff]
    %v1899 = vld [vmem:[%s1870 + $0xe0] sm:$0xff]
    %v1900 = vld [vmem:[%s1870 + $0xe8] sm:$0xff]
    %v1901 = vld [vmem:[%s1870 + $0xf0] sm:$0xff]
    %v1902 = vld [vmem:[%s1870 + $0xf8] sm:$0xff]
    %v1903 = vld [vmem:[%s1870 + $0x100] sm:$0xff]
    %v1904 = vld [vmem:[%s1870 + $0x108] sm:$0xff]
    %v1905 = vld [vmem:[%s1870 + $0x110] sm:$0xff]
    %v1906 = vld [vmem:[%s1870 + $0x118] sm:$0xff]
    %v1907 = vld [vmem:[%s1870 + $0x120] sm:$0xff]
    %v1908 = vld [vmem:[%s1870 + $0x128] sm:$0xff]
    %v1909 = vld [vmem:[%s1870 + $0x130] sm:$0xff]
    %v1910 = vld [vmem:[%s1870 + $0x138] sm:$0xff]
    %v1911 = vld [vmem:[%s1870 + $0x140] sm:$0xff]
    %v1912 = vld [vmem:[%s1870 + $0x148] sm:$0xff]
    %v1913 = vld [vmem:[%s1870 + $0x150] sm:$0xff]
    %v1914 = vld [vmem:[%s1870 + $0x158] sm:$0xff]
    %v1915 = vld [vmem:[%s1870 + $0x160] sm:$0xff]
    %v1916 = vld [vmem:[%s1870 + $0x168] sm:$0xff]
    %v1917 = vld [vmem:[%s1870 + $0x170] sm:$0xff]
    %v1918 = vld [vmem:[%s1870 + $0x178] sm:$0xff]
    %v1919 = vld [vmem:[%s1870 + $0x180] sm:$0xff]
    %v1920 = vld [vmem:[%s1870 + $0x188] sm:$0xff]
    %v1921 = vld [vmem:[%s1870 + $0x190] sm:$0xff]
    %v1922 = vld [vmem:[%s1870 + $0x198] sm:$0xff]
    %v1923 = vld [vmem:[%s1870 + $0x1a0] sm:$0xff]
    %v1924 = vld [vmem:[%s1870 + $0x1a8] sm:$0xff]
    %v1925 = vld [vmem:[%s1870 + $0x1b0] sm:$0xff]
    %v1926 = vld [vmem:[%s1870 + $0x1b8] sm:$0xff]
    %v1927 = vld [vmem:[%s1870 + $0x1c0] sm:$0xff]
    %v1928 = vld [vmem:[%s1870 + $0x1c8] sm:$0xff]
    %v1929 = vld [vmem:[%s1870 + $0x1d0] sm:$0xff]
    %v1930 = vld [vmem:[%s1870 + $0x1d8] sm:$0xff]
    %v1931 = vld [vmem:[%s1870 + $0x1e0] sm:$0xff]
    %v1932 = vld [vmem:[%s1870 + $0x1e8] sm:$0xff]
    %v1933 = vld [vmem:[%s1870 + $0x1f0] sm:$0xff]
    %v1934 = vld [vmem:[%s1870 + $0x1f8] sm:$0xff]
    %v1935 = vld [vmem:[%s1870 + $0x200] sm:$0xff]
    %v1936 = vld [vmem:[%s1870 + $0x208] sm:$0xff]
    %v1937 = vld [vmem:[%s1870 + $0x210] sm:$0xff]
    %v1938 = vld [vmem:[%s1870 + $0x218] sm:$0xff]
    %v1939 = vld [vmem:[%s1870 + $0x220] sm:$0xff]
    %v1940 = vld [vmem:[%s1870 + $0x228] sm:$0xff]
    %v1941 = vld [vmem:[%s1870 + $0x230] sm:$0xff]
    %v1942 = vld [vmem:[%s1870 + $0x238] sm:$0xff]
    %v1943 = vld [vmem:[%s1870 + $0x240] sm:$0xff]
    %v1944 = vld [vmem:[%s1870 + $0x248] sm:$0xff]
    %v1945 = vld [vmem:[%s1870 + $0x250] sm:$0xff]
    %v1946 = vld [vmem:[%s1870 + $0x258] sm:$0xff]
    %v1947 = vld [vmem:[%s1870 + $0x260] sm:$0xff]
    %v1948 = vld [vmem:[%s1870 + $0x268] sm:$0xff]
    %v1949 = vld [vmem:[%s1870 + $0x270] sm:$0xff]
    %v1950 = vld [vmem:[%s1870 + $0x278] sm:$0xff]
    %v1951 = vld [vmem:[%s1870 + $0x280] sm:$0xff]
    %v1952 = vld [vmem:[%s1870 + $0x288] sm:$0xff]
    %v1953 = vld [vmem:[%s1870 + $0x290] sm:$0xff]
    %v1954 = vld [vmem:[%s1870 + $0x298] sm:$0xff]
    %v1955 = vld [vmem:[%s1870 + $0x2a0] sm:$0xff]
    %v1956 = vld [vmem:[%s1870 + $0x2a8] sm:$0xff]
    %v1957 = vld [vmem:[%s1870 + $0x2b0] sm:$0xff]
    %v1958 = vld [vmem:[%s1870 + $0x2b8] sm:$0xff]
    %v1959 = vld [vmem:[%s1870 + $0x2c0] sm:$0xff]
    %v1960 = vld [vmem:[%s1870 + $0x2c8] sm:$0xff]
    %v1961 = vld [vmem:[%s1870 + $0x2d0] sm:$0xff]
    %v1962 = vld [vmem:[%s1870 + $0x2d8] sm:$0xff]
    %v1963 = vld [vmem:[%s1870 + $0x2e0] sm:$0xff]
    %v1964 = vld [vmem:[%s1870 + $0x2e8] sm:$0xff]
    %v1965 = vld [vmem:[%s1870 + $0x2f0] sm:$0xff]
    %v1966 = vld [vmem:[%s1870 + $0x2f8] sm:$0xff]
    %v1967 = vld [vmem:[%s1870 + $0x300] sm:$0xff]
    %v1968 = vld [vmem:[%s1870 + $0x308] sm:$0xff]
    %v1969 = vld [vmem:[%s1870 + $0x310] sm:$0xff]
    %v1970 = vld [vmem:[%s1870 + $0x318] sm:$0xff]
    %v1971 = vld [vmem:[%s1870 + $0x320] sm:$0xff]
    %v1972 = vld [vmem:[%s1870 + $0x328] sm:$0xff]
    %v1973 = vld [vmem:[%s1870 + $0x330] sm:$0xff]
    %v1974 = vld [vmem:[%s1870 + $0x338] sm:$0xff]
    %v1975 = vld [vmem:[%s1870 + $0x340] sm:$0xff]
    %v1976 = vld [vmem:[%s1870 + $0x348] sm:$0xff]
    %v1977 = vld [vmem:[%s1870 + $0x350] sm:$0xff]
    %v1978 = vld [vmem:[%s1870 + $0x358] sm:$0xff]
    %v1979 = vld [vmem:[%s1870 + $0x360] sm:$0xff]
    %v1980 = vld [vmem:[%s1870 + $0x368] sm:$0xff]
    %v1981 = vld [vmem:[%s1870 + $0x370] sm:$0xff]
    %v1982 = vld [vmem:[%s1870 + $0x378] sm:$0xff]
    %v1983 = vld [vmem:[%s1870 + $0x380] sm:$0xff]
    %v1984 = vld [vmem:[%s1870 + $0x388] sm:$0xff]
    %v1985 = vld [vmem:[%s1870 + $0x390] sm:$0xff]
    %v1986 = vld [vmem:[%s1870 + $0x398] sm:$0xff]
    %v1987 = vld [vmem:[%s1870 + $0x3a0] sm:$0xff]
    %v1988 = vld [vmem:[%s1870 + $0x3a8] sm:$0xff]
    %v1989 = vld [vmem:[%s1870 + $0x3b0] sm:$0xff]
    %v1990 = vld [vmem:[%s1870 + $0x3b8] sm:$0xff]
    %v1991 = vld [vmem:[%s1870 + $0x3c0] sm:$0xff]
    %v1992 = vld [vmem:[%s1870 + $0x3c8] sm:$0xff]
    %v1993 = vld [vmem:[%s1870 + $0x3d0] sm:$0xff]
    %v1994 = vld [vmem:[%s1870 + $0x3d8] sm:$0xff]
    %v1995 = vld [vmem:[%s1870 + $0x3e0] sm:$0xff]
    %v1996 = vld [vmem:[%s1870 + $0x3e8] sm:$0xff]
    %v1997 = vld [vmem:[%s1870 + $0x3f0] sm:$0xff]
    %v1998 = vld [vmem:[%s1870 + $0x3f8] sm:$0xff]
    %v1999 = vld [vmem:[%s1870 + $0x400] sm:$0xff]
    %v2000 = vld [vmem:[%s1870 + $0x408] sm:$0xff]
    %v2001 = vld [vmem:[%s1870 + $0x410] sm:$0xff]
    %v2002 = vld [vmem:[%s1870 + $0x418] sm:$0xff]
    %v2003 = vld [vmem:[%s1870 + $0x420] sm:$0xff]
    %v2004 = vld [vmem:[%s1870 + $0x428] sm:$0xff]
    %v2005 = vld [vmem:[%s1870 + $0x430] sm:$0xff]
    %v2006 = vld [vmem:[%s1870 + $0x438] sm:$0xff]
    %v2007 = vld [vmem:[%s1870 + $0x440] sm:$0xff]
    %v2008 = vld [vmem:[%s1870 + $0x448] sm:$0xff]
    %v2009 = vld [vmem:[%s1870 + $0x450] sm:$0xff]
    %v2010 = vld [vmem:[%s1870 + $0x458] sm:$0xff]
    %v2011 = vld [vmem:[%s1870 + $0x460] sm:$0xff]
    %v2012 = vld [vmem:[%s1870 + $0x468] sm:$0xff]
    %v2013 = vld [vmem:[%s1870 + $0x470] sm:$0xff]
    %v2014 = vld [vmem:[%s1870 + $0x478] sm:$0xff]
    %v2015 = vld [vmem:[%s1870 + $0x480] sm:$0xff]
    %v2016 = vld [vmem:[%s1870 + $0x488] sm:$0xff]
    %v2017 = vld [vmem:[%s1870 + $0x490] sm:$0xff]
    %v2018 = vld [vmem:[%s1870 + $0x498] sm:$0xff]
    %v2019 = vld [vmem:[%s1870 + $0x4a0] sm:$0xff]
    %v2020 = vld [vmem:[%s1870 + $0x4a8] sm:$0xff]
    %v2021 = vld [vmem:[%s1870 + $0x4b0] sm:$0xff]
    %v2022 = vld [vmem:[%s1870 + $0x4b8] sm:$0xff]
    %v2023 = vld [vmem:[%s1870 + $0x4c0] sm:$0xff]
    %v2024 = vld [vmem:[%s1870 + $0x4c8] sm:$0xff]
    %v2025 = vld [vmem:[%s1870 + $0x4d0] sm:$0xff]
    %v2026 = vld [vmem:[%s1870 + $0x4d8] sm:$0xff]
    %v2027 = vld [vmem:[%s1870 + $0x4e0] sm:$0xff]
    %v2028 = vld [vmem:[%s1870 + $0x4e8] sm:$0xff]
    %v2029 = vld [vmem:[%s1870 + $0x4f0] sm:$0xff]
    %v2030 = vld [vmem:[%s1870 + $0x4f8] sm:$0xff]
    %v2031 = vld [vmem:[%s1870 + $0x500] sm:$0xff]
    %v2032 = vld [vmem:[%s1870 + $0x508] sm:$0xff]
    %v2033 = vld [vmem:[%s1870 + $0x510] sm:$0xff]
    %v2034 = vld [vmem:[%s1870 + $0x518] sm:$0xff]
    %v2035 = vld [vmem:[%s1870 + $0x520] sm:$0xff]
    %v2036 = vld [vmem:[%s1870 + $0x528] sm:$0xff]
    %v2037 = vld [vmem:[%s1870 + $0x530] sm:$0xff]
    %v2038 = vld [vmem:[%s1870 + $0x538] sm:$0xff]
    %v2039 = vld [vmem:[%s1870 + $0x540] sm:$0xff]
    %v2040 = vld [vmem:[%s1870 + $0x548] sm:$0xff]
    %v2041 = vld [vmem:[%s1870 + $0x550] sm:$0xff]
    %v2042 = vld [vmem:[%s1870 + $0x558] sm:$0xff]
    %v2043 = vld [vmem:[%s1870 + $0x560] sm:$0xff]
    %v2044 = vld [vmem:[%s1870 + $0x568] sm:$0xff]
    %v2045 = vld [vmem:[%s1870 + $0x570] sm:$0xff]
    %v2046 = vld [vmem:[%s1870 + $0x578] sm:$0xff]
    %v2047 = vld [vmem:[%s1870 + $0x580] sm:$0xff]
    %v2048 = vld [vmem:[%s1870 + $0x588] sm:$0xff]
    %v2049 = vld [vmem:[%s1870 + $0x590] sm:$0xff]
    %v2050 = vld [vmem:[%s1870 + $0x598] sm:$0xff]
    %v2051 = vld [vmem:[%s1870 + $0x5a0] sm:$0xff]
    %v2052 = vld [vmem:[%s1870 + $0x5a8] sm:$0xff]
    %v2053 = vld [vmem:[%s1870 + $0x5b0] sm:$0xff]
    %v2054 = vld [vmem:[%s1870 + $0x5b8] sm:$0xff]
    %v2055 = vld [vmem:[%s1870 + $0x5c0] sm:$0xff]
    %v2056 = vld [vmem:[%s1870 + $0x5c8] sm:$0xff]
    %v2057 = vld [vmem:[%s1870 + $0x5d0] sm:$0xff]
    %v2058 = vld [vmem:[%s1870 + $0x5d8] sm:$0xff]
    %v2059 = vld [vmem:[%s1870 + $0x5e0] sm:$0xff]
    %v2060 = vld [vmem:[%s1870 + $0x5e8] sm:$0xff]
    %v2061 = vld [vmem:[%s1870 + $0x5f0] sm:$0xff]
    %v2062 = vld [vmem:[%s1870 + $0x5f8] sm:$0xff]
    %v2063 = vld [vmem:[%s1870 + $0x600] sm:$0xff]
    %v2064 = vld [vmem:[%s1870 + $0x608] sm:$0xff]
    %v2065 = vld [vmem:[%s1870 + $0x610] sm:$0xff]
    %v2066 = vld [vmem:[%s1870 + $0x618] sm:$0xff]
    %v2067 = vld [vmem:[%s1870 + $0x620] sm:$0xff]
    %v2068 = vld [vmem:[%s1870 + $0x628] sm:$0xff]
    %v2069 = vld [vmem:[%s1870 + $0x630] sm:$0xff]
    %v2070 = vld [vmem:[%s1870 + $0x638] sm:$0xff]
    %v2071 = vld [vmem:[%s1870 + $0x640] sm:$0xff]
    %v2072 = vld [vmem:[%s1870 + $0x648] sm:$0xff]
    %v2073 = vld [vmem:[%s1870 + $0x650] sm:$0xff]
    %v2074 = vld [vmem:[%s1870 + $0x658] sm:$0xff]
    %v2075 = vld [vmem:[%s1870 + $0x660] sm:$0xff]
    %v2076 = vld [vmem:[%s1870 + $0x668] sm:$0xff]
    %v2077 = vld [vmem:[%s1870 + $0x670] sm:$0xff]
    %v2078 = vld [vmem:[%s1870 + $0x678] sm:$0xff]
    %v2079 = vld [vmem:[%s1870 + $0x680] sm:$0xff]
    %v2080 = vld [vmem:[%s1870 + $0x688] sm:$0xff]
    %v2081 = vld [vmem:[%s1870 + $0x690] sm:$0xff]
    %v2082 = vld [vmem:[%s1870 + $0x698] sm:$0xff]
    %v2083 = vld [vmem:[%s1870 + $0x6a0] sm:$0xff]
    %v2084 = vld [vmem:[%s1870 + $0x6a8] sm:$0xff]
    %v2085 = vld [vmem:[%s1870 + $0x6b0] sm:$0xff]
    %v2086 = vld [vmem:[%s1870 + $0x6b8] sm:$0xff]
    %v2087 = vld [vmem:[%s1870 + $0x6c0] sm:$0xff]
    %v2088 = vld [vmem:[%s1870 + $0x6c8] sm:$0xff]
    %v2089 = vld [vmem:[%s1870 + $0x6d0] sm:$0xff]
    %v2090 = vld [vmem:[%s1870 + $0x6d8] sm:$0xff]
    %v2091 = vld [vmem:[%s1870 + $0x6e0] sm:$0xff]
    %v2092 = vld [vmem:[%s1870 + $0x6e8] sm:$0xff]
    %v2093 = vld [vmem:[%s1870 + $0x6f0] sm:$0xff]
    %v2094 = vld [vmem:[%s1870 + $0x6f8] sm:$0xff]
    %v2095 = vld [vmem:[%s1870 + $0x700] sm:$0xff]
    %v2096 = vld [vmem:[%s1870 + $0x708] sm:$0xff]
    %v2097 = vld [vmem:[%s1870 + $0x710] sm:$0xff]
    %v2098 = vld [vmem:[%s1870 + $0x718] sm:$0xff]
    %v2099 = vld [vmem:[%s1870 + $0x720] sm:$0xff]
    %v2100 = vld [vmem:[%s1870 + $0x728] sm:$0xff]
    %v2101 = vld [vmem:[%s1870 + $0x730] sm:$0xff]
    %v2102 = vld [vmem:[%s1870 + $0x738] sm:$0xff]
    %v2103 = vld [vmem:[%s1870 + $0x740] sm:$0xff]
    %v2104 = vld [vmem:[%s1870 + $0x748] sm:$0xff]
    %v2105 = vld [vmem:[%s1870 + $0x750] sm:$0xff]
    %v2106 = vld [vmem:[%s1870 + $0x758] sm:$0xff]
    %v2107 = vld [vmem:[%s1870 + $0x760] sm:$0xff]
    %v2108 = vld [vmem:[%s1870 + $0x768] sm:$0xff]
    %v2109 = vld [vmem:[%s1870 + $0x770] sm:$0xff]
    %v2110 = vld [vmem:[%s1870 + $0x778] sm:$0xff]
    %v2111 = vld [vmem:[%s1870 + $0x780] sm:$0xff]
    %v2112 = vld [vmem:[%s1870 + $0x788] sm:$0xff]
    %v2113 = vld [vmem:[%s1870 + $0x790] sm:$0xff]
    %v2114 = vld [vmem:[%s1870 + $0x798] sm:$0xff]
    %v2115 = vld [vmem:[%s1870 + $0x7a0] sm:$0xff]
    %v2116 = vld [vmem:[%s1870 + $0x7a8] sm:$0xff]
    %v2117 = vld [vmem:[%s1870 + $0x7b0] sm:$0xff]
    %v2118 = vld [vmem:[%s1870 + $0x7b8] sm:$0xff]
    %v2119 = vld [vmem:[%s1870 + $0x7c0] sm:$0xff]
    %v2120 = vld [vmem:[%s1870 + $0x7c8] sm:$0xff]
    %v2121 = vld [vmem:[%s1870 + $0x7d0] sm:$0xff]
    %v2122 = vld [vmem:[%s1870 + $0x7d8] sm:$0xff]
    %v2123 = vld [vmem:[%s1870 + $0x7e0] sm:$0xff]
    %v2124 = vld [vmem:[%s1870 + $0x7e8] sm:$0xff]
    %v2125 = vld [vmem:[%s1870 + $0x7f0] sm:$0xff]
    %v2126 = vld [vmem:[%s1870 + $0x7f8] sm:$0xff]
    %2127 = vmatpush.msra.mxu0 %v1931
    %2128 = vmatpush.msra.mxu0 %v1927
    %2129 = vmatpush.msra.mxu0 %v1923
    %2130 = vmatpush.msra.mxu0 %v1919
    %2131 = vmatpush.msra.mxu0 %v1915
    %2132 = vmatpush.msra.mxu0 %v1911
    %2133 = vmatpush.msra.mxu0 %v1907
    %2134 = vmatpush.msra.mxu0 %v1903
    %2135 = vmatpush.msra.mxu0 %v1899
    %2136 = vmatpush.msra.mxu0 %v1895
    %2137 = vmatpush.msra.mxu0 %v1891
    %2138 = vmatpush.msra.mxu0 %v1887
    %2139 = vmatpush.msra.mxu0 %v1883
    %2140 = vmatpush.msra.mxu0 %v1879
    %2141 = vmatpush.msra.mxu0 %v1875
    %2142 = vmatpush.msra.mxu0 %v1871
    %2143 = vmatmul.f32.gmra.mxu0 %v1816
    %v2144 = vpop.f32.mrf.mxu0
    %v2145 = vadd.f32 0.0, %v2144
    %2146 = vmatmul.f32.gmra.mxu0 %v1827
    %v2147 = vpop.f32.mrf.mxu0
    %v2148 = vadd.f32 0.0, %v2147
    %2149 = vmatmul.f32.gmra.mxu0 %v1836
    %v2150 = vpop.f32.mrf.mxu0
    %v2151 = vadd.f32 0.0, %v2150
    %2152 = vmatmul.f32.gmra.mxu0 %v1847
    %v2153 = vpop.f32.mrf.mxu0
    %v2154 = vadd.f32 0.0, %v2153
    %2155 = vdwg.mxu0
    %2156 = vmatpush.msra.mxu0 %v1995
    %2157 = vmatpush.msra.mxu0 %v1991
    %2158 = vmatpush.msra.mxu0 %v1987
    %2159 = vmatpush.msra.mxu0 %v1983
    %2160 = vmatpush.msra.mxu0 %v1979
    %2161 = vmatpush.msra.mxu0 %v1975
    %2162 = vmatpush.msra.mxu0 %v1971
    %2163 = vmatpush.msra.mxu0 %v1967
    %2164 = vmatpush.msra.mxu0 %v1963
    %2165 = vmatpush.msra.mxu0 %v1959
    %2166 = vmatpush.msra.mxu0 %v1955
    %2167 = vmatpush.msra.mxu0 %v1951
    %2168 = vmatpush.msra.mxu0 %v1947
    %2169 = vmatpush.msra.mxu0 %v1943
    %2170 = vmatpush.msra.mxu0 %v1939
    %2171 = vmatpush.msra.mxu0 %v1935
    %2172 = vmatmul.f32.gmra.mxu0 %v1819
    %v2173 = vpop.f32.mrf.mxu0
    %v2174 = vadd.f32 %v2145, %v2173
    %2175 = vmatmul.f32.gmra.mxu0 %v1829
    %v2176 = vpop.f32.mrf.mxu0
    %v2177 = vadd.f32 %v2148, %v2176
    %2178 = vmatmul.f32.gmra.mxu0 %v1839
    %v2179 = vpop.f32.mrf.mxu0
    %v2180 = vadd.f32 %v2151, %v2179
    %2181 = vmatmul.f32.gmra.mxu0 %v1849
    %v2182 = vpop.f32.mrf.mxu0
    %v2183 = vadd.f32 %v2154, %v2182
    %2184 = vdwg.mxu0
    %2185 = vmatpush.msra.mxu0 %v2059
    %2186 = vmatpush.msra.mxu0 %v2055
    %2187 = vmatpush.msra.mxu0 %v2051
    %2188 = vmatpush.msra.mxu0 %v2047
    %2189 = vmatpush.msra.mxu0 %v2043
    %2190 = vmatpush.msra.mxu0 %v2039
    %2191 = vmatpush.msra.mxu0 %v2035
    %2192 = vmatpush.msra.mxu0 %v2031
    %2193 = vmatpush.msra.mxu0 %v2027
    %2194 = vmatpush.msra.mxu0 %v2023
    %2195 = vmatpush.msra.mxu0 %v2019
    %2196 = vmatpush.msra.mxu0 %v2015
    %2197 = vmatpush.msra.mxu0 %v2011
    %2198 = vmatpush.msra.mxu0 %v2007
    %2199 = vmatpush.msra.mxu0 %v2003
    %2200 = vmatpush.msra.mxu0 %v1999
    %2201 = vmatmul.f32.gmra.mxu0 %v1822
    %v2202 = vpop.f32.mrf.mxu0
    %v2203 = vadd.f32 %v2174, %v2202
    %2204 = vmatmul.f32.gmra.mxu0 %v1831
    %v2205 = vpop.f32.mrf.mxu0
    %v2206 = vadd.f32 %v2177, %v2205
    %2207 = vmatmul.f32.gmra.mxu0 %v1842
    %v2208 = vpop.f32.mrf.mxu0
    %v2209 = vadd.f32 %v2180, %v2208
    %2210 = vmatmul.f32.gmra.mxu0 %v1851
    %v2211 = vpop.f32.mrf.mxu0
    %v2212 = vadd.f32 %v2183, %v2211
    %2213 = vdwg.mxu0
    %2214 = vmatpush.msra.mxu0 %v2123
    %2215 = vmatpush.msra.mxu0 %v2119
    %2216 = vmatpush.msra.mxu0 %v2115
    %2217 = vmatpush.msra.mxu0 %v2111
    %2218 = vmatpush.msra.mxu0 %v2107
    %2219 = vmatpush.msra.mxu0 %v2103
    %2220 = vmatpush.msra.mxu0 %v2099
    %2221 = vmatpush.msra.mxu0 %v2095
    %2222 = vmatpush.msra.mxu0 %v2091
    %2223 = vmatpush.msra.mxu0 %v2087
    %2224 = vmatpush.msra.mxu0 %v2083
    %2225 = vmatpush.msra.mxu0 %v2079
    %2226 = vmatpush.msra.mxu0 %v2075
    %2227 = vmatpush.msra.mxu0 %v2071
    %2228 = vmatpush.msra.mxu0 %v2067
    %2229 = vmatpush.msra.mxu0 %v2063
    %2230 = vmatmul.f32.gmra.mxu0 %v1825
    %v2231 = vpop.f32.mrf.mxu0
    %v2232 = vadd.f32 %v2203, %v2231
    %2233 = vmatmul.f32.gmra.mxu0 %v1833
    %v2234 = vpop.f32.mrf.mxu0
    %v2235 = vadd.f32 %v2206, %v2234
    %2236 = vmatmul.f32.gmra.mxu0 %v1845
    %v2237 = vpop.f32.mrf.mxu0
    %v2238 = vadd.f32 %v2209, %v2237
    %2239 = vmatmul.f32.gmra.mxu0 %v1853
    %v2240 = vpop.f32.mrf.mxu0
    %v2241 = vadd.f32 %v2212, %v2240
    %2242 = vdwg.mxu0
    %2243 = vmatpush.msra.mxu0 %v1932
    %2244 = vmatpush.msra.mxu0 %v1928
    %2245 = vmatpush.msra.mxu0 %v1924
    %2246 = vmatpush.msra.mxu0 %v1920
    %2247 = vmatpush.msra.mxu0 %v1916
    %2248 = vmatpush.msra.mxu0 %v1912
    %2249 = vmatpush.msra.mxu0 %v1908
    %2250 = vmatpush.msra.mxu0 %v1904
    %2251 = vmatpush.msra.mxu0 %v1900
    %2252 = vmatpush.msra.mxu0 %v1896
    %2253 = vmatpush.msra.mxu0 %v1892
    %2254 = vmatpush.msra.mxu0 %v1888
    %2255 = vmatpush.msra.mxu0 %v1884
    %2256 = vmatpush.msra.mxu0 %v1880
    %2257 = vmatpush.msra.mxu0 %v1876
    %2258 = vmatpush.msra.mxu0 %v1872
    %2259 = vmatmul.f32.gmra.mxu0 %v1816
    %v2260 = vpop.f32.mrf.mxu0
    %v2261 = vadd.f32 0.0, %v2260
    %2262 = vmatmul.f32.gmra.mxu0 %v1827
    %v2263 = vpop.f32.mrf.mxu0
    %v2264 = vadd.f32 0.0, %v2263
    %2265 = vmatmul.f32.gmra.mxu0 %v1836
    %v2266 = vpop.f32.mrf.mxu0
    %v2267 = vadd.f32 0.0, %v2266
    %2268 = vmatmul.f32.gmra.mxu0 %v1847
    %v2269 = vpop.f32.mrf.mxu0
    %v2270 = vadd.f32 0.0, %v2269
    %2271 = vdwg.mxu0
    %2272 = vmatpush.msra.mxu0 %v1996
    %2273 = vmatpush.msra.mxu0 %v1992
    %2274 = vmatpush.msra.mxu0 %v1988
    %2275 = vmatpush.msra.mxu0 %v1984
    %2276 = vmatpush.msra.mxu0 %v1980
    %2277 = vmatpush.msra.mxu0 %v1976
    %2278 = vmatpush.msra.mxu0 %v1972
    %2279 = vmatpush.msra.mxu0 %v1968
    %2280 = vmatpush.msra.mxu0 %v1964
    %2281 = vmatpush.msra.mxu0 %v1960
    %2282 = vmatpush.msra.mxu0 %v1956
    %2283 = vmatpush.msra.mxu0 %v1952
    %2284 = vmatpush.msra.mxu0 %v1948
    %2285 = vmatpush.msra.mxu0 %v1944
    %2286 = vmatpush.msra.mxu0 %v1940
    %2287 = vmatpush.msra.mxu0 %v1936
    %2288 = vmatmul.f32.gmra.mxu0 %v1819
    %v2289 = vpop.f32.mrf.mxu0
    %v2290 = vadd.f32 %v2261, %v2289
    %2291 = vmatmul.f32.gmra.mxu0 %v1829
    %v2292 = vpop.f32.mrf.mxu0
    %v2293 = vadd.f32 %v2264, %v2292
    %2294 = vmatmul.f32.gmra.mxu0 %v1839
    %v2295 = vpop.f32.mrf.mxu0
    %v2296 = vadd.f32 %v2267, %v2295
    %2297 = vmatmul.f32.gmra.mxu0 %v1849
    %v2298 = vpop.f32.mrf.mxu0
    %v2299 = vadd.f32 %v2270, %v2298
    %2300 = vdwg.mxu0
    %2301 = vmatpush.msra.mxu0 %v2060
    %2302 = vmatpush.msra.mxu0 %v2056
    %2303 = vmatpush.msra.mxu0 %v2052
    %2304 = vmatpush.msra.mxu0 %v2048
    %2305 = vmatpush.msra.mxu0 %v2044
    %2306 = vmatpush.msra.mxu0 %v2040
    %2307 = vmatpush.msra.mxu0 %v2036
    %2308 = vmatpush.msra.mxu0 %v2032
    %2309 = vmatpush.msra.mxu0 %v2028
    %2310 = vmatpush.msra.mxu0 %v2024
    %2311 = vmatpush.msra.mxu0 %v2020
    %2312 = vmatpush.msra.mxu0 %v2016
    %2313 = vmatpush.msra.mxu0 %v2012
    %2314 = vmatpush.msra.mxu0 %v2008
    %2315 = vmatpush.msra.mxu0 %v2004
    %2316 = vmatpush.msra.mxu0 %v2000
    %2317 = vmatmul.f32.gmra.mxu0 %v1822
    %v2318 = vpop.f32.mrf.mxu0
    %v2319 = vadd.f32 %v2290, %v2318
    %2320 = vmatmul.f32.gmra.mxu0 %v1831
    %v2321 = vpop.f32.mrf.mxu0
    %v2322 = vadd.f32 %v2293, %v2321
    %2323 = vmatmul.f32.gmra.mxu0 %v1842
    %v2324 = vpop.f32.mrf.mxu0
    %v2325 = vadd.f32 %v2296, %v2324
    %2326 = vmatmul.f32.gmra.mxu0 %v1851
    %v2327 = vpop.f32.mrf.mxu0
    %v2328 = vadd.f32 %v2299, %v2327
    %2329 = vdwg.mxu0
    %2330 = vmatpush.msra.mxu0 %v2124
    %2331 = vmatpush.msra.mxu0 %v2120
    %2332 = vmatpush.msra.mxu0 %v2116
    %2333 = vmatpush.msra.mxu0 %v2112
    %2334 = vmatpush.msra.mxu0 %v2108
    %2335 = vmatpush.msra.mxu0 %v2104
    %2336 = vmatpush.msra.mxu0 %v2100
    %2337 = vmatpush.msra.mxu0 %v2096
    %2338 = vmatpush.msra.mxu0 %v2092
    %2339 = vmatpush.msra.mxu0 %v2088
    %2340 = vmatpush.msra.mxu0 %v2084
    %2341 = vmatpush.msra.mxu0 %v2080
    %2342 = vmatpush.msra.mxu0 %v2076
    %2343 = vmatpush.msra.mxu0 %v2072
    %2344 = vmatpush.msra.mxu0 %v2068
    %2345 = vmatpush.msra.mxu0 %v2064
    %2346 = vmatmul.f32.gmra.mxu0 %v1825
    %v2347 = vpop.f32.mrf.mxu0
    %v2348 = vadd.f32 %v2319, %v2347
    %2349 = vmatmul.f32.gmra.mxu0 %v1833
    %v2350 = vpop.f32.mrf.mxu0
    %v2351 = vadd.f32 %v2322, %v2350
    %2352 = vmatmul.f32.gmra.mxu0 %v1845
    %v2353 = vpop.f32.mrf.mxu0
    %v2354 = vadd.f32 %v2325, %v2353
    %2355 = vmatmul.f32.gmra.mxu0 %v1853
    %v2356 = vpop.f32.mrf.mxu0
    %v2357 = vadd.f32 %v2328, %v2356
    %2358 = vdwg.mxu0
    %2359 = vmatpush.msra.mxu0 %v1933
    %2360 = vmatpush.msra.mxu0 %v1929
    %2361 = vmatpush.msra.mxu0 %v1925
    %2362 = vmatpush.msra.mxu0 %v1921
    %2363 = vmatpush.msra.mxu0 %v1917
    %2364 = vmatpush.msra.mxu0 %v1913
    %2365 = vmatpush.msra.mxu0 %v1909
    %2366 = vmatpush.msra.mxu0 %v1905
    %2367 = vmatpush.msra.mxu0 %v1901
    %2368 = vmatpush.msra.mxu0 %v1897
    %2369 = vmatpush.msra.mxu0 %v1893
    %2370 = vmatpush.msra.mxu0 %v1889
    %2371 = vmatpush.msra.mxu0 %v1885
    %2372 = vmatpush.msra.mxu0 %v1881
    %2373 = vmatpush.msra.mxu0 %v1877
    %2374 = vmatpush.msra.mxu0 %v1873
    %2375 = vmatmul.f32.gmra.mxu0 %v1816
    %v2376 = vpop.f32.mrf.mxu0
    %v2377 = vadd.f32 0.0, %v2376
    %2378 = vmatmul.f32.gmra.mxu0 %v1827
    %v2379 = vpop.f32.mrf.mxu0
    %v2380 = vadd.f32 0.0, %v2379
    %2381 = vmatmul.f32.gmra.mxu0 %v1836
    %v2382 = vpop.f32.mrf.mxu0
    %v2383 = vadd.f32 0.0, %v2382
    %2384 = vmatmul.f32.gmra.mxu0 %v1847
    %v2385 = vpop.f32.mrf.mxu0
    %v2386 = vadd.f32 0.0, %v2385
    %2387 = vdwg.mxu0
    %2388 = vmatpush.msra.mxu0 %v1997
    %2389 = vmatpush.msra.mxu0 %v1993
    %2390 = vmatpush.msra.mxu0 %v1989
    %2391 = vmatpush.msra.mxu0 %v1985
    %2392 = vmatpush.msra.mxu0 %v1981
    %2393 = vmatpush.msra.mxu0 %v1977
    %2394 = vmatpush.msra.mxu0 %v1973
    %2395 = vmatpush.msra.mxu0 %v1969
    %2396 = vmatpush.msra.mxu0 %v1965
    %2397 = vmatpush.msra.mxu0 %v1961
    %2398 = vmatpush.msra.mxu0 %v1957
    %2399 = vmatpush.msra.mxu0 %v1953
    %2400 = vmatpush.msra.mxu0 %v1949
    %2401 = vmatpush.msra.mxu0 %v1945
    %2402 = vmatpush.msra.mxu0 %v1941
    %2403 = vmatpush.msra.mxu0 %v1937
    %2404 = vmatmul.f32.gmra.mxu0 %v1819
    %v2405 = vpop.f32.mrf.mxu0
    %v2406 = vadd.f32 %v2377, %v2405
    %2407 = vmatmul.f32.gmra.mxu0 %v1829
    %v2408 = vpop.f32.mrf.mxu0
    %v2409 = vadd.f32 %v2380, %v2408
    %2410 = vmatmul.f32.gmra.mxu0 %v1839
    %v2411 = vpop.f32.mrf.mxu0
    %v2412 = vadd.f32 %v2383, %v2411
    %2413 = vmatmul.f32.gmra.mxu0 %v1849
    %v2414 = vpop.f32.mrf.mxu0
    %v2415 = vadd.f32 %v2386, %v2414
    %2416 = vdwg.mxu0
    %2417 = vmatpush.msra.mxu0 %v2061
    %2418 = vmatpush.msra.mxu0 %v2057
    %2419 = vmatpush.msra.mxu0 %v2053
    %2420 = vmatpush.msra.mxu0 %v2049
    %2421 = vmatpush.msra.mxu0 %v2045
    %2422 = vmatpush.msra.mxu0 %v2041
    %2423 = vmatpush.msra.mxu0 %v2037
    %2424 = vmatpush.msra.mxu0 %v2033
    %2425 = vmatpush.msra.mxu0 %v2029
    %2426 = vmatpush.msra.mxu0 %v2025
    %2427 = vmatpush.msra.mxu0 %v2021
    %2428 = vmatpush.msra.mxu0 %v2017
    %2429 = vmatpush.msra.mxu0 %v2013
    %2430 = vmatpush.msra.mxu0 %v2009
    %2431 = vmatpush.msra.mxu0 %v2005
    %2432 = vmatpush.msra.mxu0 %v2001
    %2433 = vmatmul.f32.gmra.mxu0 %v1822
    %v2434 = vpop.f32.mrf.mxu0
    %v2435 = vadd.f32 %v2406, %v2434
    %2436 = vmatmul.f32.gmra.mxu0 %v1831
    %v2437 = vpop.f32.mrf.mxu0
    %v2438 = vadd.f32 %v2409, %v2437
    %2439 = vmatmul.f32.gmra.mxu0 %v1842
    %v2440 = vpop.f32.mrf.mxu0
    %v2441 = vadd.f32 %v2412, %v2440
    %2442 = vmatmul.f32.gmra.mxu0 %v1851
    %v2443 = vpop.f32.mrf.mxu0
    %v2444 = vadd.f32 %v2415, %v2443
    %2445 = vdwg.mxu0
    %2446 = vmatpush.msra.mxu0 %v2125
    %2447 = vmatpush.msra.mxu0 %v2121
    %2448 = vmatpush.msra.mxu0 %v2117
    %2449 = vmatpush.msra.mxu0 %v2113
    %2450 = vmatpush.msra.mxu0 %v2109
    %2451 = vmatpush.msra.mxu0 %v2105
    %2452 = vmatpush.msra.mxu0 %v2101
    %2453 = vmatpush.msra.mxu0 %v2097
    %2454 = vmatpush.msra.mxu0 %v2093
    %2455 = vmatpush.msra.mxu0 %v2089
    %2456 = vmatpush.msra.mxu0 %v2085
    %2457 = vmatpush.msra.mxu0 %v2081
    %2458 = vmatpush.msra.mxu0 %v2077
    %2459 = vmatpush.msra.mxu0 %v2073
    %2460 = vmatpush.msra.mxu0 %v2069
    %2461 = vmatpush.msra.mxu0 %v2065
    %2462 = vmatmul.f32.gmra.mxu0 %v1825
    %v2463 = vpop.f32.mrf.mxu0
    %v2464 = vadd.f32 %v2435, %v2463
    %2465 = vmatmul.f32.gmra.mxu0 %v1833
    %v2466 = vpop.f32.mrf.mxu0
    %v2467 = vadd.f32 %v2438, %v2466
    %2468 = vmatmul.f32.gmra.mxu0 %v1845
    %v2469 = vpop.f32.mrf.mxu0
    %v2470 = vadd.f32 %v2441, %v2469
    %2471 = vmatmul.f32.gmra.mxu0 %v1853
    %v2472 = vpop.f32.mrf.mxu0
    %v2473 = vadd.f32 %v2444, %v2472
    %2474 = vdwg.mxu0
    %2475 = vmatpush.msra.mxu0 %v1934
    %2476 = vmatpush.msra.mxu0 %v1930
    %2477 = vmatpush.msra.mxu0 %v1926
    %2478 = vmatpush.msra.mxu0 %v1922
    %2479 = vmatpush.msra.mxu0 %v1918
    %2480 = vmatpush.msra.mxu0 %v1914
    %2481 = vmatpush.msra.mxu0 %v1910
    %2482 = vmatpush.msra.mxu0 %v1906
    %2483 = vmatpush.msra.mxu0 %v1902
    %2484 = vmatpush.msra.mxu0 %v1898
    %2485 = vmatpush.msra.mxu0 %v1894
    %2486 = vmatpush.msra.mxu0 %v1890
    %2487 = vmatpush.msra.mxu0 %v1886
    %2488 = vmatpush.msra.mxu0 %v1882
    %2489 = vmatpush.msra.mxu0 %v1878
    %2490 = vmatpush.msra.mxu0 %v1874
    %2491 = vmatmul.f32.gmra.mxu0 %v1816
    %v2492 = vpop.f32.mrf.mxu0
    %v2493 = vadd.f32 0.0, %v2492
    %2494 = vmatmul.f32.gmra.mxu0 %v1827
    %v2495 = vpop.f32.mrf.mxu0
    %v2496 = vadd.f32 0.0, %v2495
    %2497 = vmatmul.f32.gmra.mxu0 %v1836
    %v2498 = vpop.f32.mrf.mxu0
    %v2499 = vadd.f32 0.0, %v2498
    %2500 = vmatmul.f32.gmra.mxu0 %v1847
    %v2501 = vpop.f32.mrf.mxu0
    %v2502 = vadd.f32 0.0, %v2501
    %2503 = vdwg.mxu0
    %2504 = vmatpush.msra.mxu0 %v1998
    %2505 = vmatpush.msra.mxu0 %v1994
    %2506 = vmatpush.msra.mxu0 %v1990
    %2507 = vmatpush.msra.mxu0 %v1986
    %2508 = vmatpush.msra.mxu0 %v1982
    %2509 = vmatpush.msra.mxu0 %v1978
    %2510 = vmatpush.msra.mxu0 %v1974
    %2511 = vmatpush.msra.mxu0 %v1970
    %2512 = vmatpush.msra.mxu0 %v1966
    %2513 = vmatpush.msra.mxu0 %v1962
    %2514 = vmatpush.msra.mxu0 %v1958
    %2515 = vmatpush.msra.mxu0 %v1954
    %2516 = vmatpush.msra.mxu0 %v1950
    %2517 = vmatpush.msra.mxu0 %v1946
    %2518 = vmatpush.msra.mxu0 %v1942
    %2519 = vmatpush.msra.mxu0 %v1938
    %2520 = vmatmul.f32.gmra.mxu0 %v1819
    %v2521 = vpop.f32.mrf.mxu0
    %v2522 = vadd.f32 %v2493, %v2521
    %2523 = vmatmul.f32.gmra.mxu0 %v1829
    %v2524 = vpop.f32.mrf.mxu0
    %v2525 = vadd.f32 %v2496, %v2524
    %2526 = vmatmul.f32.gmra.mxu0 %v1839
    %v2527 = vpop.f32.mrf.mxu0
    %v2528 = vadd.f32 %v2499, %v2527
    %2529 = vmatmul.f32.gmra.mxu0 %v1849
    %v2530 = vpop.f32.mrf.mxu0
    %v2531 = vadd.f32 %v2502, %v2530
    %2532 = vdwg.mxu0
    %2533 = vmatpush.msra.mxu0 %v2062
    %2534 = vmatpush.msra.mxu0 %v2058
    %2535 = vmatpush.msra.mxu0 %v2054
    %2536 = vmatpush.msra.mxu0 %v2050
    %2537 = vmatpush.msra.mxu0 %v2046
    %2538 = vmatpush.msra.mxu0 %v2042
    %2539 = vmatpush.msra.mxu0 %v2038
    %2540 = vmatpush.msra.mxu0 %v2034
    %2541 = vmatpush.msra.mxu0 %v2030
    %2542 = vmatpush.msra.mxu0 %v2026
    %2543 = vmatpush.msra.mxu0 %v2022
    %2544 = vmatpush.msra.mxu0 %v2018
    %2545 = vmatpush.msra.mxu0 %v2014
    %2546 = vmatpush.msra.mxu0 %v2010
    %2547 = vmatpush.msra.mxu0 %v2006
    %2548 = vmatpush.msra.mxu0 %v2002
    %2549 = vmatmul.f32.gmra.mxu0 %v1822
    %v2550 = vpop.f32.mrf.mxu0
    %v2551 = vadd.f32 %v2522, %v2550
    %2552 = vmatmul.f32.gmra.mxu0 %v1831
    %v2553 = vpop.f32.mrf.mxu0
    %v2554 = vadd.f32 %v2525, %v2553
    %2555 = vmatmul.f32.gmra.mxu0 %v1842
    %v2556 = vpop.f32.mrf.mxu0
    %v2557 = vadd.f32 %v2528, %v2556
    %2558 = vmatmul.f32.gmra.mxu0 %v1851
    %v2559 = vpop.f32.mrf.mxu0
    %v2560 = vadd.f32 %v2531, %v2559
    %2561 = vdwg.mxu0
    %2562 = vmatpush.msra.mxu0 %v2126
    %2563 = vmatpush.msra.mxu0 %v2122
    %2564 = vmatpush.msra.mxu0 %v2118
    %2565 = vmatpush.msra.mxu0 %v2114
    %2566 = vmatpush.msra.mxu0 %v2110
    %2567 = vmatpush.msra.mxu0 %v2106
    %2568 = vmatpush.msra.mxu0 %v2102
    %2569 = vmatpush.msra.mxu0 %v2098
    %2570 = vmatpush.msra.mxu0 %v2094
    %2571 = vmatpush.msra.mxu0 %v2090
    %2572 = vmatpush.msra.mxu0 %v2086
    %2573 = vmatpush.msra.mxu0 %v2082
    %2574 = vmatpush.msra.mxu0 %v2078
    %2575 = vmatpush.msra.mxu0 %v2074
    %2576 = vmatpush.msra.mxu0 %v2070
    %2577 = vmatpush.msra.mxu0 %v2066
    %2578 = vmatmul.f32.gmra.mxu0 %v1825
    %v2579 = vpop.f32.mrf.mxu0
    %v2580 = vadd.f32 %v2551, %v2579
    %2581 = vmatmul.f32.gmra.mxu0 %v1833
    %v2582 = vpop.f32.mrf.mxu0
    %v2583 = vadd.f32 %v2554, %v2582
    %2584 = vmatmul.f32.gmra.mxu0 %v1845
    %v2585 = vpop.f32.mrf.mxu0
    %v2586 = vadd.f32 %v2557, %v2585
    %2587 = vmatmul.f32.gmra.mxu0 %v1853
    %v2588 = vpop.f32.mrf.mxu0
    %v2589 = vadd.f32 %v2560, %v2588
    %2590 = vdwg.mxu0
    %v2591 = vadd.f32 %v1422, %v2232
    %v2592 = vadd.f32 %v1538, %v2348
    %v2593 = vadd.f32 %v1654, %v2464
    %v2594 = vadd.f32 %v1770, %v2580
    %v2595 = vadd.f32 %v1425, %v2235
    %v2596 = vadd.f32 %v1541, %v2351
    %v2597 = vadd.f32 %v1657, %v2467
    %v2598 = vadd.f32 %v1773, %v2583
    %v2599 = vadd.f32 %v1428, %v2238
    %v2600 = vadd.f32 %v1544, %v2354
    %v2601 = vadd.f32 %v1660, %v2470
    %v2602 = vadd.f32 %v1776, %v2586
    %v2603 = vadd.f32 %v1431, %v2241
    %v2604 = vadd.f32 %v1547, %v2357
    %v2605 = vadd.f32 %v1663, %v2473
    %v2606 = vadd.f32 %v1779, %v2589
    %v2607 = vld [vmem:[%s2] sm:$0xff]
    %v2608 = vld [vmem:[%s2 + $0x8] sm:$0xff]
    %v2609 = vld [vmem:[%s2 + $0x10] sm:$0xff]
    %v2610 = vld [vmem:[%s2 + $0x18] sm:$0xff]
    %v2611 = vld [vmem:[%s2 + $0x20] sm:$0xff]
    %v2612 = vld [vmem:[%s2 + $0x28] sm:$0xff]
    %v2613 = vld [vmem:[%s2 + $0x30] sm:$0xff]
    %v2614 = vld [vmem:[%s2 + $0x38] sm:$0xff]
    %v2615 = vld [vmem:[%s2 + $0x40] sm:$0xff]
    %v2616 = vld [vmem:[%s2 + $0x48] sm:$0xff]
    %v2617 = vld [vmem:[%s2 + $0x50] sm:$0xff]
    %v2618 = vld [vmem:[%s2 + $0x58] sm:$0xff]
    %v2619 = vld [vmem:[%s2 + $0x60] sm:$0xff]
    %v2620 = vld [vmem:[%s2 + $0x68] sm:$0xff]
    %v2621 = vld [vmem:[%s2 + $0x70] sm:$0xff]
    %v2622 = vld [vmem:[%s2 + $0x78] sm:$0xff]
    %v2623 = vld [vmem:[%s2 + $0x80] sm:$0xff]
    %v2624 = vld [vmem:[%s2 + $0x88] sm:$0xff]
    %v2625 = vld [vmem:[%s2 + $0x90] sm:$0xff]
    %v2626 = vld [vmem:[%s2 + $0x98] sm:$0xff]
    %v2627 = vld [vmem:[%s2 + $0xa0] sm:$0xff]
    %v2628 = vld [vmem:[%s2 + $0xa8] sm:$0xff]
    %v2629 = vld [vmem:[%s2 + $0xb0] sm:$0xff]
    %v2630 = vld [vmem:[%s2 + $0xb8] sm:$0xff]
    %v2631 = vld [vmem:[%s2 + $0xc0] sm:$0xff]
    %v2632 = vld [vmem:[%s2 + $0xc8] sm:$0xff]
    %v2633 = vld [vmem:[%s2 + $0xd0] sm:$0xff]
    %v2634 = vld [vmem:[%s2 + $0xd8] sm:$0xff]
    %v2635 = vld [vmem:[%s2 + $0xe0] sm:$0xff]
    %v2636 = vld [vmem:[%s2 + $0xe8] sm:$0xff]
    %v2637 = vld [vmem:[%s2 + $0xf0] sm:$0xff]
    %v2638 = vld [vmem:[%s2 + $0xf8] sm:$0xff]
    %v2639 = vld [vmem:[%s2 + $0x100] sm:$0xff]
    %v2640 = vld [vmem:[%s2 + $0x108] sm:$0xff]
    %v2641 = vld [vmem:[%s2 + $0x110] sm:$0xff]
    %v2642 = vld [vmem:[%s2 + $0x118] sm:$0xff]
    %v2643 = vld [vmem:[%s2 + $0x120] sm:$0xff]
    %v2644 = vld [vmem:[%s2 + $0x128] sm:$0xff]
    %v2645 = vld [vmem:[%s2 + $0x130] sm:$0xff]
    %v2646 = vld [vmem:[%s2 + $0x138] sm:$0xff]
    %v2647 = vld [vmem:[%s2 + $0x140] sm:$0xff]
    %v2648 = vld [vmem:[%s2 + $0x148] sm:$0xff]
    %v2649 = vld [vmem:[%s2 + $0x150] sm:$0xff]
    %v2650 = vld [vmem:[%s2 + $0x158] sm:$0xff]
    %v2651 = vld [vmem:[%s2 + $0x160] sm:$0xff]
    %v2652 = vld [vmem:[%s2 + $0x168] sm:$0xff]
    %v2653 = vld [vmem:[%s2 + $0x170] sm:$0xff]
    %v2654 = vld [vmem:[%s2 + $0x178] sm:$0xff]
    %v2655 = vld [vmem:[%s2 + $0x180] sm:$0xff]
    %v2656 = vld [vmem:[%s2 + $0x188] sm:$0xff]
    %v2657 = vld [vmem:[%s2 + $0x190] sm:$0xff]
    %v2658 = vld [vmem:[%s2 + $0x198] sm:$0xff]
    %v2659 = vld [vmem:[%s2 + $0x1a0] sm:$0xff]
    %v2660 = vld [vmem:[%s2 + $0x1a8] sm:$0xff]
    %v2661 = vld [vmem:[%s2 + $0x1b0] sm:$0xff]
    %v2662 = vld [vmem:[%s2 + $0x1b8] sm:$0xff]
    %v2663 = vld [vmem:[%s2 + $0x1c0] sm:$0xff]
    %v2664 = vld [vmem:[%s2 + $0x1c8] sm:$0xff]
    %v2665 = vld [vmem:[%s2 + $0x1d0] sm:$0xff]
    %v2666 = vld [vmem:[%s2 + $0x1d8] sm:$0xff]
    %v2667 = vld [vmem:[%s2 + $0x1e0] sm:$0xff]
    %v2668 = vld [vmem:[%s2 + $0x1e8] sm:$0xff]
    %v2669 = vld [vmem:[%s2 + $0x1f0] sm:$0xff]
    %v2670 = vld [vmem:[%s2 + $0x1f8] sm:$0xff]
    %v2671 = vld [vmem:[#allocation8] sm:$0xff]
    %v2672 = vld [vmem:[#allocation8 + $0x8] sm:$0xff]
    %v2673 = vld [vmem:[#allocation8 + $0x10] sm:$0xff]
    %v2674 = vld [vmem:[#allocation8 + $0x18] sm:$0xff]
    %v2675 = vld [vmem:[#allocation8 + $0x20] sm:$0xff]
    %v2676 = vld [vmem:[#allocation8 + $0x28] sm:$0xff]
    %v2677 = vld [vmem:[#allocation8 + $0x30] sm:$0xff]
    %v2678 = vld [vmem:[#allocation8 + $0x38] sm:$0xff]
    %v2679 = vld [vmem:[#allocation8 + $0x40] sm:$0xff]
    %v2680 = vld [vmem:[#allocation8 + $0x48] sm:$0xff]
    %v2681 = vld [vmem:[#allocation8 + $0x50] sm:$0xff]
    %v2682 = vld [vmem:[#allocation8 + $0x58] sm:$0xff]
    %v2683 = vld [vmem:[#allocation8 + $0x60] sm:$0xff]
    %v2684 = vld [vmem:[#allocation8 + $0x68] sm:$0xff]
    %v2685 = vld [vmem:[#allocation8 + $0x70] sm:$0xff]
    %v2686 = vld [vmem:[#allocation8 + $0x78] sm:$0xff]
    %v2687 = vadd.f32 %v2591, %v2595
    %v2688 = vadd.f32 %v2687, %v2599
    %v2689 = vadd.f32 %v2688, %v2603
    %v2690 = vrot.slane %v2689, 4
    %v2691 = vadd.f32 %v2689, %v2690
    %v2692 = vrot.slane %v2691, 2
    %v2693 = vadd.f32 %v2691, %v2692
    %v2694 = vrot.slane %v2693, 1
    %v2695 = vadd.f32 %v2693, %v2694
    %v2696 = vadd.f32 %v2592, %v2596
    %v2697 = vadd.f32 %v2696, %v2600
    %v2698 = vadd.f32 %v2697, %v2604
    %v2699 = vrot.slane %v2698, 4
    %v2700 = vadd.f32 %v2698, %v2699
    %v2701 = vrot.slane %v2700, 2
    %v2702 = vadd.f32 %v2700, %v2701
    %v2703 = vrot.slane %v2702, 1
    %v2704 = vadd.f32 %v2702, %v2703
    %v2705 = vadd.f32 %v2593, %v2597
    %v2706 = vadd.f32 %v2705, %v2601
    %v2707 = vadd.f32 %v2706, %v2605
    %v2708 = vrot.slane %v2707, 4
    %v2709 = vadd.f32 %v2707, %v2708
    %v2710 = vrot.slane %v2709, 2
    %v2711 = vadd.f32 %v2709, %v2710
    %v2712 = vrot.slane %v2711, 1
    %v2713 = vadd.f32 %v2711, %v2712
    %v2714 = vadd.f32 %v2594, %v2598
    %v2715 = vadd.f32 %v2714, %v2602
    %v2716 = vadd.f32 %v2715, %v2606
    %v2717 = vrot.slane %v2716, 4
    %v2718 = vadd.f32 %v2716, %v2717
    %v2719 = vrot.slane %v2718, 2
    %v2720 = vadd.f32 %v2718, %v2719
    %v2721 = vrot.slane %v2720, 1
    %v2722 = vadd.f32 %v2720, %v2721
    %2723 = vmatpush.msra.mxu0 %v2622
    %2724 = vmatpush.msra.mxu0 %v2621
    %2725 = vmatpush.msra.mxu0 %v2620
    %2726 = vmatpush.msra.mxu0 %v2619
    %2727 = vmatpush.msra.mxu0 %v2618
    %2728 = vmatpush.msra.mxu0 %v2617
    %2729 = vmatpush.msra.mxu0 %v2616
    %2730 = vmatpush.msra.mxu0 %v2615
    %2731 = vmatpush.msra.mxu0 %v2614
    %2732 = vmatpush.msra.mxu0 %v2613
    %2733 = vmatpush.msra.mxu0 %v2612
    %2734 = vmatpush.msra.mxu0 %v2611
    %2735 = vmatpush.msra.mxu0 %v2610
    %2736 = vmatpush.msra.mxu0 %v2609
    %2737 = vmatpush.msra.mxu0 %v2608
    %2738 = vmatpush.msra.mxu0 %v2607
    %2739 = vmatmul.f32.gmra.mxu0 %v2695
    %v2740 = vpop.f32.mrf.mxu0
    %v2741 = vadd.f32 0.0, %v2740
    %2742 = vdwg.mxu0
    %2743 = vmatpush.msra.mxu0 %v2638
    %2744 = vmatpush.msra.mxu0 %v2637
    %2745 = vmatpush.msra.mxu0 %v2636
    %2746 = vmatpush.msra.mxu0 %v2635
    %2747 = vmatpush.msra.mxu0 %v2634
    %2748 = vmatpush.msra.mxu0 %v2633
    %2749 = vmatpush.msra.mxu0 %v2632
    %2750 = vmatpush.msra.mxu0 %v2631
    %2751 = vmatpush.msra.mxu0 %v2630
    %2752 = vmatpush.msra.mxu0 %v2629
    %2753 = vmatpush.msra.mxu0 %v2628
    %2754 = vmatpush.msra.mxu0 %v2627
    %2755 = vmatpush.msra.mxu0 %v2626
    %2756 = vmatpush.msra.mxu0 %v2625
    %2757 = vmatpush.msra.mxu0 %v2624
    %2758 = vmatpush.msra.mxu0 %v2623
    %2759 = vmatmul.f32.gmra.mxu0 %v2704
    %v2760 = vpop.f32.mrf.mxu0
    %v2761 = vadd.f32 %v2741, %v2760
    %2762 = vdwg.mxu0
    %2763 = vmatpush.msra.mxu0 %v2654
    %2764 = vmatpush.msra.mxu0 %v2653
    %2765 = vmatpush.msra.mxu0 %v2652
    %2766 = vmatpush.msra.mxu0 %v2651
    %2767 = vmatpush.msra.mxu0 %v2650
    %2768 = vmatpush.msra.mxu0 %v2649
    %2769 = vmatpush.msra.mxu0 %v2648
    %2770 = vmatpush.msra.mxu0 %v2647
    %2771 = vmatpush.msra.mxu0 %v2646
    %2772 = vmatpush.msra.mxu0 %v2645
    %2773 = vmatpush.msra.mxu0 %v2644
    %2774 = vmatpush.msra.mxu0 %v2643
    %2775 = vmatpush.msra.mxu0 %v2642
    %2776 = vmatpush.msra.mxu0 %v2641
    %2777 = vmatpush.msra.mxu0 %v2640
    %2778 = vmatpush.msra.mxu0 %v2639
    %2779 = vmatmul.f32.gmra.mxu0 %v2713
    %v2780 = vpop.f32.mrf.mxu0
    %v2781 = vadd.f32 %v2761, %v2780
    %2782 = vdwg.mxu0
    %2783 = vmatpush.msra.mxu0 %v2670
    %2784 = vmatpush.msra.mxu0 %v2669
    %2785 = vmatpush.msra.mxu0 %v2668
    %2786 = vmatpush.msra.mxu0 %v2667
    %2787 = vmatpush.msra.mxu0 %v2666
    %2788 = vmatpush.msra.mxu0 %v2665
    %2789 = vmatpush.msra.mxu0 %v2664
    %2790 = vmatpush.msra.mxu0 %v2663
    %2791 = vmatpush.msra.mxu0 %v2662
    %2792 = vmatpush.msra.mxu0 %v2661
    %2793 = vmatpush.msra.mxu0 %v2660
    %2794 = vmatpush.msra.mxu0 %v2659
    %2795 = vmatpush.msra.mxu0 %v2658
    %2796 = vmatpush.msra.mxu0 %v2657
    %2797 = vmatpush.msra.mxu0 %v2656
    %2798 = vmatpush.msra.mxu0 %v2655
    %2799 = vmatmul.f32.gmra.mxu0 %v2722
    %v2800 = vpop.f32.mrf.mxu0
    %v2801 = vadd.f32 %v2781, %v2800
    %2802 = vdwg.mxu0
    %v2803 = vmul.f32 %v2801, 0.001953125
    %vm2804 = vcmask 261120
    %v2806 = vsel %vm2804, %v2803, 0
    %2808 = vmatpush.msra.mxu0 0.0
    %2809 = vmatpush.msra.mxu0 0.0
    %2810 = vmatpush.msra.mxu0 0.0
    %2811 = vmatpush.msra.mxu0 0.0
    %2812 = vmatpush.msra.mxu0 0.0
    %2813 = vmatpush.msra.mxu0 0.0
    %2814 = vmatpush.msra.mxu0 0.0
    %2815 = vmatpush.msra.mxu0 0.0
    %2816 = vmatpush.msra.mxu0 0.0
    %2817 = vmatpush.msra.mxu0 0.0
    %2818 = vmatpush.msra.mxu0 0.0
    %2819 = vmatpush.msra.mxu0 0.0
    %2820 = vmatpush.msra.mxu0 %v2683
    %2821 = vmatpush.msra.mxu0 %v2679
    %2822 = vmatpush.msra.mxu0 %v2675
    %2823 = vmatpush.msra.mxu0 %v2671
    %2824 = vmatmul.f32.gmra.mxu0 %v2806
    %v2825 = vpop.f32.mrf.mxu0
    %v2826 = vadd.f32 0.0, %v2825
    %2827 = vdwg.mxu0
    %2828 = vmatpush.msra.mxu0 0.0
    %2829 = vmatpush.msra.mxu0 0.0
    %2830 = vmatpush.msra.mxu0 0.0
    %2831 = vmatpush.msra.mxu0 0.0
    %2832 = vmatpush.msra.mxu0 0.0
    %2833 = vmatpush.msra.mxu0 0.0
    %2834 = vmatpush.msra.mxu0 0.0
    %2835 = vmatpush.msra.mxu0 0.0
    %2836 = vmatpush.msra.mxu0 0.0
    %2837 = vmatpush.msra.mxu0 0.0
    %2838 = vmatpush.msra.mxu0 0.0
    %2839 = vmatpush.msra.mxu0 0.0
    %2840 = vmatpush.msra.mxu0 %v2684
    %2841 = vmatpush.msra.mxu0 %v2680
    %2842 = vmatpush.msra.mxu0 %v2676
    %2843 = vmatpush.msra.mxu0 %v2672
    %2844 = vmatmul.f32.gmra.mxu0 %v2806
    %v2845 = vpop.f32.mrf.mxu0
    %v2846 = vadd.f32 0.0, %v2845
    %2847 = vdwg.mxu0
    %2848 = vmatpush.msra.mxu0 0.0
    %2849 = vmatpush.msra.mxu0 0.0
    %2850 = vmatpush.msra.mxu0 0.0
    %2851 = vmatpush.msra.mxu0 0.0
    %2852 = vmatpush.msra.mxu0 0.0
    %2853 = vmatpush.msra.mxu0 0.0
    %2854 = vmatpush.msra.mxu0 0.0
    %2855 = vmatpush.msra.mxu0 0.0
    %2856 = vmatpush.msra.mxu0 0.0
    %2857 = vmatpush.msra.mxu0 0.0
    %2858 = vmatpush.msra.mxu0 0.0
    %2859 = vmatpush.msra.mxu0 0.0
    %2860 = vmatpush.msra.mxu0 %v2685
    %2861 = vmatpush.msra.mxu0 %v2681
    %2862 = vmatpush.msra.mxu0 %v2677
    %2863 = vmatpush.msra.mxu0 %v2673
    %2864 = vmatmul.f32.gmra.mxu0 %v2806
    %v2865 = vpop.f32.mrf.mxu0
    %v2866 = vadd.f32 0.0, %v2865
    %2867 = vdwg.mxu0
    %2868 = vmatpush.msra.mxu0 0.0
    %2869 = vmatpush.msra.mxu0 0.0
    %2870 = vmatpush.msra.mxu0 0.0
    %2871 = vmatpush.msra.mxu0 0.0
    %2872 = vmatpush.msra.mxu0 0.0
    %2873 = vmatpush.msra.mxu0 0.0
    %2874 = vmatpush.msra.mxu0 0.0
    %2875 = vmatpush.msra.mxu0 0.0
    %2876 = vmatpush.msra.mxu0 0.0
    %2877 = vmatpush.msra.mxu0 0.0
    %2878 = vmatpush.msra.mxu0 0.0
    %2879 = vmatpush.msra.mxu0 0.0
    %2880 = vmatpush.msra.mxu0 %v2686
    %2881 = vmatpush.msra.mxu0 %v2682
    %2882 = vmatpush.msra.mxu0 %v2678
    %2883 = vmatpush.msra.mxu0 %v2674
    %2884 = vmatmul.f32.gmra.mxu0 %v2806
    %v2885 = vpop.f32.mrf.mxu0
    %v2886 = vadd.f32 0.0, %v2885
    %2887 = vdwg.mxu0
    %v2888 = vperm.slane %v2826, 0
    %v2889 = vperm.slane %v2846, 0
    %v2890 = vperm.slane %v2866, 0
    %v2891 = vperm.slane %v2886, 0
    %v2892 = vsub.f32 %v2591, %v2888
    %v2893 = vsub.f32 %v2592, %v2889
    %v2894 = vsub.f32 %v2593, %v2890
    %v2895 = vsub.f32 %v2594, %v2891
    %v2896 = vsub.f32 %v2595, %v2888
    %v2897 = vsub.f32 %v2596, %v2889
    %v2898 = vsub.f32 %v2597, %v2890
    %v2899 = vsub.f32 %v2598, %v2891
    %v2900 = vsub.f32 %v2599, %v2888
    %v2901 = vsub.f32 %v2600, %v2889
    %v2902 = vsub.f32 %v2601, %v2890
    %v2903 = vsub.f32 %v2602, %v2891
    %v2904 = vsub.f32 %v2603, %v2888
    %v2905 = vsub.f32 %v2604, %v2889
    %v2906 = vsub.f32 %v2605, %v2890
    %v2907 = vsub.f32 %v2606, %v2891
    %v2908 = vmul.f32 %v2892, %v2892
    %v2909 = vmul.f32 %v2893, %v2893
    %v2910 = vmul.f32 %v2894, %v2894
    %v2911 = vmul.f32 %v2895, %v2895
    %v2912 = vmul.f32 %v2896, %v2896
    %v2913 = vmul.f32 %v2897, %v2897
    %v2914 = vmul.f32 %v2898, %v2898
    %v2915 = vmul.f32 %v2899, %v2899
    %v2916 = vmul.f32 %v2900, %v2900
    %v2917 = vmul.f32 %v2901, %v2901
    %v2918 = vmul.f32 %v2902, %v2902
    %v2919 = vmul.f32 %v2903, %v2903
    %v2920 = vmul.f32 %v2904, %v2904
    %v2921 = vmul.f32 %v2905, %v2905
    %v2922 = vmul.f32 %v2906, %v2906
    %v2923 = vmul.f32 %v2907, %v2907
    %v2924 = vadd.f32 %v2908, %v2912
    %v2925 = vadd.f32 %v2924, %v2916
    %v2926 = vadd.f32 %v2925, %v2920
    %v2927 = vrot.slane %v2926, 4
    %v2928 = vadd.f32 %v2926, %v2927
    %v2929 = vrot.slane %v2928, 2
    %v2930 = vadd.f32 %v2928, %v2929
    %v2931 = vrot.slane %v2930, 1
    %v2932 = vadd.f32 %v2930, %v2931
    %v2933 = vadd.f32 %v2909, %v2913
    %v2934 = vadd.f32 %v2933, %v2917
    %v2935 = vadd.f32 %v2934, %v2921
    %v2936 = vrot.slane %v2935, 4
    %v2937 = vadd.f32 %v2935, %v2936
    %v2938 = vrot.slane %v2937, 2
    %v2939 = vadd.f32 %v2937, %v2938
    %v2940 = vrot.slane %v2939, 1
    %v2941 = vadd.f32 %v2939, %v2940
    %v2942 = vadd.f32 %v2910, %v2914
    %v2943 = vadd.f32 %v2942, %v2918
    %v2944 = vadd.f32 %v2943, %v2922
    %v2945 = vrot.slane %v2944, 4
    %v2946 = vadd.f32 %v2944, %v2945
    %v2947 = vrot.slane %v2946, 2
    %v2948 = vadd.f32 %v2946, %v2947
    %v2949 = vrot.slane %v2948, 1
    %v2950 = vadd.f32 %v2948, %v2949
    %v2951 = vadd.f32 %v2911, %v2915
    %v2952 = vadd.f32 %v2951, %v2919
    %v2953 = vadd.f32 %v2952, %v2923
    %v2954 = vrot.slane %v2953, 4
    %v2955 = vadd.f32 %v2953, %v2954
    %v2956 = vrot.slane %v2955, 2
    %v2957 = vadd.f32 %v2955, %v2956
    %v2958 = vrot.slane %v2957, 1
    %v2959 = vadd.f32 %v2957, %v2958
    %2960 = vmatpush.msra.mxu0 %v2622
    %2961 = vmatpush.msra.mxu0 %v2621
    %2962 = vmatpush.msra.mxu0 %v2620
    %2963 = vmatpush.msra.mxu0 %v2619
    %2964 = vmatpush.msra.mxu0 %v2618
    %2965 = vmatpush.msra.mxu0 %v2617
    %2966 = vmatpush.msra.mxu0 %v2616
    %2967 = vmatpush.msra.mxu0 %v2615
    %2968 = vmatpush.msra.mxu0 %v2614
    %2969 = vmatpush.msra.mxu0 %v2613
    %2970 = vmatpush.msra.mxu0 %v2612
    %2971 = vmatpush.msra.mxu0 %v2611
    %2972 = vmatpush.msra.mxu0 %v2610
    %2973 = vmatpush.msra.mxu0 %v2609
    %2974 = vmatpush.msra.mxu0 %v2608
    %2975 = vmatpush.msra.mxu0 %v2607
    %2976 = vmatmul.f32.gmra.mxu0 %v2932
    %v2977 = vpop.f32.mrf.mxu0
    %v2978 = vadd.f32 0.0, %v2977
    %2979 = vdwg.mxu0
    %2980 = vmatpush.msra.mxu0 %v2638
    %2981 = vmatpush.msra.mxu0 %v2637
    %2982 = vmatpush.msra.mxu0 %v2636
    %2983 = vmatpush.msra.mxu0 %v2635
    %2984 = vmatpush.msra.mxu0 %v2634
    %2985 = vmatpush.msra.mxu0 %v2633
    %2986 = vmatpush.msra.mxu0 %v2632
    %2987 = vmatpush.msra.mxu0 %v2631
    %2988 = vmatpush.msra.mxu0 %v2630
    %2989 = vmatpush.msra.mxu0 %v2629
    %2990 = vmatpush.msra.mxu0 %v2628
    %2991 = vmatpush.msra.mxu0 %v2627
    %2992 = vmatpush.msra.mxu0 %v2626
    %2993 = vmatpush.msra.mxu0 %v2625
    %2994 = vmatpush.msra.mxu0 %v2624
    %2995 = vmatpush.msra.mxu0 %v2623
    %2996 = vmatmul.f32.gmra.mxu0 %v2941
    %v2997 = vpop.f32.mrf.mxu0
    %v2998 = vadd.f32 %v2978, %v2997
    %2999 = vdwg.mxu0
    %3000 = vmatpush.msra.mxu0 %v2654
    %3001 = vmatpush.msra.mxu0 %v2653
    %3002 = vmatpush.msra.mxu0 %v2652
    %3003 = vmatpush.msra.mxu0 %v2651
    %3004 = vmatpush.msra.mxu0 %v2650
    %3005 = vmatpush.msra.mxu0 %v2649
    %3006 = vmatpush.msra.mxu0 %v2648
    %3007 = vmatpush.msra.mxu0 %v2647
    %3008 = vmatpush.msra.mxu0 %v2646
    %3009 = vmatpush.msra.mxu0 %v2645
    %3010 = vmatpush.msra.mxu0 %v2644
    %3011 = vmatpush.msra.mxu0 %v2643
    %3012 = vmatpush.msra.mxu0 %v2642
    %3013 = vmatpush.msra.mxu0 %v2641
    %3014 = vmatpush.msra.mxu0 %v2640
    %3015 = vmatpush.msra.mxu0 %v2639
    %3016 = vmatmul.f32.gmra.mxu0 %v2950
    %v3017 = vpop.f32.mrf.mxu0
    %v3018 = vadd.f32 %v2998, %v3017
    %3019 = vdwg.mxu0
    %3020 = vmatpush.msra.mxu0 %v2670
    %3021 = vmatpush.msra.mxu0 %v2669
    %3022 = vmatpush.msra.mxu0 %v2668
    %3023 = vmatpush.msra.mxu0 %v2667
    %3024 = vmatpush.msra.mxu0 %v2666
    %3025 = vmatpush.msra.mxu0 %v2665
    %3026 = vmatpush.msra.mxu0 %v2664
    %3027 = vmatpush.msra.mxu0 %v2663
    %3028 = vmatpush.msra.mxu0 %v2662
    %3029 = vmatpush.msra.mxu0 %v2661
    %3030 = vmatpush.msra.mxu0 %v2660
    %3031 = vmatpush.msra.mxu0 %v2659
    %3032 = vmatpush.msra.mxu0 %v2658
    %3033 = vmatpush.msra.mxu0 %v2657
    %3034 = vmatpush.msra.mxu0 %v2656
    %3035 = vmatpush.msra.mxu0 %v2655
    %3036 = vmatmul.f32.gmra.mxu0 %v2959
    %v3037 = vpop.f32.mrf.mxu0
    %v3038 = vadd.f32 %v3018, %v3037
    %3039 = vdwg.mxu0
    %v3040 = vmul.f32 %v3038, 0.001953125
    %v3041 = vadd.f32 %v3040, 1e-05
    %v3042 = vrsqrt.pop %v3041
    %v3043 = vmul.f32 %v3042, %v3041
    %v3044 = vmul.f32 %v3043, %v3042
    %v3045 = vmul.f32 0.5, %v3044
    %v3046 = vsub.f32 1.5, %v3045
    %v3047 = vmul.f32 %v3042, %v3046
    %vm3048 = vweird.f32 %v3041
    %vm3049 = vweird.f32 %v3042
    %vm3050 = vmor %vm3048, %vm3049
    %v3051 = vsel %vm3050, %v3042, %v3047
    %v3052 = vld [vmem:[#allocation9] sm:$0x1]
    %v3053 = vmul.f32 %v3052, %v3051
    %v3055 = vsel %vm2804, %v3053, 0
    %3057 = vmatpush.msra.mxu0 0.0
    %3058 = vmatpush.msra.mxu0 0.0
    %3059 = vmatpush.msra.mxu0 0.0
    %3060 = vmatpush.msra.mxu0 0.0
    %3061 = vmatpush.msra.mxu0 0.0
    %3062 = vmatpush.msra.mxu0 0.0
    %3063 = vmatpush.msra.mxu0 0.0
    %3064 = vmatpush.msra.mxu0 0.0
    %3065 = vmatpush.msra.mxu0 0.0
    %3066 = vmatpush.msra.mxu0 0.0
    %3067 = vmatpush.msra.mxu0 0.0
    %3068 = vmatpush.msra.mxu0 0.0
    %3069 = vmatpush.msra.mxu0 %v2683
    %3070 = vmatpush.msra.mxu0 %v2679
    %3071 = vmatpush.msra.mxu0 %v2675
    %3072 = vmatpush.msra.mxu0 %v2671
    %3073 = vmatmul.f32.gmra.mxu0 %v3055
    %v3074 = vpop.f32.mrf.mxu0
    %v3075 = vadd.f32 0.0, %v3074
    %3076 = vdwg.mxu0
    %3077 = vmatpush.msra.mxu0 0.0
    %3078 = vmatpush.msra.mxu0 0.0
    %3079 = vmatpush.msra.mxu0 0.0
    %3080 = vmatpush.msra.mxu0 0.0
    %3081 = vmatpush.msra.mxu0 0.0
    %3082 = vmatpush.msra.mxu0 0.0
    %3083 = vmatpush.msra.mxu0 0.0
    %3084 = vmatpush.msra.mxu0 0.0
    %3085 = vmatpush.msra.mxu0 0.0
    %3086 = vmatpush.msra.mxu0 0.0
    %3087 = vmatpush.msra.mxu0 0.0
    %3088 = vmatpush.msra.mxu0 0.0
    %3089 = vmatpush.msra.mxu0 %v2684
    %3090 = vmatpush.msra.mxu0 %v2680
    %3091 = vmatpush.msra.mxu0 %v2676
    %3092 = vmatpush.msra.mxu0 %v2672
    %3093 = vmatmul.f32.gmra.mxu0 %v3055
    %v3094 = vpop.f32.mrf.mxu0
    %v3095 = vadd.f32 0.0, %v3094
    %3096 = vdwg.mxu0
    %3097 = vmatpush.msra.mxu0 0.0
    %3098 = vmatpush.msra.mxu0 0.0
    %3099 = vmatpush.msra.mxu0 0.0
    %3100 = vmatpush.msra.mxu0 0.0
    %3101 = vmatpush.msra.mxu0 0.0
    %3102 = vmatpush.msra.mxu0 0.0
    %3103 = vmatpush.msra.mxu0 0.0
    %3104 = vmatpush.msra.mxu0 0.0
    %3105 = vmatpush.msra.mxu0 0.0
    %3106 = vmatpush.msra.mxu0 0.0
    %3107 = vmatpush.msra.mxu0 0.0
    %3108 = vmatpush.msra.mxu0 0.0
    %3109 = vmatpush.msra.mxu0 %v2685
    %3110 = vmatpush.msra.mxu0 %v2681
    %3111 = vmatpush.msra.mxu0 %v2677
    %3112 = vmatpush.msra.mxu0 %v2673
    %3113 = vmatmul.f32.gmra.mxu0 %v3055
    %v3114 = vpop.f32.mrf.mxu0
    %v3115 = vadd.f32 0.0, %v3114
    %3116 = vdwg.mxu0
    %3117 = vmatpush.msra.mxu0 0.0
    %3118 = vmatpush.msra.mxu0 0.0
    %3119 = vmatpush.msra.mxu0 0.0
    %3120 = vmatpush.msra.mxu0 0.0
    %3121 = vmatpush.msra.mxu0 0.0
    %3122 = vmatpush.msra.mxu0 0.0
    %3123 = vmatpush.msra.mxu0 0.0
    %3124 = vmatpush.msra.mxu0 0.0
    %3125 = vmatpush.msra.mxu0 0.0
    %3126 = vmatpush.msra.mxu0 0.0
    %3127 = vmatpush.msra.mxu0 0.0
    %3128 = vmatpush.msra.mxu0 0.0
    %3129 = vmatpush.msra.mxu0 %v2686
    %3130 = vmatpush.msra.mxu0 %v2682
    %3131 = vmatpush.msra.mxu0 %v2678
    %3132 = vmatpush.msra.mxu0 %v2674
    %3133 = vmatmul.f32.gmra.mxu0 %v3055
    %v3134 = vpop.f32.mrf.mxu0
    %v3135 = vadd.f32 0.0, %v3134
    %3136 = vdwg.mxu0
    %v3137 = vld [vmem:[#allocation11] sm:$0x1]
    %v3139 = vsel %vm2804, %v3137, 0
    %3141 = vmatpush.msra.mxu0 0.0
    %3142 = vmatpush.msra.mxu0 0.0
    %3143 = vmatpush.msra.mxu0 0.0
    %3144 = vmatpush.msra.mxu0 0.0
    %3145 = vmatpush.msra.mxu0 0.0
    %3146 = vmatpush.msra.mxu0 0.0
    %3147 = vmatpush.msra.mxu0 0.0
    %3148 = vmatpush.msra.mxu0 0.0
    %3149 = vmatpush.msra.mxu0 0.0
    %3150 = vmatpush.msra.mxu0 0.0
    %3151 = vmatpush.msra.mxu0 0.0
    %3152 = vmatpush.msra.mxu0 0.0
    %3153 = vmatpush.msra.mxu0 %v2683
    %3154 = vmatpush.msra.mxu0 %v2679
    %3155 = vmatpush.msra.mxu0 %v2675
    %3156 = vmatpush.msra.mxu0 %v2671
    %3157 = vmatmul.f32.gmra.mxu0 %v3139
    %v3158 = vpop.f32.mrf.mxu0
    %v3159 = vadd.f32 0.0, %v3158
    %3160 = vdwg.mxu0
    %3161 = vmatpush.msra.mxu0 0.0
    %3162 = vmatpush.msra.mxu0 0.0
    %3163 = vmatpush.msra.mxu0 0.0
    %3164 = vmatpush.msra.mxu0 0.0
    %3165 = vmatpush.msra.mxu0 0.0
    %3166 = vmatpush.msra.mxu0 0.0
    %3167 = vmatpush.msra.mxu0 0.0
    %3168 = vmatpush.msra.mxu0 0.0
    %3169 = vmatpush.msra.mxu0 0.0
    %3170 = vmatpush.msra.mxu0 0.0
    %3171 = vmatpush.msra.mxu0 0.0
    %3172 = vmatpush.msra.mxu0 0.0
    %3173 = vmatpush.msra.mxu0 %v2684
    %3174 = vmatpush.msra.mxu0 %v2680
    %3175 = vmatpush.msra.mxu0 %v2676
    %3176 = vmatpush.msra.mxu0 %v2672
    %3177 = vmatmul.f32.gmra.mxu0 %v3139
    %v3178 = vpop.f32.mrf.mxu0
    %v3179 = vadd.f32 0.0, %v3178
    %3180 = vdwg.mxu0
    %3181 = vmatpush.msra.mxu0 0.0
    %3182 = vmatpush.msra.mxu0 0.0
    %3183 = vmatpush.msra.mxu0 0.0
    %3184 = vmatpush.msra.mxu0 0.0
    %3185 = vmatpush.msra.mxu0 0.0
    %3186 = vmatpush.msra.mxu0 0.0
    %3187 = vmatpush.msra.mxu0 0.0
    %3188 = vmatpush.msra.mxu0 0.0
    %3189 = vmatpush.msra.mxu0 0.0
    %3190 = vmatpush.msra.mxu0 0.0
    %3191 = vmatpush.msra.mxu0 0.0
    %3192 = vmatpush.msra.mxu0 0.0
    %3193 = vmatpush.msra.mxu0 %v2685
    %3194 = vmatpush.msra.mxu0 %v2681
    %3195 = vmatpush.msra.mxu0 %v2677
    %3196 = vmatpush.msra.mxu0 %v2673
    %3197 = vmatmul.f32.gmra.mxu0 %v3139
    %v3198 = vpop.f32.mrf.mxu0
    %v3199 = vadd.f32 0.0, %v3198
    %3200 = vdwg.mxu0
    %3201 = vmatpush.msra.mxu0 0.0
    %3202 = vmatpush.msra.mxu0 0.0
    %3203 = vmatpush.msra.mxu0 0.0
    %3204 = vmatpush.msra.mxu0 0.0
    %3205 = vmatpush.msra.mxu0 0.0
    %3206 = vmatpush.msra.mxu0 0.0
    %3207 = vmatpush.msra.mxu0 0.0
    %3208 = vmatpush.msra.mxu0 0.0
    %3209 = vmatpush.msra.mxu0 0.0
    %3210 = vmatpush.msra.mxu0 0.0
    %3211 = vmatpush.msra.mxu0 0.0
    %3212 = vmatpush.msra.mxu0 0.0
    %3213 = vmatpush.msra.mxu0 %v2686
    %3214 = vmatpush.msra.mxu0 %v2682
    %3215 = vmatpush.msra.mxu0 %v2678
    %3216 = vmatpush.msra.mxu0 %v2674
    %3217 = vmatmul.f32.gmra.mxu0 %v3139
    %v3218 = vpop.f32.mrf.mxu0
    %v3219 = vadd.f32 0.0, %v3218
    %3220 = vdwg.mxu0
    %v3221 = vperm.slane %v3075, 0
    %v3222 = vperm.slane %v3095, 0
    %v3223 = vperm.slane %v3115, 0
    %v3224 = vperm.slane %v3135, 0
    %v3225 = vmul.f32 %v2892, %v3221
    %v3226 = vmul.f32 %v2893, %v3222
    %v3227 = vmul.f32 %v2894, %v3223
    %v3228 = vmul.f32 %v2895, %v3224
    %v3229 = vmul.f32 %v2896, %v3221
    %v3230 = vmul.f32 %v2897, %v3222
    %v3231 = vmul.f32 %v2898, %v3223
    %v3232 = vmul.f32 %v2899, %v3224
    %v3233 = vmul.f32 %v2900, %v3221
    %v3234 = vmul.f32 %v2901, %v3222
    %v3235 = vmul.f32 %v2902, %v3223
    %v3236 = vmul.f32 %v2903, %v3224
    %v3237 = vmul.f32 %v2904, %v3221
    %v3238 = vmul.f32 %v2905, %v3222
    %v3239 = vmul.f32 %v2906, %v3223
    %v3240 = vmul.f32 %v2907, %v3224
    %v3241 = vperm.slane %v3159, 0
    %v3242 = vperm.slane %v3179, 0
    %v3243 = vperm.slane %v3199, 0
    %v3244 = vperm.slane %v3219, 0
    %v3245 = vadd.f32 %v3225, %v3241
    %v3246 = vadd.f32 %v3226, %v3242
    %v3247 = vadd.f32 %v3227, %v3243
    %v3248 = vadd.f32 %v3228, %v3244
    %v3249 = vadd.f32 %v3229, %v3241
    %v3250 = vadd.f32 %v3230, %v3242
    %v3251 = vadd.f32 %v3231, %v3243
    %v3252 = vadd.f32 %v3232, %v3244
    %v3253 = vadd.f32 %v3233, %v3241
    %v3254 = vadd.f32 %v3234, %v3242
    %v3255 = vadd.f32 %v3235, %v3243
    %v3256 = vadd.f32 %v3236, %v3244
    %v3257 = vadd.f32 %v3237, %v3241
    %v3258 = vadd.f32 %v3238, %v3242
    %v3259 = vadd.f32 %v3239, %v3243
    %v3260 = vadd.f32 %v3240, %v3244
    %v3261 = vmax.f32 %v3245, 0.0
    %v3262 = vmax.f32 %v3246, 0.0
    %v3263 = vmax.f32 %v3247, 0.0
    %v3264 = vmax.f32 %v3248, 0.0
    %v3265 = vmax.f32 %v3249, 0.0
    %v3266 = vmax.f32 %v3250, 0.0
    %v3267 = vmax.f32 %v3251, 0.0
    %v3268 = vmax.f32 %v3252, 0.0
    %v3269 = vmax.f32 %v3253, 0.0
    %v3270 = vmax.f32 %v3254, 0.0
    %v3271 = vmax.f32 %v3255, 0.0
    %v3272 = vmax.f32 %v3256, 0.0
    %v3273 = vmax.f32 %v3257, 0.0
    %v3274 = vmax.f32 %v3258, 0.0
    %v3275 = vmax.f32 %v3259, 0.0
    %v3276 = vmax.f32 %v3260, 0.0
    %3277 = vst [vmem:[#allocation12] sm:$0xff] %v3261
    %3278 = vst [vmem:[#allocation12 + $0x8] sm:$0xff] %v3262
    %3279 = vst [vmem:[#allocation12 + $0x10] sm:$0xff] %v3263
    %3280 = vst [vmem:[#allocation12 + $0x18] sm:$0xff] %v3264
    %3281 = vst [vmem:[#allocation12 + $0x20] sm:$0xff] %v3265
    %3282 = vst [vmem:[#allocation12 + $0x28] sm:$0xff] %v3266
    %3283 = vst [vmem:[#allocation12 + $0x30] sm:$0xff] %v3267
    %3284 = vst [vmem:[#allocation12 + $0x38] sm:$0xff] %v3268
    %3285 = vst [vmem:[#allocation12 + $0x40] sm:$0xff] %v3269
    %3286 = vst [vmem:[#allocation12 + $0x48] sm:$0xff] %v3270
    %3287 = vst [vmem:[#allocation12 + $0x50] sm:$0xff] %v3271
    %3288 = vst [vmem:[#allocation12 + $0x58] sm:$0xff] %v3272
    %3289 = vst [vmem:[#allocation12 + $0x60] sm:$0xff] %v3273
    %3290 = vst [vmem:[#allocation12 + $0x68] sm:$0xff] %v3274
    %3291 = vst [vmem:[#allocation12 + $0x70] sm:$0xff] %v3275
    %3292 = vst [vmem:[#allocation12 + $0x78] sm:$0xff] %v3276
    // Predicated region
    $region46: #{tpu_custom_call.1} parent=1 // pred_check
      _
    $region47: #{tpu_custom_call.1} parent=1 // pred_check_branch
      %3294 = sbr.rel (0) target = $region49
    $region48: #{tpu_custom_call.1} parent=1 // pred_region
      %3296 = vsyncadd [#allocation5], 0
      %s3297 = sshll.u32 [#allocation12], 4
      %s3298 = int_to_ptr.vmem [resolvable:$true] %s3297
      %s3299 = sshll.u32 %s6, 4
      %s3300 = int_to_ptr.hbm [resolvable:$true] %s3299
      %3305 = dma.vmem_to_hbm [thread:$0]  %s3298, 2048, %s3300, [#allocation5], 512, 512, 32
    $region49: #{tpu_custom_call.1} parent=1 // pred_fallthru
      _
    // Predicated region
    $region50: #{tpu_custom_call.1} parent=1 // pred_check
      _
    $region51: #{tpu_custom_call.1} parent=1 // pred_check_branch
      %3307 = sbr.rel (0) target = $region53
    $region52: #{tpu_custom_call.1} parent=1 // pred_region
      %3309 = dma.done [#allocation5], 2048
    $region53: #{tpu_custom_call.1} parent=1 // pred_fallthru
      _
    %3310 = vsyncpa [#allocation4], 1
    %3311 = vsyncpa [#allocation7], 1
    %3312 = vsyncpa [#allocation10], 1
    %3313 = vsyncpa [#allocation5], 1

</llo_original>
